<compile_context>
chip_gen: v6e
topology: v6e:2x2x1
jax: 0.10.0
libtpu: 0.0.40
codegen_flags: <defaults>
</compile_context>

<pallas_src>
import functools

import jax
import jax.numpy as jnp
from jax.experimental import pallas as pl
from jax.experimental.pallas import tpu as pltpu


def _round_up(x, m):
    return ((x + m - 1) // m) * m


def _vmem_limit_bytes():
    """Explicit VMEM budget: physical capacity minus headroom (review item #2)."""
    cap = 64 * 1024 * 1024
    try:
        info = pltpu.get_tpu_info()
        cap = int(getattr(info, "vmem_capacity_bytes", cap))
    except Exception:  # pragma: no cover - e.g. interpret mode / CPU tracing
        pass
    return max(cap - (8 << 20), 32 << 20)


# ============================================================================ fused path
def _gnn_fused_kernel(a_ref, x_ref,
                      w1r_ref, w1s_ref, b1_ref,
                      w2r_ref, w2s_ref, b2_ref,
                      w3r_ref, w3s_ref, b3_ref,
                      o_ref):
    """Whole 3-layer forward with A resident in VMEM (single grid point).

    Layers 1 & 3 (out < in) are reassociated:  A @ (h @ W_rel);
    layer 2 (out > in) keeps the original association:  (A @ h) @ W_rel.
    """
    a = a_ref[...]
    x = x_ref[...]

    # ---- layer 1: relu( A @ (x @ W1_rel) + x @ W1_root + b1 ) ----
    z1 = jnp.dot(x, w1r_ref[...], preferred_element_type=jnp.float32).astype(jnp.bfloat16)
    r1 = jnp.dot(x, w1s_ref[...], preferred_element_type=jnp.float32)
    h1 = jnp.maximum(jnp.dot(a, z1, preferred_element_type=jnp.float32) + r1 + b1_ref[...], 0.0)
    h1b = h1.astype(jnp.bfloat16)

    # ---- layer 2: relu( (A @ h1) @ W2_rel + h1 @ W2_root + b2 ) ----
    agg2 = jnp.dot(a, h1b, preferred_element_type=jnp.float32).astype(jnp.bfloat16)
    h2 = jnp.maximum(
        jnp.dot(agg2, w2r_ref[...], preferred_element_type=jnp.float32)
        + jnp.dot(h1b, w2s_ref[...], preferred_element_type=jnp.float32)
        + b2_ref[...], 0.0)
    h2b = h2.astype(jnp.bfloat16)

    # ---- layer 3 (no relu): A @ (h2 @ W3_rel) + h2 @ W3_root + b3 ----
    z3 = jnp.dot(h2b, w3r_ref[...], preferred_element_type=jnp.float32).astype(jnp.bfloat16)
    r3 = jnp.dot(h2b, w3s_ref[...], preferred_element_type=jnp.float32)
    o_ref[...] = jnp.dot(a, z3, preferred_element_type=jnp.float32) + r3 + b3_ref[...]


# ============================================================================ tiled path
def _proj1_kernel(x_ref, w1r_ref, w1s_ref, orel_ref, oroot_ref):
    """Layer-1 projections, emitted split and pre-cast (bf16 rel / f32 root)."""
    x = x_ref[...]
    orel_ref[...] = jnp.dot(x, w1r_ref[...],
                            preferred_element_type=jnp.float32).astype(jnp.bfloat16)
    oroot_ref[...] = jnp.dot(x, w1s_ref[...], preferred_element_type=jnp.float32)


def _agg_kernel(a_ref, zrel_ref, zroot_ref, b_ref, o_ref, acc_ref, *, apply_relu):
    """o[tile] = maybe_relu( sum_k A[tile,k] @ z_rel[k] + z_root[tile] + b ).

    K-tiled reduction over A columns with an f32 VMEM accumulator (P3 pattern).
    Output dtype follows o_ref (bf16 for h1, f32 for the final layer).
    """
    k = pl.program_id(1)

    @pl.when(k == 0)
    def _():
        acc_ref[...] = jnp.zeros_like(acc_ref)

    acc_ref[...] += jnp.dot(a_ref[...], zrel_ref[...], preferred_element_type=jnp.float32)

    @pl.when(k == pl.num_programs(1) - 1)
    def _():
        r = acc_ref[...] + zroot_ref[...] + b_ref[...]
        if apply_relu:
            r = jnp.maximum(r, 0.0)
        o_ref[...] = r.astype(o_ref.dtype)


def _layer2_proj3_kernel(a_ref, h1k_ref, h1i_ref, w2r_ref, w2s_ref, b2_ref,
                         w3r_ref, w3s_ref, orel_ref, oroot_ref, acc_ref):
    """Layer 2 (original association, out > in) fused with layer 3's projections.

        agg     = sum_k A[tile, k] @ h1[k]                 (K-tiled, f32 accumulator)
        h2_tile = relu(agg @ W2_rel + h1[tile] @ W2_root + b2)
        orel    = (h2_tile @ W3_rel)  in bf16   (feeds layer-3 reassociated aggregation)
        oroot   =  h2_tile @ W3_root  in f32

    h1 is passed with two BlockSpecs (k-block and i-block); the i-block is revisited
    across k so it is DMA'd only once per row tile.
    """
    k = pl.program_id(1)

    @pl.when(k == 0)
    def _():
        acc_ref[...] = jnp.zeros_like(acc_ref)

    acc_ref[...] += jnp.dot(a_ref[...], h1k_ref[...], preferred_element_type=jnp.float32)

    @pl.when(k == pl.num_programs(1) - 1)
    def _():
        h2 = (jnp.dot(acc_ref[...].astype(jnp.bfloat16), w2r_ref[...],
                      preferred_element_type=jnp.float32)
              + jnp.dot(h1i_ref[...], w2s_ref[...], preferred_element_type=jnp.float32)
              + b2_ref[...])
        h2 = jnp.maximum(h2, 0.0).astype(jnp.bfloat16)
        orel_ref[...] = jnp.dot(h2, w3r_ref[...],
                                preferred_element_type=jnp.float32).astype(jnp.bfloat16)
        oroot_ref[...] = jnp.dot(h2, w3s_ref[...], preferred_element_type=jnp.float32)


# ============================================================================ wrapper
_FUSE_MAX = 2048  # fused single-kernel path while A (bf16) comfortably fits in VMEM


def gnn_forward(x, edge_index, edge_weight, batch, params, *,
                force_tiled=False, tm=None, tk=None):
    """3-layer GraphConv forward.  Adjacency scatter-add / padding / dtype packing is
    plain-JAX glue; all matmul-heavy work runs in the Pallas kernels above."""
    del batch  # no pooling in the reference forward
    n, f_in = x.shape

    # -- dense weighted adjacency A[dst, src] += w (scatter-add glue) -------------------
    src, dst = edge_index[0], edge_index[1]
    a = jnp.zeros((n, n), jnp.float32).at[dst, src].add(edge_weight.astype(jnp.float32))

    # -- weights / biases (bf16 MXU operands, f32 biases) -------------------------------
    hid = params["w1_rel"].shape[1]
    c2 = params["w2_rel"].shape[1]
    c3 = params["w3_rel"].shape[1]
    w1r = params["w1_rel"].astype(jnp.bfloat16)
    w1s = params["w1_root"].astype(jnp.bfloat16)
    w2r = params["w2_rel"].astype(jnp.bfloat16)
    w2s = params["w2_root"].astype(jnp.bfloat16)
    w3r = params["w3_rel"].astype(jnp.bfloat16)
    w3s = params["w3_root"].astype(jnp.bfloat16)
    b1 = params["b1"].astype(jnp.float32)
    b2 = params["b2"].astype(jnp.float32)
    b3 = params["b3"].astype(jnp.float32)

    vmem_limit = _vmem_limit_bytes()

    # ======================= fused single-kernel path (small / medium graphs) ==========
    if (not force_tiled) and _round_up(max(n, 128), 128) <= _FUSE_MAX:
        n_pad = _round_up(max(n, 128), 128)
        a_b = jnp.pad(a, ((0, n_pad - n), (0, n_pad - n))).astype(jnp.bfloat16)
        x_b = jnp.pad(x.astype(jnp.float32), ((0, n_pad - n), (0, 0))).astype(jnp.bfloat16)

        full = lambda i: (0, 0)  # noqa: E731
        out_p = pl.pallas_call(
            _gnn_fused_kernel,
            out_shape=jax.ShapeDtypeStruct((n_pad, c3), jnp.float32),
            grid=(1,),
            in_specs=[pl.BlockSpec((n_pad, n_pad), full),
                      pl.BlockSpec((n_pad, f_in), full),
                      pl.BlockSpec((f_in, hid), full),
                      pl.BlockSpec((f_in, hid), full),
                      pl.BlockSpec((1, hid), full),
                      pl.BlockSpec((hid, c2), full),
                      pl.BlockSpec((hid, c2), full),
                      pl.BlockSpec((1, c2), full),
                      pl.BlockSpec((c2, c3), full),
                      pl.BlockSpec((c2, c3), full),
                      pl.BlockSpec((1, c3), full)],
            out_specs=pl.BlockSpec((n_pad, c3), full),
            compiler_params=pltpu.CompilerParams(
                dimension_semantics=("arbitrary",), vmem_limit_bytes=vmem_limit),
        )(a_b, x_b, w1r, w1s, b1, w2r, w2s, b2, w3r, w3s, b3)
        return out_p[:n, :]

    # ======================= tiled path (large graphs): row + K tiling =================
    tm = 256 if tm is None else tm            # power-of-two row tile
    if tk is None:
        n_tmp = _round_up(max(n, 256), 256)
        tk = max(t for t in (2048, 1024, 512, 256) if n_tmp % t == 0)
    n_pad = _round_up(max(n, 256), max(tm, tk, 256))
    grid_m, grid_k = n_pad // tm, n_pad // tk

    a_b = jnp.pad(a, ((0, n_pad - n), (0, n_pad - n))).astype(jnp.bfloat16)
    x_b = jnp.pad(x.astype(jnp.float32), ((0, n_pad - n), (0, 0))).astype(jnp.bfloat16)

    cp1 = pltpu.CompilerParams(dimension_semantics=("parallel",),
                               vmem_limit_bytes=vmem_limit)
    cp2 = pltpu.CompilerParams(dimension_semantics=("parallel", "arbitrary"),
                               vmem_limit_bytes=vmem_limit)
    row = lambda i: (i, 0)            # noqa: E731
    full1 = lambda i: (0, 0)          # noqa: E731
    a_blk = lambda i, k: (i, k)       # noqa: E731
    kblk = lambda i, k: (k, 0)        # noqa: E731
    iblk = lambda i, k: (i, 0)        # noqa: E731
    cst = lambda i, k: (0, 0)         # noqa: E731

    # -- layer 1 projection: split, pre-cast outputs (bf16 rel / f32 root) --------------
    hp1_rel, hp1_root = pl.pallas_call(
        _proj1_kernel,
        out_shape=(jax.ShapeDtypeStruct((n_pad, hid), jnp.bfloat16),
                   jax.ShapeDtypeStruct((n_pad, hid), jnp.float32)),
        grid=(grid_m,),
        in_specs=[pl.BlockSpec((tm, f_in), row),
                  pl.BlockSpec((f_in, hid), full1),
                  pl.BlockSpec((f_in, hid), full1)],
        out_specs=(pl.BlockSpec((tm, hid), row),
                   pl.BlockSpec((tm, hid), row)),
        compiler_params=cp1,
    )(x_b, w1r, w1s)

    # -- layer 1 aggregation (K-tiled): h1 = relu(A @ hp1_rel + hp1_root + b1), bf16 out
    h1 = pl.pallas_call(
        functools.partial(_agg_kernel, apply_relu=True),
        out_shape=jax.ShapeDtypeStruct((n_pad, hid), jnp.bfloat16),
        grid=(grid_m, grid_k),
        in_specs=[pl.BlockSpec((tm, tk), a_blk),
                  pl.BlockSpec((tk, hid), kblk),
                  pl.BlockSpec((tm, hid), iblk),
                  pl.BlockSpec((1, hid), cst)],
        out_specs=pl.BlockSpec((tm, hid), iblk),
        scratch_shapes=[pltpu.VMEM((tm, hid), jnp.float32)],
        compiler_params=cp2,
    )(a_b, hp1_rel, hp1_root, b1)

    # -- layer 2 (K-tiled, original association) fused with layer 3's projections -------
    hp3_rel, hp3_root = pl.pallas_call(
        _layer2_proj3_kernel,
        out_shape=(jax.ShapeDtypeStruct((n_pad, c3), jnp.bfloat16),
                   jax.ShapeDtypeStruct((n_pad, c3), jnp.float32)),
        grid=(grid_m, grid_k),
        in_specs=[pl.BlockSpec((tm, tk), a_blk),
                  pl.BlockSpec((tk, hid), kblk),
                  pl.BlockSpec((tm, hid), iblk),
                  pl.BlockSpec((hid, c2), cst),
                  pl.BlockSpec((hid, c2), cst),
                  pl.BlockSpec((1, c2), cst),
                  pl.BlockSpec((c2, c3), cst),
                  pl.BlockSpec((c2, c3), cst)],
        out_specs=(pl.BlockSpec((tm, c3), iblk),
                   pl.BlockSpec((tm, c3), iblk)),
        scratch_shapes=[pltpu.VMEM((tm, hid), jnp.float32)],
        compiler_params=cp2,
    )(a_b, h1, h1, w2r, w2s, b2, w3r, w3s)

    # -- layer 3 aggregation (K-tiled, no relu): out = A @ hp3_rel + hp3_root + b3 ------
    out_p = pl.pallas_call(
        functools.partial(_agg_kernel, apply_relu=False),
        out_shape=jax.ShapeDtypeStruct((n_pad, c3), jnp.float32),
        grid=(grid_m, grid_k),
        in_specs=[pl.BlockSpec((tm, tk), a_blk),
                  pl.BlockSpec((tk, c3), kblk),
                  pl.BlockSpec((tm, c3), iblk),
                  pl.BlockSpec((1, c3), cst)],
        out_specs=pl.BlockSpec((tm, c3), iblk),
        scratch_shapes=[pltpu.VMEM((tm, c3), jnp.float32)],
        compiler_params=cp2,
    )(a_b, hp3_rel, hp3_root, b3)

    return out_p[:n, :]


# ============================================================================ params / reference
def init_params(key, hidden_channels):
    """Deterministic synthetic init matching GraphConv(1024,H), (H,128), (128,4)."""
    dims = [(1024, hidden_channels), (hidden_channels, 128), (128, 4)]
    params = {}
    keys = jax.random.split(key, 3 * len(dims))
    for li, (fin, fout) in enumerate(dims, start=1):
        k_rel, k_root, k_b = keys[3 * (li - 1): 3 * li]
        bound = 1.0 / (fin ** 0.5)
        # stored as [in, out] (transposed vs. torch's [out, in])
        params[f"w{li}_rel"] = jax.random.uniform(k_rel, (fin, fout), jnp.float32, -bound, bound)
        params[f"w{li}_root"] = jax.random.uniform(k_root, (fin, fout), jnp.float32, -bound, bound)
        params[f"b{li}"] = jax.random.uniform(k_b, (1, fout), jnp.float32, -bound, bound)
    return params


def gnn_reference(x, edge_index, edge_weight, params):
    """Plain-JAX f32 reference for correctness checking."""
    n = x.shape[0]
    a = jnp.zeros((n, n), jnp.float32).at[edge_index[1], edge_index[0]].add(
        edge_weight.astype(jnp.float32))

    def conv(h, wr, ws, b):
        return (a @ h) @ wr + b + h @ ws

    h = jax.nn.relu(conv(x, params["w1_rel"], params["w1_root"], params["b1"]))
    h = jax.nn.relu(conv(h, params["w2_rel"], params["w2_root"], params["b2"]))
    return conv(h, params["w3_rel"], params["w3_root"], params["b3"])


if __name__ == "__main__":
    key = jax.random.PRNGKey(0)
    kx, ke, kw, kp = jax.random.split(key, 4)

    N, E, HIDDEN = 16, 32, 64          # small graph; feature dim 1024 fixed by the module
    x = jax.random.normal(kx, (N, 1024), jnp.float32)
    edge_index = jax.random.randint(ke, (2, E), 0, N, dtype=jnp.int32)
    edge_weight = jax.random.uniform(kw, (E,), jnp.float32, 0.1, 1.0)
    batch = jnp.zeros((N,), jnp.int32)  # present in signature, unused in forward

    params = init_params(kp, HIDDEN)
    ref = gnn_reference(x, edge_index, edge_weight, params)

    # fused single-kernel path (default for small graphs)
    out = jax.block_until_ready(gnn_forward(x, edge_index, edge_weight, batch, params))
    assert out.shape == (N, 4), out.shape
    # bf16 MXU operands (f32 accumulation) vs. a pure-f32 reference -> looser tolerance.
    assert jnp.allclose(out, ref, atol=5e-2, rtol=5e-2), float(jnp.max(jnp.abs(out - ref)))

    # also exercise the K-tiled large-graph path (2x2 grid) on the same small graph
    out_t = jax.block_until_ready(
        gnn_forward(x, edge_index, edge_weight, batch, params,
                    force_tiled=True, tm=128, tk=128))
    assert out_t.shape == (N, 4), out_t.shape
    assert jnp.allclose(out_t, ref, atol=5e-2, rtol=5e-2), float(jnp.max(jnp.abs(out_t - ref)))

    print("KERNEL_OK")
</pallas_src>

<mosaic_0001>
module attributes {stable_mosaic.version = 11 : i64} {
  func.func @_gnn_fused_kernel(%arg0: i32, %arg1: memref<128x128xbf16, #tpu.memory_space<vmem>>, %arg2: memref<128x1024xbf16, #tpu.memory_space<vmem>>, %arg3: memref<1024x64xbf16, #tpu.memory_space<vmem>>, %arg4: memref<1024x64xbf16, #tpu.memory_space<vmem>>, %arg5: memref<1x64xf32, #tpu.memory_space<vmem>>, %arg6: memref<64x128xbf16, #tpu.memory_space<vmem>>, %arg7: memref<64x128xbf16, #tpu.memory_space<vmem>>, %arg8: memref<1x128xf32, #tpu.memory_space<vmem>>, %arg9: memref<128x4xbf16, #tpu.memory_space<vmem>>, %arg10: memref<128x4xbf16, #tpu.memory_space<vmem>>, %arg11: memref<1x4xf32, #tpu.memory_space<vmem>>, %arg12: memref<128x4xf32, #tpu.memory_space<vmem>>) attributes {dimension_semantics = [#tpu.dimension_semantics<arbitrary>], iteration_bounds = array<i64: 1>, scalar_prefetch = 0 : i64, scratch_operands = 0 : i64, tpu.core_type = #tpu.core_type<tc>, window_params = [{pipeline_mode = #tpu.pipeline_mode<synchronous>, transform_indices = @transform_0, window_bounds = array<i64: 128, 128>}, {pipeline_mode = #tpu.pipeline_mode<synchronous>, transform_indices = @transform_1, window_bounds = array<i64: 128, 1024>}, {pipeline_mode = #tpu.pipeline_mode<synchronous>, transform_indices = @transform_2, window_bounds = array<i64: 1024, 64>}, {pipeline_mode = #tpu.pipeline_mode<synchronous>, transform_indices = @transform_3, window_bounds = array<i64: 1024, 64>}, {pipeline_mode = #tpu.pipeline_mode<synchronous>, transform_indices = @transform_4, window_bounds = array<i64: 1, 64>}, {pipeline_mode = #tpu.pipeline_mode<synchronous>, transform_indices = @transform_5, window_bounds = array<i64: 64, 128>}, {pipeline_mode = #tpu.pipeline_mode<synchronous>, transform_indices = @transform_6, window_bounds = array<i64: 64, 128>}, {pipeline_mode = #tpu.pipeline_mode<synchronous>, transform_indices = @transform_7, window_bounds = array<i64: 1, 128>}, {pipeline_mode = #tpu.pipeline_mode<synchronous>, transform_indices = @transform_8, window_bounds = array<i64: 128, 4>}, {pipeline_mode = #tpu.pipeline_mode<synchronous>, transform_indices = @transform_9, window_bounds = array<i64: 128, 4>}, {pipeline_mode = #tpu.pipeline_mode<synchronous>, transform_indices = @transform_10, window_bounds = array<i64: 1, 4>}, {pipeline_mode = #tpu.pipeline_mode<synchronous>, transform_indices = @transform_11, window_bounds = array<i64: 128, 4>}]} {
    %c0 = arith.constant 0 : index
    %c0_0 = arith.constant 0 : index
    %0 = vector.load %arg1[%c0, %c0_0] : memref<128x128xbf16, #tpu.memory_space<vmem>>, vector<128x128xbf16>
    %c0_1 = arith.constant 0 : index
    %c0_2 = arith.constant 0 : index
    %1 = vector.load %arg2[%c0_1, %c0_2] : memref<128x1024xbf16, #tpu.memory_space<vmem>>, vector<128x1024xbf16>
    %c0_3 = arith.constant 0 : index
    %c0_4 = arith.constant 0 : index
    %2 = vector.load %arg3[%c0_3, %c0_4] : memref<1024x64xbf16, #tpu.memory_space<vmem>>, vector<1024x64xbf16>
    %cst = arith.constant dense<0.000000e+00> : vector<128x64xf32>
    %3 = tpu.matmul %1, %2, %cst {dimension_numbers = #tpu.dot_dimension_numbers<[1], [0], [0], [1], [0, 0, 1, 1], [], []>} : vector<128x1024xbf16>, vector<1024x64xbf16>, vector<128x64xf32> -> vector<128x64xf32>
    %4 = arith.truncf %3 : vector<128x64xf32> to vector<128x64xbf16>
    %c0_5 = arith.constant 0 : index
    %c0_6 = arith.constant 0 : index
    %5 = vector.load %arg4[%c0_5, %c0_6] : memref<1024x64xbf16, #tpu.memory_space<vmem>>, vector<1024x64xbf16>
    %cst_7 = arith.constant dense<0.000000e+00> : vector<128x64xf32>
    %6 = tpu.matmul %1, %5, %cst_7 {dimension_numbers = #tpu.dot_dimension_numbers<[1], [0], [0], [1], [0, 0, 1, 1], [], []>} : vector<128x1024xbf16>, vector<1024x64xbf16>, vector<128x64xf32> -> vector<128x64xf32>
    %cst_8 = arith.constant dense<0.000000e+00> : vector<128x64xf32>
    %7 = tpu.matmul %0, %4, %cst_8 {dimension_numbers = #tpu.dot_dimension_numbers<[1], [0], [0], [1], [0, 0, 1, 1], [], []>} : vector<128x128xbf16>, vector<128x64xbf16>, vector<128x64xf32> -> vector<128x64xf32>
    %8 = arith.addf %7, %6 : vector<128x64xf32>
    %c0_9 = arith.constant 0 : index
    %c0_10 = arith.constant 0 : index
    %9 = vector.load %arg5[%c0_9, %c0_10] : memref<1x64xf32, #tpu.memory_space<vmem>>, vector<1x64xf32>
    %10 = vector.broadcast %9 : vector<1x64xf32> to vector<128x64xf32>
    %11 = arith.addf %8, %10 : vector<128x64xf32>
    %cst_11 = arith.constant 0.000000e+00 : f32
    %12 = vector.broadcast %cst_11 : f32 to vector<128x64xf32>
    %13 = arith.maximumf %11, %12 : vector<128x64xf32>
    %14 = arith.truncf %13 : vector<128x64xf32> to vector<128x64xbf16>
    %cst_12 = arith.constant dense<0.000000e+00> : vector<128x64xf32>
    %15 = tpu.matmul %0, %14, %cst_12 {dimension_numbers = #tpu.dot_dimension_numbers<[1], [0], [0], [1], [0, 0, 1, 1], [], []>} : vector<128x128xbf16>, vector<128x64xbf16>, vector<128x64xf32> -> vector<128x64xf32>
    %16 = arith.truncf %15 : vector<128x64xf32> to vector<128x64xbf16>
    %c0_13 = arith.constant 0 : index
    %c0_14 = arith.constant 0 : index
    %17 = vector.load %arg6[%c0_13, %c0_14] : memref<64x128xbf16, #tpu.memory_space<vmem>>, vector<64x128xbf16>
    %cst_15 = arith.constant dense<0.000000e+00> : vector<128x128xf32>
    %18 = tpu.matmul %16, %17, %cst_15 {dimension_numbers = #tpu.dot_dimension_numbers<[1], [0], [0], [1], [0, 0, 1, 1], [], []>} : vector<128x64xbf16>, vector<64x128xbf16>, vector<128x128xf32> -> vector<128x128xf32>
    %c0_16 = arith.constant 0 : index
    %c0_17 = arith.constant 0 : index
    %19 = vector.load %arg7[%c0_16, %c0_17] : memref<64x128xbf16, #tpu.memory_space<vmem>>, vector<64x128xbf16>
    %cst_18 = arith.constant dense<0.000000e+00> : vector<128x128xf32>
    %20 = tpu.matmul %14, %19, %cst_18 {dimension_numbers = #tpu.dot_dimension_numbers<[1], [0], [0], [1], [0, 0, 1, 1], [], []>} : vector<128x64xbf16>, vector<64x128xbf16>, vector<128x128xf32> -> vector<128x128xf32>
    %21 = arith.addf %18, %20 : vector<128x128xf32>
    %c0_19 = arith.constant 0 : index
    %c0_20 = arith.constant 0 : index
    %22 = vector.load %arg8[%c0_19, %c0_20] : memref<1x128xf32, #tpu.memory_space<vmem>>, vector<1x128xf32>
    %23 = vector.broadcast %22 : vector<1x128xf32> to vector<128x128xf32>
    %24 = arith.addf %21, %23 : vector<128x128xf32>
    %cst_21 = arith.constant 0.000000e+00 : f32
    %25 = vector.broadcast %cst_21 : f32 to vector<128x128xf32>
    %26 = arith.maximumf %24, %25 : vector<128x128xf32>
    %27 = arith.truncf %26 : vector<128x128xf32> to vector<128x128xbf16>
    %c0_22 = arith.constant 0 : index
    %c0_23 = arith.constant 0 : index
    %28 = vector.load %arg9[%c0_22, %c0_23] : memref<128x4xbf16, #tpu.memory_space<vmem>>, vector<128x4xbf16>
    %cst_24 = arith.constant dense<0.000000e+00> : vector<128x4xf32>
    %29 = tpu.matmul %27, %28, %cst_24 {dimension_numbers = #tpu.dot_dimension_numbers<[1], [0], [0], [1], [0, 0, 1, 1], [], []>} : vector<128x128xbf16>, vector<128x4xbf16>, vector<128x4xf32> -> vector<128x4xf32>
    %30 = arith.truncf %29 : vector<128x4xf32> to vector<128x4xbf16>
    %c0_25 = arith.constant 0 : index
    %c0_26 = arith.constant 0 : index
    %31 = vector.load %arg10[%c0_25, %c0_26] : memref<128x4xbf16, #tpu.memory_space<vmem>>, vector<128x4xbf16>
    %cst_27 = arith.constant dense<0.000000e+00> : vector<128x4xf32>
    %32 = tpu.matmul %27, %31, %cst_27 {dimension_numbers = #tpu.dot_dimension_numbers<[1], [0], [0], [1], [0, 0, 1, 1], [], []>} : vector<128x128xbf16>, vector<128x4xbf16>, vector<128x4xf32> -> vector<128x4xf32>
    %cst_28 = arith.constant dense<0.000000e+00> : vector<128x4xf32>
    %33 = tpu.matmul %0, %30, %cst_28 {dimension_numbers = #tpu.dot_dimension_numbers<[1], [0], [0], [1], [0, 0, 1, 1], [], []>} : vector<128x128xbf16>, vector<128x4xbf16>, vector<128x4xf32> -> vector<128x4xf32>
    %34 = arith.addf %33, %32 : vector<128x4xf32>
    %c0_29 = arith.constant 0 : index
    %c0_30 = arith.constant 0 : index
    %35 = vector.load %arg11[%c0_29, %c0_30] : memref<1x4xf32, #tpu.memory_space<vmem>>, vector<1x4xf32>
    %36 = vector.broadcast %35 : vector<1x4xf32> to vector<128x4xf32>
    %37 = arith.addf %34, %36 : vector<128x4xf32>
    %c0_31 = arith.constant 0 : index
    %c0_32 = arith.constant 0 : index
    %38 = vector.load %arg12[%c0_31, %c0_32] : memref<128x4xf32, #tpu.memory_space<vmem>>, vector<128x4xf32>
    tpu.vector_store %arg12[%c0_31, %c0_32], %37 {strides = array<i32>} : memref<128x4xf32, #tpu.memory_space<vmem>>, vector<128x4xf32>,
    return
  }
  func.func @transform_0(%arg0: i32) -> (i32, i32) {
    %c0_i32 = arith.constant 0 : i32
    %c0_i32_0 = arith.constant 0 : i32
    %c0_i32_1 = arith.constant 0 : i32
    return %c0_i32, %c0_i32_0 : i32, i32
  }
  func.func @transform_1(%arg0: i32) -> (i32, i32) {
    %c0_i32 = arith.constant 0 : i32
    %c0_i32_0 = arith.constant 0 : i32
    %c0_i32_1 = arith.constant 0 : i32
    return %c0_i32, %c0_i32_0 : i32, i32
  }
  func.func @transform_2(%arg0: i32) -> (i32, i32) {
    %c0_i32 = arith.constant 0 : i32
    %c0_i32_0 = arith.constant 0 : i32
    %c0_i32_1 = arith.constant 0 : i32
    return %c0_i32, %c0_i32_0 : i32, i32
  }
  func.func @transform_3(%arg0: i32) -> (i32, i32) {
    %c0_i32 = arith.constant 0 : i32
    %c0_i32_0 = arith.constant 0 : i32
    %c0_i32_1 = arith.constant 0 : i32
    return %c0_i32, %c0_i32_0 : i32, i32
  }
  func.func @transform_4(%arg0: i32) -> (i32, i32) {
    %c0_i32 = arith.constant 0 : i32
    %c0_i32_0 = arith.constant 0 : i32
    %c0_i32_1 = arith.constant 0 : i32
    return %c0_i32, %c0_i32_0 : i32, i32
  }
  func.func @transform_5(%arg0: i32) -> (i32, i32) {
    %c0_i32 = arith.constant 0 : i32
    %c0_i32_0 = arith.constant 0 : i32
    %c0_i32_1 = arith.constant 0 : i32
    return %c0_i32, %c0_i32_0 : i32, i32
  }
  func.func @transform_6(%arg0: i32) -> (i32, i32) {
    %c0_i32 = arith.constant 0 : i32
    %c0_i32_0 = arith.constant 0 : i32
    %c0_i32_1 = arith.constant 0 : i32
    return %c0_i32, %c0_i32_0 : i32, i32
  }
  func.func @transform_7(%arg0: i32) -> (i32, i32) {
    %c0_i32 = arith.constant 0 : i32
    %c0_i32_0 = arith.constant 0 : i32
    %c0_i32_1 = arith.constant 0 : i32
    return %c0_i32, %c0_i32_0 : i32, i32
  }
  func.func @transform_8(%arg0: i32) -> (i32, i32) {
    %c0_i32 = arith.constant 0 : i32
    %c0_i32_0 = arith.constant 0 : i32
    %c0_i32_1 = arith.constant 0 : i32
    return %c0_i32, %c0_i32_0 : i32, i32
  }
  func.func @transform_9(%arg0: i32) -> (i32, i32) {
    %c0_i32 = arith.constant 0 : i32
    %c0_i32_0 = arith.constant 0 : i32
    %c0_i32_1 = arith.constant 0 : i32
    return %c0_i32, %c0_i32_0 : i32, i32
  }
  func.func @transform_10(%arg0: i32) -> (i32, i32) {
    %c0_i32 = arith.constant 0 : i32
    %c0_i32_0 = arith.constant 0 : i32
    %c0_i32_1 = arith.constant 0 : i32
    return %c0_i32, %c0_i32_0 : i32, i32
  }
  func.func @transform_11(%arg0: i32) -> (i32, i32) {
    %c0_i32 = arith.constant 0 : i32
    %c0_i32_0 = arith.constant 0 : i32
    %c0_i32_1 = arith.constant 0 : i32
    return %c0_i32, %c0_i32_0 : i32, i32
  }
}

</mosaic_0001>

<llo_original>
// kernel: tpu_custom_call.1
$region0: #{tpu_custom_call.1}
  #allocation0 [shape = 'u32[]', space=smem, size = 0x4, offset = 0x4, fixed_abs, tag = 'smem constant byte address 0x4 - core index']
  #allocation1 [shape = 'u32[144,128]{1,0:T(1,128)}', space=vmem, size = 0x12000, scoped, tag = 'internal scratch']
  %s0 = inlined_call_operand.vmem [shape: bf16[128,128], index: 0, kind: input, shape index: {}]
  %s1 = inlined_call_operand.vmem [shape: bf16[128,1024], index: 1, kind: input, shape index: {}]
  %s2 = inlined_call_operand.vmem [shape: bf16[1024,64], index: 2, kind: input, shape index: {}]
  %s3 = inlined_call_operand.vmem [shape: bf16[1024,64], index: 3, kind: input, shape index: {}]
  %s4 = inlined_call_operand.vmem [shape: f32[1,64], index: 4, kind: input, shape index: {}]
  %s5 = inlined_call_operand.vmem [shape: bf16[64,128], index: 5, kind: input, shape index: {}]
  %s6 = inlined_call_operand.vmem [shape: bf16[64,128], index: 6, kind: input, shape index: {}]
  %s7 = inlined_call_operand.vmem [shape: f32[1,128], index: 7, kind: input, shape index: {}]
  %s8 = inlined_call_operand.vmem [shape: bf16[128,4], index: 8, kind: input, shape index: {}]
  %s9 = inlined_call_operand.vmem [shape: bf16[128,4], index: 9, kind: input, shape index: {}]
  %s10 = inlined_call_operand.vmem [shape: f32[1,4], index: 10, kind: input, shape index: {}]
  %s11 = inlined_call_operand.vmem [shape: f32[128,4], index: 11, kind: output, shape index: {}]
  %s12 = sld [smem:[#allocation0]]
  $region54: #{tpu_custom_call.1} parent=0
    _
  %s14 = ssub.s32 1, %s12
  %s15 = scalar_select 0, %s14, %s12
  // Predicated region
  $region2: #{tpu_custom_call.1} parent=0 // pred_check
    _
  $region3: #{tpu_custom_call.1} parent=0 // pred_check_branch
    %17 = sbr.rel (0) target = $region5
  $region4: #{tpu_custom_call.1} parent=0 // pred_region
    _
  $region5: #{tpu_custom_call.1} parent=0 // pred_fallthru
    _
  // Predicated region
  $region6: #{tpu_custom_call.1} parent=0 // pred_check
    _
  $region7: #{tpu_custom_call.1} parent=0 // pred_check_branch
    %19 = sbr.rel (0) target = $region9
  $region8: #{tpu_custom_call.1} parent=0 // pred_region
    _
  $region9: #{tpu_custom_call.1} parent=0 // pred_fallthru
    _
  // Predicated region
  $region10: #{tpu_custom_call.1} parent=0 // pred_check
    _
  $region11: #{tpu_custom_call.1} parent=0 // pred_check_branch
    %21 = sbr.rel (0) target = $region13
  $region12: #{tpu_custom_call.1} parent=0 // pred_region
    _
  $region13: #{tpu_custom_call.1} parent=0 // pred_fallthru
    _
  // Predicated region
  $region14: #{tpu_custom_call.1} parent=0 // pred_check
    _
  $region15: #{tpu_custom_call.1} parent=0 // pred_check_branch
    %23 = sbr.rel (0) target = $region17
  $region16: #{tpu_custom_call.1} parent=0 // pred_region
    _
  $region17: #{tpu_custom_call.1} parent=0 // pred_fallthru
    _
  // Predicated region
  $region18: #{tpu_custom_call.1} parent=0 // pred_check
    _
  $region19: #{tpu_custom_call.1} parent=0 // pred_check_branch
    %25 = sbr.rel (0) target = $region21
  $region20: #{tpu_custom_call.1} parent=0 // pred_region
    _
  $region21: #{tpu_custom_call.1} parent=0 // pred_fallthru
    _
  // Predicated region
  $region22: #{tpu_custom_call.1} parent=0 // pred_check
    _
  $region23: #{tpu_custom_call.1} parent=0 // pred_check_branch
    %27 = sbr.rel (0) target = $region25
  $region24: #{tpu_custom_call.1} parent=0 // pred_region
    _
  $region25: #{tpu_custom_call.1} parent=0 // pred_fallthru
    _
  // Predicated region
  $region26: #{tpu_custom_call.1} parent=0 // pred_check
    _
  $region27: #{tpu_custom_call.1} parent=0 // pred_check_branch
    %29 = sbr.rel (0) target = $region29
  $region28: #{tpu_custom_call.1} parent=0 // pred_region
    _
  $region29: #{tpu_custom_call.1} parent=0 // pred_fallthru
    _
  // Predicated region
  $region30: #{tpu_custom_call.1} parent=0 // pred_check
    _
  $region31: #{tpu_custom_call.1} parent=0 // pred_check_branch
    %31 = sbr.rel (0) target = $region33
  $region32: #{tpu_custom_call.1} parent=0 // pred_region
    _
  $region33: #{tpu_custom_call.1} parent=0 // pred_fallthru
    _
  // Predicated region
  $region34: #{tpu_custom_call.1} parent=0 // pred_check
    _
  $region35: #{tpu_custom_call.1} parent=0 // pred_check_branch
    %33 = sbr.rel (0) target = $region37
  $region36: #{tpu_custom_call.1} parent=0 // pred_region
    _
  $region37: #{tpu_custom_call.1} parent=0 // pred_fallthru
    _
  // Predicated region
  $region38: #{tpu_custom_call.1} parent=0 // pred_check
    _
  $region39: #{tpu_custom_call.1} parent=0 // pred_check_branch
    %35 = sbr.rel (0) target = $region41
  $region40: #{tpu_custom_call.1} parent=0 // pred_region
    _
  $region41: #{tpu_custom_call.1} parent=0 // pred_fallthru
    _
  // Predicated region
  $region42: #{tpu_custom_call.1} parent=0 // pred_check
    _
  $region43: #{tpu_custom_call.1} parent=0 // pred_check_branch
    %37 = sbr.rel (0) target = $region45
  $region44: #{tpu_custom_call.1} parent=0 // pred_region
    _
  $region45: #{tpu_custom_call.1} parent=0 // pred_fallthru
    _
  %v39 = vld [vmem:[%s0] sm:$0xf]
  %v40 = vld [vmem:[%s0 + $0x4] sm:$0xf]
  %v41 = vld [vmem:[%s0 + $0x8] sm:$0xf]
  %v42 = vld [vmem:[%s0 + $0xc] sm:$0xf]
  %v43 = vld [vmem:[%s0 + $0x10] sm:$0xf]
  %v44 = vld [vmem:[%s0 + $0x14] sm:$0xf]
  %v45 = vld [vmem:[%s0 + $0x18] sm:$0xf]
  %v46 = vld [vmem:[%s0 + $0x1c] sm:$0xf]
  %v47 = vld [vmem:[%s0 + $0x20] sm:$0xf]
  %v48 = vld [vmem:[%s0 + $0x24] sm:$0xf]
  %v49 = vld [vmem:[%s0 + $0x28] sm:$0xf]
  %v50 = vld [vmem:[%s0 + $0x2c] sm:$0xf]
  %v51 = vld [vmem:[%s0 + $0x30] sm:$0xf]
  %v52 = vld [vmem:[%s0 + $0x34] sm:$0xf]
  %v53 = vld [vmem:[%s0 + $0x38] sm:$0xf]
  %v54 = vld [vmem:[%s0 + $0x3c] sm:$0xf]
  %v55 = vld [vmem:[%s1] sm:$0xff]
  %v56 = vld [vmem:[%s1 + $0x8] sm:$0xff]
  %v57 = vld [vmem:[%s1 + $0x10] sm:$0xff]
  %v58 = vld [vmem:[%s1 + $0x18] sm:$0xff]
  %v59 = vld [vmem:[%s1 + $0x20] sm:$0xff]
  %v60 = vld [vmem:[%s1 + $0x28] sm:$0xff]
  %v61 = vld [vmem:[%s1 + $0x30] sm:$0xff]
  %v62 = vld [vmem:[%s1 + $0x38] sm:$0xff]
  %v63 = vld [vmem:[%s1 + $0x40] sm:$0xff]
  %v64 = vld [vmem:[%s1 + $0x48] sm:$0xff]
  %v65 = vld [vmem:[%s1 + $0x50] sm:$0xff]
  %v66 = vld [vmem:[%s1 + $0x58] sm:$0xff]
  %v67 = vld [vmem:[%s1 + $0x60] sm:$0xff]
  %v68 = vld [vmem:[%s1 + $0x68] sm:$0xff]
  %v69 = vld [vmem:[%s1 + $0x70] sm:$0xff]
  %v70 = vld [vmem:[%s1 + $0x78] sm:$0xff]
  %v71 = vld [vmem:[%s1 + $0x80] sm:$0xff]
  %v72 = vld [vmem:[%s1 + $0x88] sm:$0xff]
  %v73 = vld [vmem:[%s1 + $0x90] sm:$0xff]
  %v74 = vld [vmem:[%s1 + $0x98] sm:$0xff]
  %v75 = vld [vmem:[%s1 + $0xa0] sm:$0xff]
  %v76 = vld [vmem:[%s1 + $0xa8] sm:$0xff]
  %v77 = vld [vmem:[%s1 + $0xb0] sm:$0xff]
  %v78 = vld [vmem:[%s1 + $0xb8] sm:$0xff]
  %v79 = vld [vmem:[%s1 + $0xc0] sm:$0xff]
  %v80 = vld [vmem:[%s1 + $0xc8] sm:$0xff]
  %v81 = vld [vmem:[%s1 + $0xd0] sm:$0xff]
  %v82 = vld [vmem:[%s1 + $0xd8] sm:$0xff]
  %v83 = vld [vmem:[%s1 + $0xe0] sm:$0xff]
  %v84 = vld [vmem:[%s1 + $0xe8] sm:$0xff]
  %v85 = vld [vmem:[%s1 + $0xf0] sm:$0xff]
  %v86 = vld [vmem:[%s1 + $0xf8] sm:$0xff]
  %v87 = vld [vmem:[%s1 + $0x100] sm:$0xff]
  %v88 = vld [vmem:[%s1 + $0x108] sm:$0xff]
  %v89 = vld [vmem:[%s1 + $0x110] sm:$0xff]
  %v90 = vld [vmem:[%s1 + $0x118] sm:$0xff]
  %v91 = vld [vmem:[%s1 + $0x120] sm:$0xff]
  %v92 = vld [vmem:[%s1 + $0x128] sm:$0xff]
  %v93 = vld [vmem:[%s1 + $0x130] sm:$0xff]
  %v94 = vld [vmem:[%s1 + $0x138] sm:$0xff]
  %v95 = vld [vmem:[%s1 + $0x140] sm:$0xff]
  %v96 = vld [vmem:[%s1 + $0x148] sm:$0xff]
  %v97 = vld [vmem:[%s1 + $0x150] sm:$0xff]
  %v98 = vld [vmem:[%s1 + $0x158] sm:$0xff]
  %v99 = vld [vmem:[%s1 + $0x160] sm:$0xff]
  %v100 = vld [vmem:[%s1 + $0x168] sm:$0xff]
  %v101 = vld [vmem:[%s1 + $0x170] sm:$0xff]
  %v102 = vld [vmem:[%s1 + $0x178] sm:$0xff]
  %v103 = vld [vmem:[%s1 + $0x180] sm:$0xff]
  %v104 = vld [vmem:[%s1 + $0x188] sm:$0xff]
  %v105 = vld [vmem:[%s1 + $0x190] sm:$0xff]
  %v106 = vld [vmem:[%s1 + $0x198] sm:$0xff]
  %v107 = vld [vmem:[%s1 + $0x1a0] sm:$0xff]
  %v108 = vld [vmem:[%s1 + $0x1a8] sm:$0xff]
  %v109 = vld [vmem:[%s1 + $0x1b0] sm:$0xff]
  %v110 = vld [vmem:[%s1 + $0x1b8] sm:$0xff]
  %v111 = vld [vmem:[%s1 + $0x1c0] sm:$0xff]
  %v112 = vld [vmem:[%s1 + $0x1c8] sm:$0xff]
  %v113 = vld [vmem:[%s1 + $0x1d0] sm:$0xff]
  %v114 = vld [vmem:[%s1 + $0x1d8] sm:$0xff]
  %v115 = vld [vmem:[%s1 + $0x1e0] sm:$0xff]
  %v116 = vld [vmem:[%s1 + $0x1e8] sm:$0xff]
  %v117 = vld [vmem:[%s1 + $0x1f0] sm:$0xff]
  %v118 = vld [vmem:[%s1 + $0x1f8] sm:$0xff]
  %v119 = vld [vmem:[%s2] sm:$0xf]
  %v120 = vld [vmem:[%s2 + $0x4] sm:$0xf]
  %v121 = vld [vmem:[%s2 + $0x8] sm:$0xf]
  %v122 = vld [vmem:[%s2 + $0xc] sm:$0xf]
  %v123 = vld [vmem:[%s2 + $0x10] sm:$0xf]
  %v124 = vld [vmem:[%s2 + $0x14] sm:$0xf]
  %v125 = vld [vmem:[%s2 + $0x18] sm:$0xf]
  %v126 = vld [vmem:[%s2 + $0x1c] sm:$0xf]
  %v127 = vld [vmem:[%s2 + $0x20] sm:$0xf]
  %v128 = vld [vmem:[%s2 + $0x24] sm:$0xf]
  %v129 = vld [vmem:[%s2 + $0x28] sm:$0xf]
  %v130 = vld [vmem:[%s2 + $0x2c] sm:$0xf]
  %v131 = vld [vmem:[%s2 + $0x30] sm:$0xf]
  %v132 = vld [vmem:[%s2 + $0x34] sm:$0xf]
  %v133 = vld [vmem:[%s2 + $0x38] sm:$0xf]
  %v134 = vld [vmem:[%s2 + $0x3c] sm:$0xf]
  %v135 = vld [vmem:[%s2 + $0x40] sm:$0xf]
  %v136 = vld [vmem:[%s2 + $0x44] sm:$0xf]
  %v137 = vld [vmem:[%s2 + $0x48] sm:$0xf]
  %v138 = vld [vmem:[%s2 + $0x4c] sm:$0xf]
  %v139 = vld [vmem:[%s2 + $0x50] sm:$0xf]
  %v140 = vld [vmem:[%s2 + $0x54] sm:$0xf]
  %v141 = vld [vmem:[%s2 + $0x58] sm:$0xf]
  %v142 = vld [vmem:[%s2 + $0x5c] sm:$0xf]
  %v143 = vld [vmem:[%s2 + $0x60] sm:$0xf]
  %v144 = vld [vmem:[%s2 + $0x64] sm:$0xf]
  %v145 = vld [vmem:[%s2 + $0x68] sm:$0xf]
  %v146 = vld [vmem:[%s2 + $0x6c] sm:$0xf]
  %v147 = vld [vmem:[%s2 + $0x70] sm:$0xf]
  %v148 = vld [vmem:[%s2 + $0x74] sm:$0xf]
  %v149 = vld [vmem:[%s2 + $0x78] sm:$0xf]
  %v150 = vld [vmem:[%s2 + $0x7c] sm:$0xf]
  %v151 = vld [vmem:[%s2 + $0x80] sm:$0xf]
  %v152 = vld [vmem:[%s2 + $0x84] sm:$0xf]
  %v153 = vld [vmem:[%s2 + $0x88] sm:$0xf]
  %v154 = vld [vmem:[%s2 + $0x8c] sm:$0xf]
  %v155 = vld [vmem:[%s2 + $0x90] sm:$0xf]
  %v156 = vld [vmem:[%s2 + $0x94] sm:$0xf]
  %v157 = vld [vmem:[%s2 + $0x98] sm:$0xf]
  %v158 = vld [vmem:[%s2 + $0x9c] sm:$0xf]
  %v159 = vld [vmem:[%s2 + $0xa0] sm:$0xf]
  %v160 = vld [vmem:[%s2 + $0xa4] sm:$0xf]
  %v161 = vld [vmem:[%s2 + $0xa8] sm:$0xf]
  %v162 = vld [vmem:[%s2 + $0xac] sm:$0xf]
  %v163 = vld [vmem:[%s2 + $0xb0] sm:$0xf]
  %v164 = vld [vmem:[%s2 + $0xb4] sm:$0xf]
  %v165 = vld [vmem:[%s2 + $0xb8] sm:$0xf]
  %v166 = vld [vmem:[%s2 + $0xbc] sm:$0xf]
  %v167 = vld [vmem:[%s2 + $0xc0] sm:$0xf]
  %v168 = vld [vmem:[%s2 + $0xc4] sm:$0xf]
  %v169 = vld [vmem:[%s2 + $0xc8] sm:$0xf]
  %v170 = vld [vmem:[%s2 + $0xcc] sm:$0xf]
  %v171 = vld [vmem:[%s2 + $0xd0] sm:$0xf]
  %v172 = vld [vmem:[%s2 + $0xd4] sm:$0xf]
  %v173 = vld [vmem:[%s2 + $0xd8] sm:$0xf]
  %v174 = vld [vmem:[%s2 + $0xdc] sm:$0xf]
  %v175 = vld [vmem:[%s2 + $0xe0] sm:$0xf]
  %v176 = vld [vmem:[%s2 + $0xe4] sm:$0xf]
  %v177 = vld [vmem:[%s2 + $0xe8] sm:$0xf]
  %v178 = vld [vmem:[%s2 + $0xec] sm:$0xf]
  %v179 = vld [vmem:[%s2 + $0xf0] sm:$0xf]
  %v180 = vld [vmem:[%s2 + $0xf4] sm:$0xf]
  %v181 = vld [vmem:[%s2 + $0xf8] sm:$0xf]
  %v182 = vld [vmem:[%s2 + $0xfc] sm:$0xf]
  %v183 = vld [vmem:[%s2 + $0x100] sm:$0xf]
  %v184 = vld [vmem:[%s2 + $0x104] sm:$0xf]
  %v185 = vld [vmem:[%s2 + $0x108] sm:$0xf]
  %v186 = vld [vmem:[%s2 + $0x10c] sm:$0xf]
  %v187 = vld [vmem:[%s2 + $0x110] sm:$0xf]
  %v188 = vld [vmem:[%s2 + $0x114] sm:$0xf]
  %v189 = vld [vmem:[%s2 + $0x118] sm:$0xf]
  %v190 = vld [vmem:[%s2 + $0x11c] sm:$0xf]
  %v191 = vld [vmem:[%s2 + $0x120] sm:$0xf]
  %v192 = vld [vmem:[%s2 + $0x124] sm:$0xf]
  %v193 = vld [vmem:[%s2 + $0x128] sm:$0xf]
  %v194 = vld [vmem:[%s2 + $0x12c] sm:$0xf]
  %v195 = vld [vmem:[%s2 + $0x130] sm:$0xf]
  %v196 = vld [vmem:[%s2 + $0x134] sm:$0xf]
  %v197 = vld [vmem:[%s2 + $0x138] sm:$0xf]
  %v198 = vld [vmem:[%s2 + $0x13c] sm:$0xf]
  %v199 = vld [vmem:[%s2 + $0x140] sm:$0xf]
  %v200 = vld [vmem:[%s2 + $0x144] sm:$0xf]
  %v201 = vld [vmem:[%s2 + $0x148] sm:$0xf]
  %v202 = vld [vmem:[%s2 + $0x14c] sm:$0xf]
  %v203 = vld [vmem:[%s2 + $0x150] sm:$0xf]
  %v204 = vld [vmem:[%s2 + $0x154] sm:$0xf]
  %v205 = vld [vmem:[%s2 + $0x158] sm:$0xf]
  %v206 = vld [vmem:[%s2 + $0x15c] sm:$0xf]
  %v207 = vld [vmem:[%s2 + $0x160] sm:$0xf]
  %v208 = vld [vmem:[%s2 + $0x164] sm:$0xf]
  %v209 = vld [vmem:[%s2 + $0x168] sm:$0xf]
  %v210 = vld [vmem:[%s2 + $0x16c] sm:$0xf]
  %v211 = vld [vmem:[%s2 + $0x170] sm:$0xf]
  %v212 = vld [vmem:[%s2 + $0x174] sm:$0xf]
  %v213 = vld [vmem:[%s2 + $0x178] sm:$0xf]
  %v214 = vld [vmem:[%s2 + $0x17c] sm:$0xf]
  %v215 = vld [vmem:[%s2 + $0x180] sm:$0xf]
  %v216 = vld [vmem:[%s2 + $0x184] sm:$0xf]
  %v217 = vld [vmem:[%s2 + $0x188] sm:$0xf]
  %v218 = vld [vmem:[%s2 + $0x18c] sm:$0xf]
  %v219 = vld [vmem:[%s2 + $0x190] sm:$0xf]
  %v220 = vld [vmem:[%s2 + $0x194] sm:$0xf]
  %v221 = vld [vmem:[%s2 + $0x198] sm:$0xf]
  %v222 = vld [vmem:[%s2 + $0x19c] sm:$0xf]
  %v223 = vld [vmem:[%s2 + $0x1a0] sm:$0xf]
  %v224 = vld [vmem:[%s2 + $0x1a4] sm:$0xf]
  %v225 = vld [vmem:[%s2 + $0x1a8] sm:$0xf]
  %v226 = vld [vmem:[%s2 + $0x1ac] sm:$0xf]
  %v227 = vld [vmem:[%s2 + $0x1b0] sm:$0xf]
  %v228 = vld [vmem:[%s2 + $0x1b4] sm:$0xf]
  %v229 = vld [vmem:[%s2 + $0x1b8] sm:$0xf]
  %v230 = vld [vmem:[%s2 + $0x1bc] sm:$0xf]
  %v231 = vld [vmem:[%s2 + $0x1c0] sm:$0xf]
  %v232 = vld [vmem:[%s2 + $0x1c4] sm:$0xf]
  %v233 = vld [vmem:[%s2 + $0x1c8] sm:$0xf]
  %v234 = vld [vmem:[%s2 + $0x1cc] sm:$0xf]
  %v235 = vld [vmem:[%s2 + $0x1d0] sm:$0xf]
  %v236 = vld [vmem:[%s2 + $0x1d4] sm:$0xf]
  %v237 = vld [vmem:[%s2 + $0x1d8] sm:$0xf]
  %v238 = vld [vmem:[%s2 + $0x1dc] sm:$0xf]
  %v239 = vld [vmem:[%s2 + $0x1e0] sm:$0xf]
  %v240 = vld [vmem:[%s2 + $0x1e4] sm:$0xf]
  %v241 = vld [vmem:[%s2 + $0x1e8] sm:$0xf]
  %v242 = vld [vmem:[%s2 + $0x1ec] sm:$0xf]
  %v243 = vld [vmem:[%s2 + $0x1f0] sm:$0xf]
  %v244 = vld [vmem:[%s2 + $0x1f4] sm:$0xf]
  %v245 = vld [vmem:[%s2 + $0x1f8] sm:$0xf]
  %v246 = vld [vmem:[%s2 + $0x1fc] sm:$0xf]
  %v311 = vunpack.c.l.b16 %v55
  %v312 = vunpack.c.h.b16 %v55
  %v313 = vunpack.c.l.b16 %v56
  %v314 = vunpack.c.h.b16 %v56
  %v315 = vunpack.c.l.b16 %v57
  %v316 = vunpack.c.h.b16 %v57
  %v317 = vunpack.c.l.b16 %v58
  %v318 = vunpack.c.h.b16 %v58
  %v319 = vunpack.c.l.b16 %v59
  %v320 = vunpack.c.h.b16 %v59
  %v321 = vunpack.c.l.b16 %v60
  %v322 = vunpack.c.h.b16 %v60
  %v323 = vunpack.c.l.b16 %v61
  %v324 = vunpack.c.h.b16 %v61
  %v325 = vunpack.c.l.b16 %v62
  %v326 = vunpack.c.h.b16 %v62
  %v327 = vunpack.c.l.b16 %v63
  %v328 = vunpack.c.h.b16 %v63
  %v329 = vunpack.c.l.b16 %v64
  %v330 = vunpack.c.h.b16 %v64
  %v331 = vunpack.c.l.b16 %v65
  %v332 = vunpack.c.h.b16 %v65
  %v333 = vunpack.c.l.b16 %v66
  %v334 = vunpack.c.h.b16 %v66
  %v335 = vunpack.c.l.b16 %v67
  %v336 = vunpack.c.h.b16 %v67
  %v337 = vunpack.c.l.b16 %v68
  %v338 = vunpack.c.h.b16 %v68
  %v339 = vunpack.c.l.b16 %v69
  %v340 = vunpack.c.h.b16 %v69
  %v341 = vunpack.c.l.b16 %v70
  %v342 = vunpack.c.h.b16 %v70
  %v343 = vunpack.c.l.b16 %v71
  %v344 = vunpack.c.h.b16 %v71
  %v345 = vunpack.c.l.b16 %v72
  %v346 = vunpack.c.h.b16 %v72
  %v347 = vunpack.c.l.b16 %v73
  %v348 = vunpack.c.h.b16 %v73
  %v349 = vunpack.c.l.b16 %v74
  %v350 = vunpack.c.h.b16 %v74
  %v351 = vunpack.c.l.b16 %v75
  %v352 = vunpack.c.h.b16 %v75
  %v353 = vunpack.c.l.b16 %v76
  %v354 = vunpack.c.h.b16 %v76
  %v355 = vunpack.c.l.b16 %v77
  %v356 = vunpack.c.h.b16 %v77
  %v357 = vunpack.c.l.b16 %v78
  %v358 = vunpack.c.h.b16 %v78
  %v359 = vunpack.c.l.b16 %v79
  %v360 = vunpack.c.h.b16 %v79
  %v361 = vunpack.c.l.b16 %v80
  %v362 = vunpack.c.h.b16 %v80
  %v363 = vunpack.c.l.b16 %v81
  %v364 = vunpack.c.h.b16 %v81
  %v365 = vunpack.c.l.b16 %v82
  %v366 = vunpack.c.h.b16 %v82
  %v367 = vunpack.c.l.b16 %v83
  %v368 = vunpack.c.h.b16 %v83
  %v369 = vunpack.c.l.b16 %v84
  %v370 = vunpack.c.h.b16 %v84
  %v371 = vunpack.c.l.b16 %v85
  %v372 = vunpack.c.h.b16 %v85
  %v373 = vunpack.c.l.b16 %v86
  %v374 = vunpack.c.h.b16 %v86
  %v375 = vunpack.c.l.b16 %v87
  %v376 = vunpack.c.h.b16 %v87
  %v377 = vunpack.c.l.b16 %v88
  %v378 = vunpack.c.h.b16 %v88
  %v379 = vunpack.c.l.b16 %v89
  %v380 = vunpack.c.h.b16 %v89
  %v381 = vunpack.c.l.b16 %v90
  %v382 = vunpack.c.h.b16 %v90
  %v383 = vunpack.c.l.b16 %v91
  %v384 = vunpack.c.h.b16 %v91
  %v385 = vunpack.c.l.b16 %v92
  %v386 = vunpack.c.h.b16 %v92
  %v387 = vunpack.c.l.b16 %v93
  %v388 = vunpack.c.h.b16 %v93
  %v389 = vunpack.c.l.b16 %v94
  %v390 = vunpack.c.h.b16 %v94
  %v391 = vunpack.c.l.b16 %v95
  %v392 = vunpack.c.h.b16 %v95
  %v393 = vunpack.c.l.b16 %v96
  %v394 = vunpack.c.h.b16 %v96
  %v395 = vunpack.c.l.b16 %v97
  %v396 = vunpack.c.h.b16 %v97
  %v397 = vunpack.c.l.b16 %v98
  %v398 = vunpack.c.h.b16 %v98
  %v399 = vunpack.c.l.b16 %v99
  %v400 = vunpack.c.h.b16 %v99
  %v401 = vunpack.c.l.b16 %v100
  %v402 = vunpack.c.h.b16 %v100
  %v403 = vunpack.c.l.b16 %v101
  %v404 = vunpack.c.h.b16 %v101
  %v405 = vunpack.c.l.b16 %v102
  %v406 = vunpack.c.h.b16 %v102
  %v407 = vunpack.c.l.b16 %v103
  %v408 = vunpack.c.h.b16 %v103
  %v409 = vunpack.c.l.b16 %v104
  %v410 = vunpack.c.h.b16 %v104
  %v411 = vunpack.c.l.b16 %v105
  %v412 = vunpack.c.h.b16 %v105
  %v413 = vunpack.c.l.b16 %v106
  %v414 = vunpack.c.h.b16 %v106
  %v415 = vunpack.c.l.b16 %v107
  %v416 = vunpack.c.h.b16 %v107
  %v417 = vunpack.c.l.b16 %v108
  %v418 = vunpack.c.h.b16 %v108
  %v419 = vunpack.c.l.b16 %v109
  %v420 = vunpack.c.h.b16 %v109
  %v421 = vunpack.c.l.b16 %v110
  %v422 = vunpack.c.h.b16 %v110
  %v423 = vunpack.c.l.b16 %v111
  %v424 = vunpack.c.h.b16 %v111
  %v425 = vunpack.c.l.b16 %v112
  %v426 = vunpack.c.h.b16 %v112
  %v427 = vunpack.c.l.b16 %v113
  %v428 = vunpack.c.h.b16 %v113
  %v429 = vunpack.c.l.b16 %v114
  %v430 = vunpack.c.h.b16 %v114
  %v431 = vunpack.c.l.b16 %v115
  %v432 = vunpack.c.h.b16 %v115
  %v433 = vunpack.c.l.b16 %v116
  %v434 = vunpack.c.h.b16 %v116
  %v435 = vunpack.c.l.b16 %v117
  %v436 = vunpack.c.h.b16 %v117
  %v437 = vunpack.c.l.b16 %v118
  %v438 = vunpack.c.h.b16 %v118
  %v439 = vpack.c.b16 %v319, %v311
  %v440 = vpack.c.b16 %v320, %v312
  %v441 = vpack.c.b16 %v321, %v313
  %v442 = vpack.c.b16 %v322, %v314
  %v443 = vpack.c.b16 %v323, %v315
  %v444 = vpack.c.b16 %v324, %v316
  %v445 = vpack.c.b16 %v325, %v317
  %v446 = vpack.c.b16 %v326, %v318
  %v447 = vpack.c.b16 %v335, %v327
  %v448 = vpack.c.b16 %v336, %v328
  %v449 = vpack.c.b16 %v337, %v329
  %v450 = vpack.c.b16 %v338, %v330
  %v451 = vpack.c.b16 %v339, %v331
  %v452 = vpack.c.b16 %v340, %v332
  %v453 = vpack.c.b16 %v341, %v333
  %v454 = vpack.c.b16 %v342, %v334
  %v455 = vpack.c.b16 %v351, %v343
  %v456 = vpack.c.b16 %v352, %v344
  %v457 = vpack.c.b16 %v353, %v345
  %v458 = vpack.c.b16 %v354, %v346
  %v459 = vpack.c.b16 %v355, %v347
  %v460 = vpack.c.b16 %v356, %v348
  %v461 = vpack.c.b16 %v357, %v349
  %v462 = vpack.c.b16 %v358, %v350
  %v463 = vpack.c.b16 %v367, %v359
  %v464 = vpack.c.b16 %v368, %v360
  %v465 = vpack.c.b16 %v369, %v361
  %v466 = vpack.c.b16 %v370, %v362
  %v467 = vpack.c.b16 %v371, %v363
  %v468 = vpack.c.b16 %v372, %v364
  %v469 = vpack.c.b16 %v373, %v365
  %v470 = vpack.c.b16 %v374, %v366
  %v471 = vpack.c.b16 %v383, %v375
  %v472 = vpack.c.b16 %v384, %v376
  %v473 = vpack.c.b16 %v385, %v377
  %v474 = vpack.c.b16 %v386, %v378
  %v475 = vpack.c.b16 %v387, %v379
  %v476 = vpack.c.b16 %v388, %v380
  %v477 = vpack.c.b16 %v389, %v381
  %v478 = vpack.c.b16 %v390, %v382
  %v479 = vpack.c.b16 %v399, %v391
  %v480 = vpack.c.b16 %v400, %v392
  %v481 = vpack.c.b16 %v401, %v393
  %v482 = vpack.c.b16 %v402, %v394
  %v483 = vpack.c.b16 %v403, %v395
  %v484 = vpack.c.b16 %v404, %v396
  %v485 = vpack.c.b16 %v405, %v397
  %v486 = vpack.c.b16 %v406, %v398
  %v487 = vpack.c.b16 %v415, %v407
  %v488 = vpack.c.b16 %v416, %v408
  %v489 = vpack.c.b16 %v417, %v409
  %v490 = vpack.c.b16 %v418, %v410
  %v491 = vpack.c.b16 %v419, %v411
  %v492 = vpack.c.b16 %v420, %v412
  %v493 = vpack.c.b16 %v421, %v413
  %v494 = vpack.c.b16 %v422, %v414
  %v495 = vpack.c.b16 %v431, %v423
  %v496 = vpack.c.b16 %v432, %v424
  %v497 = vpack.c.b16 %v433, %v425
  %v498 = vpack.c.b16 %v434, %v426
  %v499 = vpack.c.b16 %v435, %v427
  %v500 = vpack.c.b16 %v436, %v428
  %v501 = vpack.c.b16 %v437, %v429
  %v502 = vpack.c.b16 %v438, %v430
  %v695 = vunpack.c.l.b16 %v119
  %v696 = vunpack.c.l.b16 %v120
  %v697 = vunpack.c.l.b16 %v121
  %v698 = vunpack.c.l.b16 %v122
  %v699 = vunpack.c.l.b16 %v123
  %v700 = vunpack.c.l.b16 %v124
  %v701 = vunpack.c.l.b16 %v125
  %v702 = vunpack.c.l.b16 %v126
  %v703 = vunpack.c.l.b16 %v127
  %v704 = vunpack.c.l.b16 %v128
  %v705 = vunpack.c.l.b16 %v129
  %v706 = vunpack.c.l.b16 %v130
  %v707 = vunpack.c.l.b16 %v131
  %v708 = vunpack.c.l.b16 %v132
  %v709 = vunpack.c.l.b16 %v133
  %v710 = vunpack.c.l.b16 %v134
  %v711 = vunpack.c.l.b16 %v135
  %v712 = vunpack.c.l.b16 %v136
  %v713 = vunpack.c.l.b16 %v137
  %v714 = vunpack.c.l.b16 %v138
  %v715 = vunpack.c.l.b16 %v139
  %v716 = vunpack.c.l.b16 %v140
  %v717 = vunpack.c.l.b16 %v141
  %v718 = vunpack.c.l.b16 %v142
  %v719 = vunpack.c.l.b16 %v143
  %v720 = vunpack.c.l.b16 %v144
  %v721 = vunpack.c.l.b16 %v145
  %v722 = vunpack.c.l.b16 %v146
  %v723 = vunpack.c.l.b16 %v147
  %v724 = vunpack.c.l.b16 %v148
  %v725 = vunpack.c.l.b16 %v149
  %v726 = vunpack.c.l.b16 %v150
  %v727 = vunpack.c.l.b16 %v151
  %v728 = vunpack.c.l.b16 %v152
  %v729 = vunpack.c.l.b16 %v153
  %v730 = vunpack.c.l.b16 %v154
  %v731 = vunpack.c.l.b16 %v155
  %v732 = vunpack.c.l.b16 %v156
  %v733 = vunpack.c.l.b16 %v157
  %v734 = vunpack.c.l.b16 %v158
  %v735 = vunpack.c.l.b16 %v159
  %v736 = vunpack.c.l.b16 %v160
  %v737 = vunpack.c.l.b16 %v161
  %v738 = vunpack.c.l.b16 %v162
  %v739 = vunpack.c.l.b16 %v163
  %v740 = vunpack.c.l.b16 %v164
  %v741 = vunpack.c.l.b16 %v165
  %v742 = vunpack.c.l.b16 %v166
  %v743 = vunpack.c.l.b16 %v167
  %v744 = vunpack.c.l.b16 %v168
  %v745 = vunpack.c.l.b16 %v169
  %v746 = vunpack.c.l.b16 %v170
  %v747 = vunpack.c.l.b16 %v171
  %v748 = vunpack.c.l.b16 %v172
  %v749 = vunpack.c.l.b16 %v173
  %v750 = vunpack.c.l.b16 %v174
  %v751 = vunpack.c.l.b16 %v175
  %v752 = vunpack.c.l.b16 %v176
  %v753 = vunpack.c.l.b16 %v177
  %v754 = vunpack.c.l.b16 %v178
  %v755 = vunpack.c.l.b16 %v179
  %v756 = vunpack.c.l.b16 %v180
  %v757 = vunpack.c.l.b16 %v181
  %v758 = vunpack.c.l.b16 %v182
  %v759 = vunpack.c.l.b16 %v183
  %v760 = vunpack.c.l.b16 %v184
  %v761 = vunpack.c.l.b16 %v185
  %v762 = vunpack.c.l.b16 %v186
  %v763 = vunpack.c.l.b16 %v187
  %v764 = vunpack.c.l.b16 %v188
  %v765 = vunpack.c.l.b16 %v189
  %v766 = vunpack.c.l.b16 %v190
  %v767 = vunpack.c.l.b16 %v191
  %v768 = vunpack.c.l.b16 %v192
  %v769 = vunpack.c.l.b16 %v193
  %v770 = vunpack.c.l.b16 %v194
  %v771 = vunpack.c.l.b16 %v195
  %v772 = vunpack.c.l.b16 %v196
  %v773 = vunpack.c.l.b16 %v197
  %v774 = vunpack.c.l.b16 %v198
  %v775 = vunpack.c.l.b16 %v199
  %v776 = vunpack.c.l.b16 %v200
  %v777 = vunpack.c.l.b16 %v201
  %v778 = vunpack.c.l.b16 %v202
  %v779 = vunpack.c.l.b16 %v203
  %v780 = vunpack.c.l.b16 %v204
  %v781 = vunpack.c.l.b16 %v205
  %v782 = vunpack.c.l.b16 %v206
  %v783 = vunpack.c.l.b16 %v207
  %v784 = vunpack.c.l.b16 %v208
  %v785 = vunpack.c.l.b16 %v209
  %v786 = vunpack.c.l.b16 %v210
  %v787 = vunpack.c.l.b16 %v211
  %v788 = vunpack.c.l.b16 %v212
  %v789 = vunpack.c.l.b16 %v213
  %v790 = vunpack.c.l.b16 %v214
  %v791 = vunpack.c.l.b16 %v215
  %v792 = vunpack.c.l.b16 %v216
  %v793 = vunpack.c.l.b16 %v217
  %v794 = vunpack.c.l.b16 %v218
  %v795 = vunpack.c.l.b16 %v219
  %v796 = vunpack.c.l.b16 %v220
  %v797 = vunpack.c.l.b16 %v221
  %v798 = vunpack.c.l.b16 %v222
  %v799 = vunpack.c.l.b16 %v223
  %v800 = vunpack.c.l.b16 %v224
  %v801 = vunpack.c.l.b16 %v225
  %v802 = vunpack.c.l.b16 %v226
  %v803 = vunpack.c.l.b16 %v227
  %v804 = vunpack.c.l.b16 %v228
  %v805 = vunpack.c.l.b16 %v229
  %v806 = vunpack.c.l.b16 %v230
  %v807 = vunpack.c.l.b16 %v231
  %v808 = vunpack.c.l.b16 %v232
  %v809 = vunpack.c.l.b16 %v233
  %v810 = vunpack.c.l.b16 %v234
  %v811 = vunpack.c.l.b16 %v235
  %v812 = vunpack.c.l.b16 %v236
  %v813 = vunpack.c.l.b16 %v237
  %v814 = vunpack.c.l.b16 %v238
  %v815 = vunpack.c.l.b16 %v239
  %v816 = vunpack.c.l.b16 %v240
  %v817 = vunpack.c.l.b16 %v241
  %v818 = vunpack.c.l.b16 %v242
  %v819 = vunpack.c.l.b16 %v243
  %v820 = vunpack.c.l.b16 %v244
  %v821 = vunpack.c.l.b16 %v245
  %v822 = vunpack.c.l.b16 %v246
  %v823 = vpack.c.b16 %v696, %v695
  %v824 = vpack.c.b16 %v698, %v697
  %v825 = vpack.c.b16 %v700, %v699
  %v826 = vpack.c.b16 %v702, %v701
  %v827 = vpack.c.b16 %v704, %v703
  %v828 = vpack.c.b16 %v706, %v705
  %v829 = vpack.c.b16 %v708, %v707
  %v830 = vpack.c.b16 %v710, %v709
  %v831 = vpack.c.b16 %v712, %v711
  %v832 = vpack.c.b16 %v714, %v713
  %v833 = vpack.c.b16 %v716, %v715
  %v834 = vpack.c.b16 %v718, %v717
  %v835 = vpack.c.b16 %v720, %v719
  %v836 = vpack.c.b16 %v722, %v721
  %v837 = vpack.c.b16 %v724, %v723
  %v838 = vpack.c.b16 %v726, %v725
  %v839 = vpack.c.b16 %v728, %v727
  %v840 = vpack.c.b16 %v730, %v729
  %v841 = vpack.c.b16 %v732, %v731
  %v842 = vpack.c.b16 %v734, %v733
  %v843 = vpack.c.b16 %v736, %v735
  %v844 = vpack.c.b16 %v738, %v737
  %v845 = vpack.c.b16 %v740, %v739
  %v846 = vpack.c.b16 %v742, %v741
  %v847 = vpack.c.b16 %v744, %v743
  %v848 = vpack.c.b16 %v746, %v745
  %v849 = vpack.c.b16 %v748, %v747
  %v850 = vpack.c.b16 %v750, %v749
  %v851 = vpack.c.b16 %v752, %v751
  %v852 = vpack.c.b16 %v754, %v753
  %v853 = vpack.c.b16 %v756, %v755
  %v854 = vpack.c.b16 %v758, %v757
  %v855 = vpack.c.b16 %v760, %v759
  %v856 = vpack.c.b16 %v762, %v761
  %v857 = vpack.c.b16 %v764, %v763
  %v858 = vpack.c.b16 %v766, %v765
  %v859 = vpack.c.b16 %v768, %v767
  %v860 = vpack.c.b16 %v770, %v769
  %v861 = vpack.c.b16 %v772, %v771
  %v862 = vpack.c.b16 %v774, %v773
  %v863 = vpack.c.b16 %v776, %v775
  %v864 = vpack.c.b16 %v778, %v777
  %v865 = vpack.c.b16 %v780, %v779
  %v866 = vpack.c.b16 %v782, %v781
  %v867 = vpack.c.b16 %v784, %v783
  %v868 = vpack.c.b16 %v786, %v785
  %v869 = vpack.c.b16 %v788, %v787
  %v870 = vpack.c.b16 %v790, %v789
  %v871 = vpack.c.b16 %v792, %v791
  %v872 = vpack.c.b16 %v794, %v793
  %v873 = vpack.c.b16 %v796, %v795
  %v874 = vpack.c.b16 %v798, %v797
  %v875 = vpack.c.b16 %v800, %v799
  %v876 = vpack.c.b16 %v802, %v801
  %v877 = vpack.c.b16 %v804, %v803
  %v878 = vpack.c.b16 %v806, %v805
  %v879 = vpack.c.b16 %v808, %v807
  %v880 = vpack.c.b16 %v810, %v809
  %v881 = vpack.c.b16 %v812, %v811
  %v882 = vpack.c.b16 %v814, %v813
  %v883 = vpack.c.b16 %v816, %v815
  %v884 = vpack.c.b16 %v818, %v817
  %v885 = vpack.c.b16 %v820, %v819
  %v886 = vpack.c.b16 %v822, %v821
  %951 = vmatprep.subr.bf16.mxu0 0
  %952 = vmatpush1.bf16.msra.mxu0 %v830
  %953 = vmatprep.subr.bf16.mxu0 0
  %954 = vmatpush1.bf16.msra.mxu0 %v829
  %955 = vmatprep.subr.bf16.mxu0 0
  %956 = vmatpush1.bf16.msra.mxu0 %v828
  %957 = vmatprep.subr.bf16.mxu0 0
  %958 = vmatpush1.bf16.msra.mxu0 %v827
  %959 = vmatprep.subr.bf16.mxu0 0
  %960 = vmatpush1.bf16.msra.mxu0 %v826
  %961 = vmatprep.subr.bf16.mxu0 0
  %962 = vmatpush1.bf16.msra.mxu0 %v825
  %963 = vmatprep.subr.bf16.mxu0 0
  %964 = vmatpush1.bf16.msra.mxu0 %v824
  %965 = vmatprep.subr.bf16.mxu0 0
  %966 = vmatpush1.bf16.msra.mxu0 %v823
  %967 = vmatprep.subr.bf16.mxu0 0
  %968 = vmatpush2.bf16.msra.mxu0 %v838
  %969 = vmatprep.subr.bf16.mxu0 0
  %970 = vmatpush2.bf16.msra.mxu0 %v837
  %971 = vmatprep.subr.bf16.mxu0 0
  %972 = vmatpush2.bf16.msra.mxu0 %v836
  %973 = vmatprep.subr.bf16.mxu0 0
  %974 = vmatpush2.bf16.msra.mxu0 %v835
  %975 = vmatprep.subr.bf16.mxu0 0
  %976 = vmatpush2.bf16.msra.mxu0 %v834
  %977 = vmatprep.subr.bf16.mxu0 0
  %978 = vmatpush2.bf16.msra.mxu0 %v833
  %979 = vmatprep.subr.bf16.mxu0 0
  %980 = vmatpush2.bf16.msra.mxu0 %v832
  %981 = vmatprep.subr.bf16.mxu0 0
  %982 = vmatpush2.bf16.msra.mxu0 %v831
  %983 = vmatprep.mubr.bf16.mxu0 %v440
  %984 = vmatmul.mubr.bf16.gmra.mxu0 %v439
  %v985 = vpop.f32.mrf.mxu0
  %v986 = vadd.f32 0.0, %v985
  %v987 = vpop.f32.mrf.mxu0
  %v988 = vpop.f32.mrf.mxu0
  %v989 = vadd.f32 0.0, %v988
  %v990 = vpop.f32.mrf.mxu0
  %991 = vmatprep.mubr.bf16.mxu0 %v448
  %992 = vmatmul.mubr.bf16.gmra.mxu0 %v447
  %v993 = vpop.f32.mrf.mxu0
  %v994 = vadd.f32 0.0, %v993
  %v995 = vpop.f32.mrf.mxu0
  %v996 = vpop.f32.mrf.mxu0
  %v997 = vadd.f32 0.0, %v996
  %v998 = vpop.f32.mrf.mxu0
  %999 = vmatprep.mubr.bf16.mxu0 %v456
  %1000 = vmatmul.mubr.bf16.gmra.mxu0 %v455
  %v1001 = vpop.f32.mrf.mxu0
  %v1002 = vadd.f32 0.0, %v1001
  %v1003 = vpop.f32.mrf.mxu0
  %v1004 = vpop.f32.mrf.mxu0
  %v1005 = vadd.f32 0.0, %v1004
  %v1006 = vpop.f32.mrf.mxu0
  %1007 = vmatprep.mubr.bf16.mxu0 %v464
  %1008 = vmatmul.mubr.bf16.gmra.mxu0 %v463
  %v1009 = vpop.f32.mrf.mxu0
  %v1010 = vadd.f32 0.0, %v1009
  %v1011 = vpop.f32.mrf.mxu0
  %v1012 = vpop.f32.mrf.mxu0
  %v1013 = vadd.f32 0.0, %v1012
  %v1014 = vpop.f32.mrf.mxu0
  %1015 = vmatprep.mubr.bf16.mxu0 %v472
  %1016 = vmatmul.mubr.bf16.gmra.mxu0 %v471
  %v1017 = vpop.f32.mrf.mxu0
  %v1018 = vadd.f32 0.0, %v1017
  %v1019 = vpop.f32.mrf.mxu0
  %v1020 = vpop.f32.mrf.mxu0
  %v1021 = vadd.f32 0.0, %v1020
  %v1022 = vpop.f32.mrf.mxu0
  %1023 = vmatprep.mubr.bf16.mxu0 %v480
  %1024 = vmatmul.mubr.bf16.gmra.mxu0 %v479
  %v1025 = vpop.f32.mrf.mxu0
  %v1026 = vadd.f32 0.0, %v1025
  %v1027 = vpop.f32.mrf.mxu0
  %v1028 = vpop.f32.mrf.mxu0
  %v1029 = vadd.f32 0.0, %v1028
  %v1030 = vpop.f32.mrf.mxu0
  %1031 = vmatprep.mubr.bf16.mxu0 %v488
  %1032 = vmatmul.mubr.bf16.gmra.mxu0 %v487
  %v1033 = vpop.f32.mrf.mxu0
  %v1034 = vadd.f32 0.0, %v1033
  %v1035 = vpop.f32.mrf.mxu0
  %v1036 = vpop.f32.mrf.mxu0
  %v1037 = vadd.f32 0.0, %v1036
  %v1038 = vpop.f32.mrf.mxu0
  %1039 = vmatprep.mubr.bf16.mxu0 %v496
  %1040 = vmatmul.mubr.bf16.gmra.mxu0 %v495
  %v1041 = vpop.f32.mrf.mxu0
  %v1042 = vadd.f32 0.0, %v1041
  %v1043 = vpop.f32.mrf.mxu0
  %v1044 = vpop.f32.mrf.mxu0
  %v1045 = vadd.f32 0.0, %v1044
  %v1046 = vpop.f32.mrf.mxu0
  %1047 = vdwg.mxu0
  %1048 = vmatprep.subr.bf16.mxu0 0
  %1049 = vmatpush1.bf16.msra.mxu0 %v846
  %1050 = vmatprep.subr.bf16.mxu0 0
  %1051 = vmatpush1.bf16.msra.mxu0 %v845
  %1052 = vmatprep.subr.bf16.mxu0 0
  %1053 = vmatpush1.bf16.msra.mxu0 %v844
  %1054 = vmatprep.subr.bf16.mxu0 0
  %1055 = vmatpush1.bf16.msra.mxu0 %v843
  %1056 = vmatprep.subr.bf16.mxu0 0
  %1057 = vmatpush1.bf16.msra.mxu0 %v842
  %1058 = vmatprep.subr.bf16.mxu0 0
  %1059 = vmatpush1.bf16.msra.mxu0 %v841
  %1060 = vmatprep.subr.bf16.mxu0 0
  %1061 = vmatpush1.bf16.msra.mxu0 %v840
  %1062 = vmatprep.subr.bf16.mxu0 0
  %1063 = vmatpush1.bf16.msra.mxu0 %v839
  %1064 = vmatprep.subr.bf16.mxu0 0
  %1065 = vmatpush2.bf16.msra.mxu0 %v854
  %1066 = vmatprep.subr.bf16.mxu0 0
  %1067 = vmatpush2.bf16.msra.mxu0 %v853
  %1068 = vmatprep.subr.bf16.mxu0 0
  %1069 = vmatpush2.bf16.msra.mxu0 %v852
  %1070 = vmatprep.subr.bf16.mxu0 0
  %1071 = vmatpush2.bf16.msra.mxu0 %v851
  %1072 = vmatprep.subr.bf16.mxu0 0
  %1073 = vmatpush2.bf16.msra.mxu0 %v850
  %1074 = vmatprep.subr.bf16.mxu0 0
  %1075 = vmatpush2.bf16.msra.mxu0 %v849
  %1076 = vmatprep.subr.bf16.mxu0 0
  %1077 = vmatpush2.bf16.msra.mxu0 %v848
  %1078 = vmatprep.subr.bf16.mxu0 0
  %1079 = vmatpush2.bf16.msra.mxu0 %v847
  %1080 = vmatprep.mubr.bf16.mxu0 %v442
  %1081 = vmatmul.mubr.bf16.gmra.mxu0 %v441
  %v1082 = vpop.f32.mrf.mxu0
  %v1083 = vadd.f32 %v986, %v1082
  %v1084 = vpop.f32.mrf.mxu0
  %v1085 = vpop.f32.mrf.mxu0
  %v1086 = vadd.f32 %v989, %v1085
  %v1087 = vpop.f32.mrf.mxu0
  %1088 = vmatprep.mubr.bf16.mxu0 %v450
  %1089 = vmatmul.mubr.bf16.gmra.mxu0 %v449
  %v1090 = vpop.f32.mrf.mxu0
  %v1091 = vadd.f32 %v994, %v1090
  %v1092 = vpop.f32.mrf.mxu0
  %v1093 = vpop.f32.mrf.mxu0
  %v1094 = vadd.f32 %v997, %v1093
  %v1095 = vpop.f32.mrf.mxu0
  %1096 = vmatprep.mubr.bf16.mxu0 %v458
  %1097 = vmatmul.mubr.bf16.gmra.mxu0 %v457
  %v1098 = vpop.f32.mrf.mxu0
  %v1099 = vadd.f32 %v1002, %v1098
  %v1100 = vpop.f32.mrf.mxu0
  %v1101 = vpop.f32.mrf.mxu0
  %v1102 = vadd.f32 %v1005, %v1101
  %v1103 = vpop.f32.mrf.mxu0
  %1104 = vmatprep.mubr.bf16.mxu0 %v466
  %1105 = vmatmul.mubr.bf16.gmra.mxu0 %v465
  %v1106 = vpop.f32.mrf.mxu0
  %v1107 = vadd.f32 %v1010, %v1106
  %v1108 = vpop.f32.mrf.mxu0
  %v1109 = vpop.f32.mrf.mxu0
  %v1110 = vadd.f32 %v1013, %v1109
  %v1111 = vpop.f32.mrf.mxu0
  %1112 = vmatprep.mubr.bf16.mxu0 %v474
  %1113 = vmatmul.mubr.bf16.gmra.mxu0 %v473
  %v1114 = vpop.f32.mrf.mxu0
  %v1115 = vadd.f32 %v1018, %v1114
  %v1116 = vpop.f32.mrf.mxu0
  %v1117 = vpop.f32.mrf.mxu0
  %v1118 = vadd.f32 %v1021, %v1117
  %v1119 = vpop.f32.mrf.mxu0
  %1120 = vmatprep.mubr.bf16.mxu0 %v482
  %1121 = vmatmul.mubr.bf16.gmra.mxu0 %v481
  %v1122 = vpop.f32.mrf.mxu0
  %v1123 = vadd.f32 %v1026, %v1122
  %v1124 = vpop.f32.mrf.mxu0
  %v1125 = vpop.f32.mrf.mxu0
  %v1126 = vadd.f32 %v1029, %v1125
  %v1127 = vpop.f32.mrf.mxu0
  %1128 = vmatprep.mubr.bf16.mxu0 %v490
  %1129 = vmatmul.mubr.bf16.gmra.mxu0 %v489
  %v1130 = vpop.f32.mrf.mxu0
  %v1131 = vadd.f32 %v1034, %v1130
  %v1132 = vpop.f32.mrf.mxu0
  %v1133 = vpop.f32.mrf.mxu0
  %v1134 = vadd.f32 %v1037, %v1133
  %v1135 = vpop.f32.mrf.mxu0
  %1136 = vmatprep.mubr.bf16.mxu0 %v498
  %1137 = vmatmul.mubr.bf16.gmra.mxu0 %v497
  %v1138 = vpop.f32.mrf.mxu0
  %v1139 = vadd.f32 %v1042, %v1138
  %v1140 = vpop.f32.mrf.mxu0
  %v1141 = vpop.f32.mrf.mxu0
  %v1142 = vadd.f32 %v1045, %v1141
  %v1143 = vpop.f32.mrf.mxu0
  %1144 = vdwg.mxu0
  %1145 = vmatprep.subr.bf16.mxu0 0
  %1146 = vmatpush1.bf16.msra.mxu0 %v862
  %1147 = vmatprep.subr.bf16.mxu0 0
  %1148 = vmatpush1.bf16.msra.mxu0 %v861
  %1149 = vmatprep.subr.bf16.mxu0 0
  %1150 = vmatpush1.bf16.msra.mxu0 %v860
  %1151 = vmatprep.subr.bf16.mxu0 0
  %1152 = vmatpush1.bf16.msra.mxu0 %v859
  %1153 = vmatprep.subr.bf16.mxu0 0
  %1154 = vmatpush1.bf16.msra.mxu0 %v858
  %1155 = vmatprep.subr.bf16.mxu0 0
  %1156 = vmatpush1.bf16.msra.mxu0 %v857
  %1157 = vmatprep.subr.bf16.mxu0 0
  %1158 = vmatpush1.bf16.msra.mxu0 %v856
  %1159 = vmatprep.subr.bf16.mxu0 0
  %1160 = vmatpush1.bf16.msra.mxu0 %v855
  %1161 = vmatprep.subr.bf16.mxu0 0
  %1162 = vmatpush2.bf16.msra.mxu0 %v870
  %1163 = vmatprep.subr.bf16.mxu0 0
  %1164 = vmatpush2.bf16.msra.mxu0 %v869
  %1165 = vmatprep.subr.bf16.mxu0 0
  %1166 = vmatpush2.bf16.msra.mxu0 %v868
  %1167 = vmatprep.subr.bf16.mxu0 0
  %1168 = vmatpush2.bf16.msra.mxu0 %v867
  %1169 = vmatprep.subr.bf16.mxu0 0
  %1170 = vmatpush2.bf16.msra.mxu0 %v866
  %1171 = vmatprep.subr.bf16.mxu0 0
  %1172 = vmatpush2.bf16.msra.mxu0 %v865
  %1173 = vmatprep.subr.bf16.mxu0 0
  %1174 = vmatpush2.bf16.msra.mxu0 %v864
  %1175 = vmatprep.subr.bf16.mxu0 0
  %1176 = vmatpush2.bf16.msra.mxu0 %v863
  %1177 = vmatprep.mubr.bf16.mxu0 %v444
  %1178 = vmatmul.mubr.bf16.gmra.mxu0 %v443
  %v1179 = vpop.f32.mrf.mxu0
  %v1180 = vadd.f32 %v1083, %v1179
  %v1181 = vpop.f32.mrf.mxu0
  %v1182 = vpop.f32.mrf.mxu0
  %v1183 = vadd.f32 %v1086, %v1182
  %v1184 = vpop.f32.mrf.mxu0
  %1185 = vmatprep.mubr.bf16.mxu0 %v452
  %1186 = vmatmul.mubr.bf16.gmra.mxu0 %v451
  %v1187 = vpop.f32.mrf.mxu0
  %v1188 = vadd.f32 %v1091, %v1187
  %v1189 = vpop.f32.mrf.mxu0
  %v1190 = vpop.f32.mrf.mxu0
  %v1191 = vadd.f32 %v1094, %v1190
  %v1192 = vpop.f32.mrf.mxu0
  %1193 = vmatprep.mubr.bf16.mxu0 %v460
  %1194 = vmatmul.mubr.bf16.gmra.mxu0 %v459
  %v1195 = vpop.f32.mrf.mxu0
  %v1196 = vadd.f32 %v1099, %v1195
  %v1197 = vpop.f32.mrf.mxu0
  %v1198 = vpop.f32.mrf.mxu0
  %v1199 = vadd.f32 %v1102, %v1198
  %v1200 = vpop.f32.mrf.mxu0
  %1201 = vmatprep.mubr.bf16.mxu0 %v468
  %1202 = vmatmul.mubr.bf16.gmra.mxu0 %v467
  %v1203 = vpop.f32.mrf.mxu0
  %v1204 = vadd.f32 %v1107, %v1203
  %v1205 = vpop.f32.mrf.mxu0
  %v1206 = vpop.f32.mrf.mxu0
  %v1207 = vadd.f32 %v1110, %v1206
  %v1208 = vpop.f32.mrf.mxu0
  %1209 = vmatprep.mubr.bf16.mxu0 %v476
  %1210 = vmatmul.mubr.bf16.gmra.mxu0 %v475
  %v1211 = vpop.f32.mrf.mxu0
  %v1212 = vadd.f32 %v1115, %v1211
  %v1213 = vpop.f32.mrf.mxu0
  %v1214 = vpop.f32.mrf.mxu0
  %v1215 = vadd.f32 %v1118, %v1214
  %v1216 = vpop.f32.mrf.mxu0
  %1217 = vmatprep.mubr.bf16.mxu0 %v484
  %1218 = vmatmul.mubr.bf16.gmra.mxu0 %v483
  %v1219 = vpop.f32.mrf.mxu0
  %v1220 = vadd.f32 %v1123, %v1219
  %v1221 = vpop.f32.mrf.mxu0
  %v1222 = vpop.f32.mrf.mxu0
  %v1223 = vadd.f32 %v1126, %v1222
  %v1224 = vpop.f32.mrf.mxu0
  %1225 = vmatprep.mubr.bf16.mxu0 %v492
  %1226 = vmatmul.mubr.bf16.gmra.mxu0 %v491
  %v1227 = vpop.f32.mrf.mxu0
  %v1228 = vadd.f32 %v1131, %v1227
  %v1229 = vpop.f32.mrf.mxu0
  %v1230 = vpop.f32.mrf.mxu0
  %v1231 = vadd.f32 %v1134, %v1230
  %v1232 = vpop.f32.mrf.mxu0
  %1233 = vmatprep.mubr.bf16.mxu0 %v500
  %1234 = vmatmul.mubr.bf16.gmra.mxu0 %v499
  %v1235 = vpop.f32.mrf.mxu0
  %v1236 = vadd.f32 %v1139, %v1235
  %v1237 = vpop.f32.mrf.mxu0
  %v1238 = vpop.f32.mrf.mxu0
  %v1239 = vadd.f32 %v1142, %v1238
  %v1240 = vpop.f32.mrf.mxu0
  %1241 = vdwg.mxu0
  %1242 = vmatprep.subr.bf16.mxu0 0
  %1243 = vmatpush1.bf16.msra.mxu0 %v878
  %1244 = vmatprep.subr.bf16.mxu0 0
  %1245 = vmatpush1.bf16.msra.mxu0 %v877
  %1246 = vmatprep.subr.bf16.mxu0 0
  %1247 = vmatpush1.bf16.msra.mxu0 %v876
  %1248 = vmatprep.subr.bf16.mxu0 0
  %1249 = vmatpush1.bf16.msra.mxu0 %v875
  %1250 = vmatprep.subr.bf16.mxu0 0
  %1251 = vmatpush1.bf16.msra.mxu0 %v874
  %1252 = vmatprep.subr.bf16.mxu0 0
  %1253 = vmatpush1.bf16.msra.mxu0 %v873
  %1254 = vmatprep.subr.bf16.mxu0 0
  %1255 = vmatpush1.bf16.msra.mxu0 %v872
  %1256 = vmatprep.subr.bf16.mxu0 0
  %1257 = vmatpush1.bf16.msra.mxu0 %v871
  %1258 = vmatprep.subr.bf16.mxu0 0
  %1259 = vmatpush2.bf16.msra.mxu0 %v886
  %1260 = vmatprep.subr.bf16.mxu0 0
  %1261 = vmatpush2.bf16.msra.mxu0 %v885
  %1262 = vmatprep.subr.bf16.mxu0 0
  %1263 = vmatpush2.bf16.msra.mxu0 %v884
  %1264 = vmatprep.subr.bf16.mxu0 0
  %1265 = vmatpush2.bf16.msra.mxu0 %v883
  %1266 = vmatprep.subr.bf16.mxu0 0
  %1267 = vmatpush2.bf16.msra.mxu0 %v882
  %1268 = vmatprep.subr.bf16.mxu0 0
  %1269 = vmatpush2.bf16.msra.mxu0 %v881
  %1270 = vmatprep.subr.bf16.mxu0 0
  %1271 = vmatpush2.bf16.msra.mxu0 %v880
  %1272 = vmatprep.subr.bf16.mxu0 0
  %1273 = vmatpush2.bf16.msra.mxu0 %v879
  %1274 = vmatprep.mubr.bf16.mxu0 %v446
  %1275 = vmatmul.mubr.bf16.gmra.mxu0 %v445
  %v1276 = vpop.f32.mrf.mxu0
  %v1277 = vadd.f32 %v1180, %v1276
  %v1278 = vpop.f32.mrf.mxu0
  %v1279 = vpop.f32.mrf.mxu0
  %v1280 = vadd.f32 %v1183, %v1279
  %v1281 = vpop.f32.mrf.mxu0
  %1282 = vmatprep.mubr.bf16.mxu0 %v454
  %1283 = vmatmul.mubr.bf16.gmra.mxu0 %v453
  %v1284 = vpop.f32.mrf.mxu0
  %v1285 = vadd.f32 %v1188, %v1284
  %v1286 = vpop.f32.mrf.mxu0
  %v1287 = vpop.f32.mrf.mxu0
  %v1288 = vadd.f32 %v1191, %v1287
  %v1289 = vpop.f32.mrf.mxu0
  %1290 = vmatprep.mubr.bf16.mxu0 %v462
  %1291 = vmatmul.mubr.bf16.gmra.mxu0 %v461
  %v1292 = vpop.f32.mrf.mxu0
  %v1293 = vadd.f32 %v1196, %v1292
  %v1294 = vpop.f32.mrf.mxu0
  %v1295 = vpop.f32.mrf.mxu0
  %v1296 = vadd.f32 %v1199, %v1295
  %v1297 = vpop.f32.mrf.mxu0
  %1298 = vmatprep.mubr.bf16.mxu0 %v470
  %1299 = vmatmul.mubr.bf16.gmra.mxu0 %v469
  %v1300 = vpop.f32.mrf.mxu0
  %v1301 = vadd.f32 %v1204, %v1300
  %v1302 = vpop.f32.mrf.mxu0
  %v1303 = vpop.f32.mrf.mxu0
  %v1304 = vadd.f32 %v1207, %v1303
  %v1305 = vpop.f32.mrf.mxu0
  %1306 = vmatprep.mubr.bf16.mxu0 %v478
  %1307 = vmatmul.mubr.bf16.gmra.mxu0 %v477
  %v1308 = vpop.f32.mrf.mxu0
  %v1309 = vadd.f32 %v1212, %v1308
  %v1310 = vpop.f32.mrf.mxu0
  %v1311 = vpop.f32.mrf.mxu0
  %v1312 = vadd.f32 %v1215, %v1311
  %v1313 = vpop.f32.mrf.mxu0
  %1314 = vmatprep.mubr.bf16.mxu0 %v486
  %1315 = vmatmul.mubr.bf16.gmra.mxu0 %v485
  %v1316 = vpop.f32.mrf.mxu0
  %v1317 = vadd.f32 %v1220, %v1316
  %v1318 = vpop.f32.mrf.mxu0
  %v1319 = vpop.f32.mrf.mxu0
  %v1320 = vadd.f32 %v1223, %v1319
  %v1321 = vpop.f32.mrf.mxu0
  %1322 = vmatprep.mubr.bf16.mxu0 %v494
  %1323 = vmatmul.mubr.bf16.gmra.mxu0 %v493
  %v1324 = vpop.f32.mrf.mxu0
  %v1325 = vadd.f32 %v1228, %v1324
  %v1326 = vpop.f32.mrf.mxu0
  %v1327 = vpop.f32.mrf.mxu0
  %v1328 = vadd.f32 %v1231, %v1327
  %v1329 = vpop.f32.mrf.mxu0
  %1330 = vmatprep.mubr.bf16.mxu0 %v502
  %1331 = vmatmul.mubr.bf16.gmra.mxu0 %v501
  %v1332 = vpop.f32.mrf.mxu0
  %v1333 = vadd.f32 %v1236, %v1332
  %v1334 = vpop.f32.mrf.mxu0
  %v1335 = vpop.f32.mrf.mxu0
  %v1336 = vadd.f32 %v1239, %v1335
  %v1337 = vpop.f32.mrf.mxu0
  %1338 = vdwg.mxu0
  %v1339 = vpack.c.bf16 %v1280, %v1277
  %v1340 = vpack.c.bf16 %v1288, %v1285
  %v1341 = vpack.c.bf16 %v1296, %v1293
  %v1342 = vpack.c.bf16 %v1304, %v1301
  %v1343 = vpack.c.bf16 %v1312, %v1309
  %v1344 = vpack.c.bf16 %v1320, %v1317
  %v1345 = vpack.c.bf16 %v1328, %v1325
  %v1346 = vpack.c.bf16 %v1336, %v1333
  %v1347 = vld [vmem:[%s3] sm:$0xf]
  %v1348 = vld [vmem:[%s3 + $0x4] sm:$0xf]
  %v1349 = vld [vmem:[%s3 + $0x8] sm:$0xf]
  %v1350 = vld [vmem:[%s3 + $0xc] sm:$0xf]
  %v1351 = vld [vmem:[%s3 + $0x10] sm:$0xf]
  %v1352 = vld [vmem:[%s3 + $0x14] sm:$0xf]
  %v1353 = vld [vmem:[%s3 + $0x18] sm:$0xf]
  %v1354 = vld [vmem:[%s3 + $0x1c] sm:$0xf]
  %v1355 = vld [vmem:[%s3 + $0x20] sm:$0xf]
  %v1356 = vld [vmem:[%s3 + $0x24] sm:$0xf]
  %v1357 = vld [vmem:[%s3 + $0x28] sm:$0xf]
  %v1358 = vld [vmem:[%s3 + $0x2c] sm:$0xf]
  %v1359 = vld [vmem:[%s3 + $0x30] sm:$0xf]
  %v1360 = vld [vmem:[%s3 + $0x34] sm:$0xf]
  %v1361 = vld [vmem:[%s3 + $0x38] sm:$0xf]
  %v1362 = vld [vmem:[%s3 + $0x3c] sm:$0xf]
  %v1363 = vld [vmem:[%s3 + $0x40] sm:$0xf]
  %v1364 = vld [vmem:[%s3 + $0x44] sm:$0xf]
  %v1365 = vld [vmem:[%s3 + $0x48] sm:$0xf]
  %v1366 = vld [vmem:[%s3 + $0x4c] sm:$0xf]
  %v1367 = vld [vmem:[%s3 + $0x50] sm:$0xf]
  %v1368 = vld [vmem:[%s3 + $0x54] sm:$0xf]
  %v1369 = vld [vmem:[%s3 + $0x58] sm:$0xf]
  %v1370 = vld [vmem:[%s3 + $0x5c] sm:$0xf]
  %v1371 = vld [vmem:[%s3 + $0x60] sm:$0xf]
  %v1372 = vld [vmem:[%s3 + $0x64] sm:$0xf]
  %v1373 = vld [vmem:[%s3 + $0x68] sm:$0xf]
  %v1374 = vld [vmem:[%s3 + $0x6c] sm:$0xf]
  %v1375 = vld [vmem:[%s3 + $0x70] sm:$0xf]
  %v1376 = vld [vmem:[%s3 + $0x74] sm:$0xf]
  %v1377 = vld [vmem:[%s3 + $0x78] sm:$0xf]
  %v1378 = vld [vmem:[%s3 + $0x7c] sm:$0xf]
  %v1379 = vld [vmem:[%s3 + $0x80] sm:$0xf]
  %v1380 = vld [vmem:[%s3 + $0x84] sm:$0xf]
  %v1381 = vld [vmem:[%s3 + $0x88] sm:$0xf]
  %v1382 = vld [vmem:[%s3 + $0x8c] sm:$0xf]
  %v1383 = vld [vmem:[%s3 + $0x90] sm:$0xf]
  %v1384 = vld [vmem:[%s3 + $0x94] sm:$0xf]
  %v1385 = vld [vmem:[%s3 + $0x98] sm:$0xf]
  %v1386 = vld [vmem:[%s3 + $0x9c] sm:$0xf]
  %v1387 = vld [vmem:[%s3 + $0xa0] sm:$0xf]
  %v1388 = vld [vmem:[%s3 + $0xa4] sm:$0xf]
  %v1389 = vld [vmem:[%s3 + $0xa8] sm:$0xf]
  %v1390 = vld [vmem:[%s3 + $0xac] sm:$0xf]
  %v1391 = vld [vmem:[%s3 + $0xb0] sm:$0xf]
  %v1392 = vld [vmem:[%s3 + $0xb4] sm:$0xf]
  %v1393 = vld [vmem:[%s3 + $0xb8] sm:$0xf]
  %v1394 = vld [vmem:[%s3 + $0xbc] sm:$0xf]
  %v1395 = vld [vmem:[%s3 + $0xc0] sm:$0xf]
  %v1396 = vld [vmem:[%s3 + $0xc4] sm:$0xf]
  %v1397 = vld [vmem:[%s3 + $0xc8] sm:$0xf]
  %v1398 = vld [vmem:[%s3 + $0xcc] sm:$0xf]
  %v1399 = vld [vmem:[%s3 + $0xd0] sm:$0xf]
  %v1400 = vld [vmem:[%s3 + $0xd4] sm:$0xf]
  %v1401 = vld [vmem:[%s3 + $0xd8] sm:$0xf]
  %v1402 = vld [vmem:[%s3 + $0xdc] sm:$0xf]
  %v1403 = vld [vmem:[%s3 + $0xe0] sm:$0xf]
  %v1404 = vld [vmem:[%s3 + $0xe4] sm:$0xf]
  %v1405 = vld [vmem:[%s3 + $0xe8] sm:$0xf]
  %v1406 = vld [vmem:[%s3 + $0xec] sm:$0xf]
  %v1407 = vld [vmem:[%s3 + $0xf0] sm:$0xf]
  %v1408 = vld [vmem:[%s3 + $0xf4] sm:$0xf]
  %v1409 = vld [vmem:[%s3 + $0xf8] sm:$0xf]
  %v1410 = vld [vmem:[%s3 + $0xfc] sm:$0xf]
  %v1411 = vld [vmem:[%s3 + $0x100] sm:$0xf]
  %v1412 = vld [vmem:[%s3 + $0x104] sm:$0xf]
  %v1413 = vld [vmem:[%s3 + $0x108] sm:$0xf]
  %v1414 = vld [vmem:[%s3 + $0x10c] sm:$0xf]
  %v1415 = vld [vmem:[%s3 + $0x110] sm:$0xf]
  %v1416 = vld [vmem:[%s3 + $0x114] sm:$0xf]
  %v1417 = vld [vmem:[%s3 + $0x118] sm:$0xf]
  %v1418 = vld [vmem:[%s3 + $0x11c] sm:$0xf]
  %v1419 = vld [vmem:[%s3 + $0x120] sm:$0xf]
  %v1420 = vld [vmem:[%s3 + $0x124] sm:$0xf]
  %v1421 = vld [vmem:[%s3 + $0x128] sm:$0xf]
  %v1422 = vld [vmem:[%s3 + $0x12c] sm:$0xf]
  %v1423 = vld [vmem:[%s3 + $0x130] sm:$0xf]
  %v1424 = vld [vmem:[%s3 + $0x134] sm:$0xf]
  %v1425 = vld [vmem:[%s3 + $0x138] sm:$0xf]
  %v1426 = vld [vmem:[%s3 + $0x13c] sm:$0xf]
  %v1427 = vld [vmem:[%s3 + $0x140] sm:$0xf]
  %v1428 = vld [vmem:[%s3 + $0x144] sm:$0xf]
  %v1429 = vld [vmem:[%s3 + $0x148] sm:$0xf]
  %v1430 = vld [vmem:[%s3 + $0x14c] sm:$0xf]
  %v1431 = vld [vmem:[%s3 + $0x150] sm:$0xf]
  %v1432 = vld [vmem:[%s3 + $0x154] sm:$0xf]
  %v1433 = vld [vmem:[%s3 + $0x158] sm:$0xf]
  %v1434 = vld [vmem:[%s3 + $0x15c] sm:$0xf]
  %v1435 = vld [vmem:[%s3 + $0x160] sm:$0xf]
  %v1436 = vld [vmem:[%s3 + $0x164] sm:$0xf]
  %v1437 = vld [vmem:[%s3 + $0x168] sm:$0xf]
  %v1438 = vld [vmem:[%s3 + $0x16c] sm:$0xf]
  %v1439 = vld [vmem:[%s3 + $0x170] sm:$0xf]
  %v1440 = vld [vmem:[%s3 + $0x174] sm:$0xf]
  %v1441 = vld [vmem:[%s3 + $0x178] sm:$0xf]
  %v1442 = vld [vmem:[%s3 + $0x17c] sm:$0xf]
  %v1443 = vld [vmem:[%s3 + $0x180] sm:$0xf]
  %v1444 = vld [vmem:[%s3 + $0x184] sm:$0xf]
  %v1445 = vld [vmem:[%s3 + $0x188] sm:$0xf]
  %v1446 = vld [vmem:[%s3 + $0x18c] sm:$0xf]
  %v1447 = vld [vmem:[%s3 + $0x190] sm:$0xf]
  %v1448 = vld [vmem:[%s3 + $0x194] sm:$0xf]
  %v1449 = vld [vmem:[%s3 + $0x198] sm:$0xf]
  %v1450 = vld [vmem:[%s3 + $0x19c] sm:$0xf]
  %v1451 = vld [vmem:[%s3 + $0x1a0] sm:$0xf]
  %v1452 = vld [vmem:[%s3 + $0x1a4] sm:$0xf]
  %v1453 = vld [vmem:[%s3 + $0x1a8] sm:$0xf]
  %v1454 = vld [vmem:[%s3 + $0x1ac] sm:$0xf]
  %v1455 = vld [vmem:[%s3 + $0x1b0] sm:$0xf]
  %v1456 = vld [vmem:[%s3 + $0x1b4] sm:$0xf]
  %v1457 = vld [vmem:[%s3 + $0x1b8] sm:$0xf]
  %v1458 = vld [vmem:[%s3 + $0x1bc] sm:$0xf]
  %v1459 = vld [vmem:[%s3 + $0x1c0] sm:$0xf]
  %v1460 = vld [vmem:[%s3 + $0x1c4] sm:$0xf]
  %v1461 = vld [vmem:[%s3 + $0x1c8] sm:$0xf]
  %v1462 = vld [vmem:[%s3 + $0x1cc] sm:$0xf]
  %v1463 = vld [vmem:[%s3 + $0x1d0] sm:$0xf]
  %v1464 = vld [vmem:[%s3 + $0x1d4] sm:$0xf]
  %v1465 = vld [vmem:[%s3 + $0x1d8] sm:$0xf]
  %v1466 = vld [vmem:[%s3 + $0x1dc] sm:$0xf]
  %v1467 = vld [vmem:[%s3 + $0x1e0] sm:$0xf]
  %v1468 = vld [vmem:[%s3 + $0x1e4] sm:$0xf]
  %v1469 = vld [vmem:[%s3 + $0x1e8] sm:$0xf]
  %v1470 = vld [vmem:[%s3 + $0x1ec] sm:$0xf]
  %v1471 = vld [vmem:[%s3 + $0x1f0] sm:$0xf]
  %v1472 = vld [vmem:[%s3 + $0x1f4] sm:$0xf]
  %v1473 = vld [vmem:[%s3 + $0x1f8] sm:$0xf]
  %v1474 = vld [vmem:[%s3 + $0x1fc] sm:$0xf]
  %v1603 = vunpack.c.l.b16 %v1347
  %v1604 = vunpack.c.l.b16 %v1348
  %v1605 = vunpack.c.l.b16 %v1349
  %v1606 = vunpack.c.l.b16 %v1350
  %v1607 = vunpack.c.l.b16 %v1351
  %v1608 = vunpack.c.l.b16 %v1352
  %v1609 = vunpack.c.l.b16 %v1353
  %v1610 = vunpack.c.l.b16 %v1354
  %v1611 = vunpack.c.l.b16 %v1355
  %v1612 = vunpack.c.l.b16 %v1356
  %v1613 = vunpack.c.l.b16 %v1357
  %v1614 = vunpack.c.l.b16 %v1358
  %v1615 = vunpack.c.l.b16 %v1359
  %v1616 = vunpack.c.l.b16 %v1360
  %v1617 = vunpack.c.l.b16 %v1361
  %v1618 = vunpack.c.l.b16 %v1362
  %v1619 = vunpack.c.l.b16 %v1363
  %v1620 = vunpack.c.l.b16 %v1364
  %v1621 = vunpack.c.l.b16 %v1365
  %v1622 = vunpack.c.l.b16 %v1366
  %v1623 = vunpack.c.l.b16 %v1367
  %v1624 = vunpack.c.l.b16 %v1368
  %v1625 = vunpack.c.l.b16 %v1369
  %v1626 = vunpack.c.l.b16 %v1370
  %v1627 = vunpack.c.l.b16 %v1371
  %v1628 = vunpack.c.l.b16 %v1372
  %v1629 = vunpack.c.l.b16 %v1373
  %v1630 = vunpack.c.l.b16 %v1374
  %v1631 = vunpack.c.l.b16 %v1375
  %v1632 = vunpack.c.l.b16 %v1376
  %v1633 = vunpack.c.l.b16 %v1377
  %v1634 = vunpack.c.l.b16 %v1378
  %v1635 = vunpack.c.l.b16 %v1379
  %v1636 = vunpack.c.l.b16 %v1380
  %v1637 = vunpack.c.l.b16 %v1381
  %v1638 = vunpack.c.l.b16 %v1382
  %v1639 = vunpack.c.l.b16 %v1383
  %v1640 = vunpack.c.l.b16 %v1384
  %v1641 = vunpack.c.l.b16 %v1385
  %v1642 = vunpack.c.l.b16 %v1386
  %v1643 = vunpack.c.l.b16 %v1387
  %v1644 = vunpack.c.l.b16 %v1388
  %v1645 = vunpack.c.l.b16 %v1389
  %v1646 = vunpack.c.l.b16 %v1390
  %v1647 = vunpack.c.l.b16 %v1391
  %v1648 = vunpack.c.l.b16 %v1392
  %v1649 = vunpack.c.l.b16 %v1393
  %v1650 = vunpack.c.l.b16 %v1394
  %v1651 = vunpack.c.l.b16 %v1395
  %v1652 = vunpack.c.l.b16 %v1396
  %v1653 = vunpack.c.l.b16 %v1397
  %v1654 = vunpack.c.l.b16 %v1398
  %v1655 = vunpack.c.l.b16 %v1399
  %v1656 = vunpack.c.l.b16 %v1400
  %v1657 = vunpack.c.l.b16 %v1401
  %v1658 = vunpack.c.l.b16 %v1402
  %v1659 = vunpack.c.l.b16 %v1403
  %v1660 = vunpack.c.l.b16 %v1404
  %v1661 = vunpack.c.l.b16 %v1405
  %v1662 = vunpack.c.l.b16 %v1406
  %v1663 = vunpack.c.l.b16 %v1407
  %v1664 = vunpack.c.l.b16 %v1408
  %v1665 = vunpack.c.l.b16 %v1409
  %v1666 = vunpack.c.l.b16 %v1410
  %v1667 = vunpack.c.l.b16 %v1411
  %v1668 = vunpack.c.l.b16 %v1412
  %v1669 = vunpack.c.l.b16 %v1413
  %v1670 = vunpack.c.l.b16 %v1414
  %v1671 = vunpack.c.l.b16 %v1415
  %v1672 = vunpack.c.l.b16 %v1416
  %v1673 = vunpack.c.l.b16 %v1417
  %v1674 = vunpack.c.l.b16 %v1418
  %v1675 = vunpack.c.l.b16 %v1419
  %v1676 = vunpack.c.l.b16 %v1420
  %v1677 = vunpack.c.l.b16 %v1421
  %v1678 = vunpack.c.l.b16 %v1422
  %v1679 = vunpack.c.l.b16 %v1423
  %v1680 = vunpack.c.l.b16 %v1424
  %v1681 = vunpack.c.l.b16 %v1425
  %v1682 = vunpack.c.l.b16 %v1426
  %v1683 = vunpack.c.l.b16 %v1427
  %v1684 = vunpack.c.l.b16 %v1428
  %v1685 = vunpack.c.l.b16 %v1429
  %v1686 = vunpack.c.l.b16 %v1430
  %v1687 = vunpack.c.l.b16 %v1431
  %v1688 = vunpack.c.l.b16 %v1432
  %v1689 = vunpack.c.l.b16 %v1433
  %v1690 = vunpack.c.l.b16 %v1434
  %v1691 = vunpack.c.l.b16 %v1435
  %v1692 = vunpack.c.l.b16 %v1436
  %v1693 = vunpack.c.l.b16 %v1437
  %v1694 = vunpack.c.l.b16 %v1438
  %v1695 = vunpack.c.l.b16 %v1439
  %v1696 = vunpack.c.l.b16 %v1440
  %v1697 = vunpack.c.l.b16 %v1441
  %v1698 = vunpack.c.l.b16 %v1442
  %v1699 = vunpack.c.l.b16 %v1443
  %v1700 = vunpack.c.l.b16 %v1444
  %v1701 = vunpack.c.l.b16 %v1445
  %v1702 = vunpack.c.l.b16 %v1446
  %v1703 = vunpack.c.l.b16 %v1447
  %v1704 = vunpack.c.l.b16 %v1448
  %v1705 = vunpack.c.l.b16 %v1449
  %v1706 = vunpack.c.l.b16 %v1450
  %v1707 = vunpack.c.l.b16 %v1451
  %v1708 = vunpack.c.l.b16 %v1452
  %v1709 = vunpack.c.l.b16 %v1453
  %v1710 = vunpack.c.l.b16 %v1454
  %v1711 = vunpack.c.l.b16 %v1455
  %v1712 = vunpack.c.l.b16 %v1456
  %v1713 = vunpack.c.l.b16 %v1457
  %v1714 = vunpack.c.l.b16 %v1458
  %v1715 = vunpack.c.l.b16 %v1459
  %v1716 = vunpack.c.l.b16 %v1460
  %v1717 = vunpack.c.l.b16 %v1461
  %v1718 = vunpack.c.l.b16 %v1462
  %v1719 = vunpack.c.l.b16 %v1463
  %v1720 = vunpack.c.l.b16 %v1464
  %v1721 = vunpack.c.l.b16 %v1465
  %v1722 = vunpack.c.l.b16 %v1466
  %v1723 = vunpack.c.l.b16 %v1467
  %v1724 = vunpack.c.l.b16 %v1468
  %v1725 = vunpack.c.l.b16 %v1469
  %v1726 = vunpack.c.l.b16 %v1470
  %v1727 = vunpack.c.l.b16 %v1471
  %v1728 = vunpack.c.l.b16 %v1472
  %v1729 = vunpack.c.l.b16 %v1473
  %v1730 = vunpack.c.l.b16 %v1474
  %v1731 = vpack.c.b16 %v1604, %v1603
  %v1732 = vpack.c.b16 %v1606, %v1605
  %v1733 = vpack.c.b16 %v1608, %v1607
  %v1734 = vpack.c.b16 %v1610, %v1609
  %v1735 = vpack.c.b16 %v1612, %v1611
  %v1736 = vpack.c.b16 %v1614, %v1613
  %v1737 = vpack.c.b16 %v1616, %v1615
  %v1738 = vpack.c.b16 %v1618, %v1617
  %v1739 = vpack.c.b16 %v1620, %v1619
  %v1740 = vpack.c.b16 %v1622, %v1621
  %v1741 = vpack.c.b16 %v1624, %v1623
  %v1742 = vpack.c.b16 %v1626, %v1625
  %v1743 = vpack.c.b16 %v1628, %v1627
  %v1744 = vpack.c.b16 %v1630, %v1629
  %v1745 = vpack.c.b16 %v1632, %v1631
  %v1746 = vpack.c.b16 %v1634, %v1633
  %v1747 = vpack.c.b16 %v1636, %v1635
  %v1748 = vpack.c.b16 %v1638, %v1637
  %v1749 = vpack.c.b16 %v1640, %v1639
  %v1750 = vpack.c.b16 %v1642, %v1641
  %v1751 = vpack.c.b16 %v1644, %v1643
  %v1752 = vpack.c.b16 %v1646, %v1645
  %v1753 = vpack.c.b16 %v1648, %v1647
  %v1754 = vpack.c.b16 %v1650, %v1649
  %v1755 = vpack.c.b16 %v1652, %v1651
  %v1756 = vpack.c.b16 %v1654, %v1653
  %v1757 = vpack.c.b16 %v1656, %v1655
  %v1758 = vpack.c.b16 %v1658, %v1657
  %v1759 = vpack.c.b16 %v1660, %v1659
  %v1760 = vpack.c.b16 %v1662, %v1661
  %v1761 = vpack.c.b16 %v1664, %v1663
  %v1762 = vpack.c.b16 %v1666, %v1665
  %v1763 = vpack.c.b16 %v1668, %v1667
  %v1764 = vpack.c.b16 %v1670, %v1669
  %v1765 = vpack.c.b16 %v1672, %v1671
  %v1766 = vpack.c.b16 %v1674, %v1673
  %v1767 = vpack.c.b16 %v1676, %v1675
  %v1768 = vpack.c.b16 %v1678, %v1677
  %v1769 = vpack.c.b16 %v1680, %v1679
  %v1770 = vpack.c.b16 %v1682, %v1681
  %v1771 = vpack.c.b16 %v1684, %v1683
  %v1772 = vpack.c.b16 %v1686, %v1685
  %v1773 = vpack.c.b16 %v1688, %v1687
  %v1774 = vpack.c.b16 %v1690, %v1689
  %v1775 = vpack.c.b16 %v1692, %v1691
  %v1776 = vpack.c.b16 %v1694, %v1693
  %v1777 = vpack.c.b16 %v1696, %v1695
  %v1778 = vpack.c.b16 %v1698, %v1697
  %v1779 = vpack.c.b16 %v1700, %v1699
  %v1780 = vpack.c.b16 %v1702, %v1701
  %v1781 = vpack.c.b16 %v1704, %v1703
  %v1782 = vpack.c.b16 %v1706, %v1705
  %v1783 = vpack.c.b16 %v1708, %v1707
  %v1784 = vpack.c.b16 %v1710, %v1709
  %v1785 = vpack.c.b16 %v1712, %v1711
  %v1786 = vpack.c.b16 %v1714, %v1713
  %v1787 = vpack.c.b16 %v1716, %v1715
  %v1788 = vpack.c.b16 %v1718, %v1717
  %v1789 = vpack.c.b16 %v1720, %v1719
  %v1790 = vpack.c.b16 %v1722, %v1721
  %v1791 = vpack.c.b16 %v1724, %v1723
  %v1792 = vpack.c.b16 %v1726, %v1725
  %v1793 = vpack.c.b16 %v1728, %v1727
  %v1794 = vpack.c.b16 %v1730, %v1729
  %1859 = vmatprep.subr.bf16.mxu0 0
  %1860 = vmatpush1.bf16.msra.mxu0 %v1738
  %1861 = vmatprep.subr.bf16.mxu0 0
  %1862 = vmatpush1.bf16.msra.mxu0 %v1737
  %1863 = vmatprep.subr.bf16.mxu0 0
  %1864 = vmatpush1.bf16.msra.mxu0 %v1736
  %1865 = vmatprep.subr.bf16.mxu0 0
  %1866 = vmatpush1.bf16.msra.mxu0 %v1735
  %1867 = vmatprep.subr.bf16.mxu0 0
  %1868 = vmatpush1.bf16.msra.mxu0 %v1734
  %1869 = vmatprep.subr.bf16.mxu0 0
  %1870 = vmatpush1.bf16.msra.mxu0 %v1733
  %1871 = vmatprep.subr.bf16.mxu0 0
  %1872 = vmatpush1.bf16.msra.mxu0 %v1732
  %1873 = vmatprep.subr.bf16.mxu0 0
  %1874 = vmatpush1.bf16.msra.mxu0 %v1731
  %1875 = vmatprep.subr.bf16.mxu0 0
  %1876 = vmatpush2.bf16.msra.mxu0 %v1746
  %1877 = vmatprep.subr.bf16.mxu0 0
  %1878 = vmatpush2.bf16.msra.mxu0 %v1745
  %1879 = vmatprep.subr.bf16.mxu0 0
  %1880 = vmatpush2.bf16.msra.mxu0 %v1744
  %1881 = vmatprep.subr.bf16.mxu0 0
  %1882 = vmatpush2.bf16.msra.mxu0 %v1743
  %1883 = vmatprep.subr.bf16.mxu0 0
  %1884 = vmatpush2.bf16.msra.mxu0 %v1742
  %1885 = vmatprep.subr.bf16.mxu0 0
  %1886 = vmatpush2.bf16.msra.mxu0 %v1741
  %1887 = vmatprep.subr.bf16.mxu0 0
  %1888 = vmatpush2.bf16.msra.mxu0 %v1740
  %1889 = vmatprep.subr.bf16.mxu0 0
  %1890 = vmatpush2.bf16.msra.mxu0 %v1739
  %1891 = vmatprep.mubr.bf16.mxu0 %v440
  %1892 = vmatmul.mubr.bf16.gmra.mxu0 %v439
  %v1893 = vpop.f32.mrf.mxu0
  %v1894 = vadd.f32 0.0, %v1893
  %v1895 = vpop.f32.mrf.mxu0
  %v1896 = vpop.f32.mrf.mxu0
  %v1897 = vadd.f32 0.0, %v1896
  %v1898 = vpop.f32.mrf.mxu0
  %1899 = vmatprep.mubr.bf16.mxu0 %v448
  %1900 = vmatmul.mubr.bf16.gmra.mxu0 %v447
  %v1901 = vpop.f32.mrf.mxu0
  %v1902 = vadd.f32 0.0, %v1901
  %v1903 = vpop.f32.mrf.mxu0
  %v1904 = vpop.f32.mrf.mxu0
  %v1905 = vadd.f32 0.0, %v1904
  %v1906 = vpop.f32.mrf.mxu0
  %1907 = vmatprep.mubr.bf16.mxu0 %v456
  %1908 = vmatmul.mubr.bf16.gmra.mxu0 %v455
  %v1909 = vpop.f32.mrf.mxu0
  %v1910 = vadd.f32 0.0, %v1909
  %v1911 = vpop.f32.mrf.mxu0
  %v1912 = vpop.f32.mrf.mxu0
  %v1913 = vadd.f32 0.0, %v1912
  %v1914 = vpop.f32.mrf.mxu0
  %1915 = vmatprep.mubr.bf16.mxu0 %v464
  %1916 = vmatmul.mubr.bf16.gmra.mxu0 %v463
  %v1917 = vpop.f32.mrf.mxu0
  %v1918 = vadd.f32 0.0, %v1917
  %v1919 = vpop.f32.mrf.mxu0
  %v1920 = vpop.f32.mrf.mxu0
  %v1921 = vadd.f32 0.0, %v1920
  %v1922 = vpop.f32.mrf.mxu0
  %1923 = vmatprep.mubr.bf16.mxu0 %v472
  %1924 = vmatmul.mubr.bf16.gmra.mxu0 %v471
  %v1925 = vpop.f32.mrf.mxu0
  %v1926 = vadd.f32 0.0, %v1925
  %v1927 = vpop.f32.mrf.mxu0
  %v1928 = vpop.f32.mrf.mxu0
  %v1929 = vadd.f32 0.0, %v1928
  %v1930 = vpop.f32.mrf.mxu0
  %1931 = vmatprep.mubr.bf16.mxu0 %v480
  %1932 = vmatmul.mubr.bf16.gmra.mxu0 %v479
  %v1933 = vpop.f32.mrf.mxu0
  %v1934 = vadd.f32 0.0, %v1933
  %v1935 = vpop.f32.mrf.mxu0
  %v1936 = vpop.f32.mrf.mxu0
  %v1937 = vadd.f32 0.0, %v1936
  %v1938 = vpop.f32.mrf.mxu0
  %1939 = vmatprep.mubr.bf16.mxu0 %v488
  %1940 = vmatmul.mubr.bf16.gmra.mxu0 %v487
  %v1941 = vpop.f32.mrf.mxu0
  %v1942 = vadd.f32 0.0, %v1941
  %v1943 = vpop.f32.mrf.mxu0
  %v1944 = vpop.f32.mrf.mxu0
  %v1945 = vadd.f32 0.0, %v1944
  %v1946 = vpop.f32.mrf.mxu0
  %1947 = vmatprep.mubr.bf16.mxu0 %v496
  %1948 = vmatmul.mubr.bf16.gmra.mxu0 %v495
  %v1949 = vpop.f32.mrf.mxu0
  %v1950 = vadd.f32 0.0, %v1949
  %v1951 = vpop.f32.mrf.mxu0
  %v1952 = vpop.f32.mrf.mxu0
  %v1953 = vadd.f32 0.0, %v1952
  %v1954 = vpop.f32.mrf.mxu0
  %1955 = vdwg.mxu0
  %1956 = vmatprep.subr.bf16.mxu0 0
  %1957 = vmatpush1.bf16.msra.mxu0 %v1754
  %1958 = vmatprep.subr.bf16.mxu0 0
  %1959 = vmatpush1.bf16.msra.mxu0 %v1753
  %1960 = vmatprep.subr.bf16.mxu0 0
  %1961 = vmatpush1.bf16.msra.mxu0 %v1752
  %1962 = vmatprep.subr.bf16.mxu0 0
  %1963 = vmatpush1.bf16.msra.mxu0 %v1751
  %1964 = vmatprep.subr.bf16.mxu0 0
  %1965 = vmatpush1.bf16.msra.mxu0 %v1750
  %1966 = vmatprep.subr.bf16.mxu0 0
  %1967 = vmatpush1.bf16.msra.mxu0 %v1749
  %1968 = vmatprep.subr.bf16.mxu0 0
  %1969 = vmatpush1.bf16.msra.mxu0 %v1748
  %1970 = vmatprep.subr.bf16.mxu0 0
  %1971 = vmatpush1.bf16.msra.mxu0 %v1747
  %1972 = vmatprep.subr.bf16.mxu0 0
  %1973 = vmatpush2.bf16.msra.mxu0 %v1762
  %1974 = vmatprep.subr.bf16.mxu0 0
  %1975 = vmatpush2.bf16.msra.mxu0 %v1761
  %1976 = vmatprep.subr.bf16.mxu0 0
  %1977 = vmatpush2.bf16.msra.mxu0 %v1760
  %1978 = vmatprep.subr.bf16.mxu0 0
  %1979 = vmatpush2.bf16.msra.mxu0 %v1759
  %1980 = vmatprep.subr.bf16.mxu0 0
  %1981 = vmatpush2.bf16.msra.mxu0 %v1758
  %1982 = vmatprep.subr.bf16.mxu0 0
  %1983 = vmatpush2.bf16.msra.mxu0 %v1757
  %1984 = vmatprep.subr.bf16.mxu0 0
  %1985 = vmatpush2.bf16.msra.mxu0 %v1756
  %1986 = vmatprep.subr.bf16.mxu0 0
  %1987 = vmatpush2.bf16.msra.mxu0 %v1755
  %1988 = vmatprep.mubr.bf16.mxu0 %v442
  %1989 = vmatmul.mubr.bf16.gmra.mxu0 %v441
  %v1990 = vpop.f32.mrf.mxu0
  %v1991 = vadd.f32 %v1894, %v1990
  %v1992 = vpop.f32.mrf.mxu0
  %v1993 = vpop.f32.mrf.mxu0
  %v1994 = vadd.f32 %v1897, %v1993
  %v1995 = vpop.f32.mrf.mxu0
  %1996 = vmatprep.mubr.bf16.mxu0 %v450
  %1997 = vmatmul.mubr.bf16.gmra.mxu0 %v449
  %v1998 = vpop.f32.mrf.mxu0
  %v1999 = vadd.f32 %v1902, %v1998
  %v2000 = vpop.f32.mrf.mxu0
  %v2001 = vpop.f32.mrf.mxu0
  %v2002 = vadd.f32 %v1905, %v2001
  %v2003 = vpop.f32.mrf.mxu0
  %2004 = vmatprep.mubr.bf16.mxu0 %v458
  %2005 = vmatmul.mubr.bf16.gmra.mxu0 %v457
  %v2006 = vpop.f32.mrf.mxu0
  %v2007 = vadd.f32 %v1910, %v2006
  %v2008 = vpop.f32.mrf.mxu0
  %v2009 = vpop.f32.mrf.mxu0
  %v2010 = vadd.f32 %v1913, %v2009
  %v2011 = vpop.f32.mrf.mxu0
  %2012 = vmatprep.mubr.bf16.mxu0 %v466
  %2013 = vmatmul.mubr.bf16.gmra.mxu0 %v465
  %v2014 = vpop.f32.mrf.mxu0
  %v2015 = vadd.f32 %v1918, %v2014
  %v2016 = vpop.f32.mrf.mxu0
  %v2017 = vpop.f32.mrf.mxu0
  %v2018 = vadd.f32 %v1921, %v2017
  %v2019 = vpop.f32.mrf.mxu0
  %2020 = vmatprep.mubr.bf16.mxu0 %v474
  %2021 = vmatmul.mubr.bf16.gmra.mxu0 %v473
  %v2022 = vpop.f32.mrf.mxu0
  %v2023 = vadd.f32 %v1926, %v2022
  %v2024 = vpop.f32.mrf.mxu0
  %v2025 = vpop.f32.mrf.mxu0
  %v2026 = vadd.f32 %v1929, %v2025
  %v2027 = vpop.f32.mrf.mxu0
  %2028 = vmatprep.mubr.bf16.mxu0 %v482
  %2029 = vmatmul.mubr.bf16.gmra.mxu0 %v481
  %v2030 = vpop.f32.mrf.mxu0
  %v2031 = vadd.f32 %v1934, %v2030
  %v2032 = vpop.f32.mrf.mxu0
  %v2033 = vpop.f32.mrf.mxu0
  %v2034 = vadd.f32 %v1937, %v2033
  %v2035 = vpop.f32.mrf.mxu0
  %2036 = vmatprep.mubr.bf16.mxu0 %v490
  %2037 = vmatmul.mubr.bf16.gmra.mxu0 %v489
  %v2038 = vpop.f32.mrf.mxu0
  %v2039 = vadd.f32 %v1942, %v2038
  %v2040 = vpop.f32.mrf.mxu0
  %v2041 = vpop.f32.mrf.mxu0
  %v2042 = vadd.f32 %v1945, %v2041
  %v2043 = vpop.f32.mrf.mxu0
  %2044 = vmatprep.mubr.bf16.mxu0 %v498
  %2045 = vmatmul.mubr.bf16.gmra.mxu0 %v497
  %v2046 = vpop.f32.mrf.mxu0
  %v2047 = vadd.f32 %v1950, %v2046
  %v2048 = vpop.f32.mrf.mxu0
  %v2049 = vpop.f32.mrf.mxu0
  %v2050 = vadd.f32 %v1953, %v2049
  %v2051 = vpop.f32.mrf.mxu0
  %2052 = vdwg.mxu0
  %2053 = vmatprep.subr.bf16.mxu0 0
  %2054 = vmatpush1.bf16.msra.mxu0 %v1770
  %2055 = vmatprep.subr.bf16.mxu0 0
  %2056 = vmatpush1.bf16.msra.mxu0 %v1769
  %2057 = vmatprep.subr.bf16.mxu0 0
  %2058 = vmatpush1.bf16.msra.mxu0 %v1768
  %2059 = vmatprep.subr.bf16.mxu0 0
  %2060 = vmatpush1.bf16.msra.mxu0 %v1767
  %2061 = vmatprep.subr.bf16.mxu0 0
  %2062 = vmatpush1.bf16.msra.mxu0 %v1766
  %2063 = vmatprep.subr.bf16.mxu0 0
  %2064 = vmatpush1.bf16.msra.mxu0 %v1765
  %2065 = vmatprep.subr.bf16.mxu0 0
  %2066 = vmatpush1.bf16.msra.mxu0 %v1764
  %2067 = vmatprep.subr.bf16.mxu0 0
  %2068 = vmatpush1.bf16.msra.mxu0 %v1763
  %2069 = vmatprep.subr.bf16.mxu0 0
  %2070 = vmatpush2.bf16.msra.mxu0 %v1778
  %2071 = vmatprep.subr.bf16.mxu0 0
  %2072 = vmatpush2.bf16.msra.mxu0 %v1777
  %2073 = vmatprep.subr.bf16.mxu0 0
  %2074 = vmatpush2.bf16.msra.mxu0 %v1776
  %2075 = vmatprep.subr.bf16.mxu0 0
  %2076 = vmatpush2.bf16.msra.mxu0 %v1775
  %2077 = vmatprep.subr.bf16.mxu0 0
  %2078 = vmatpush2.bf16.msra.mxu0 %v1774
  %2079 = vmatprep.subr.bf16.mxu0 0
  %2080 = vmatpush2.bf16.msra.mxu0 %v1773
  %2081 = vmatprep.subr.bf16.mxu0 0
  %2082 = vmatpush2.bf16.msra.mxu0 %v1772
  %2083 = vmatprep.subr.bf16.mxu0 0
  %2084 = vmatpush2.bf16.msra.mxu0 %v1771
  %2085 = vmatprep.mubr.bf16.mxu0 %v444
  %2086 = vmatmul.mubr.bf16.gmra.mxu0 %v443
  %v2087 = vpop.f32.mrf.mxu0
  %v2088 = vadd.f32 %v1991, %v2087
  %v2089 = vpop.f32.mrf.mxu0
  %v2090 = vpop.f32.mrf.mxu0
  %v2091 = vadd.f32 %v1994, %v2090
  %v2092 = vpop.f32.mrf.mxu0
  %2093 = vmatprep.mubr.bf16.mxu0 %v452
  %2094 = vmatmul.mubr.bf16.gmra.mxu0 %v451
  %v2095 = vpop.f32.mrf.mxu0
  %v2096 = vadd.f32 %v1999, %v2095
  %v2097 = vpop.f32.mrf.mxu0
  %v2098 = vpop.f32.mrf.mxu0
  %v2099 = vadd.f32 %v2002, %v2098
  %v2100 = vpop.f32.mrf.mxu0
  %2101 = vmatprep.mubr.bf16.mxu0 %v460
  %2102 = vmatmul.mubr.bf16.gmra.mxu0 %v459
  %v2103 = vpop.f32.mrf.mxu0
  %v2104 = vadd.f32 %v2007, %v2103
  %v2105 = vpop.f32.mrf.mxu0
  %v2106 = vpop.f32.mrf.mxu0
  %v2107 = vadd.f32 %v2010, %v2106
  %v2108 = vpop.f32.mrf.mxu0
  %2109 = vmatprep.mubr.bf16.mxu0 %v468
  %2110 = vmatmul.mubr.bf16.gmra.mxu0 %v467
  %v2111 = vpop.f32.mrf.mxu0
  %v2112 = vadd.f32 %v2015, %v2111
  %v2113 = vpop.f32.mrf.mxu0
  %v2114 = vpop.f32.mrf.mxu0
  %v2115 = vadd.f32 %v2018, %v2114
  %v2116 = vpop.f32.mrf.mxu0
  %2117 = vmatprep.mubr.bf16.mxu0 %v476
  %2118 = vmatmul.mubr.bf16.gmra.mxu0 %v475
  %v2119 = vpop.f32.mrf.mxu0
  %v2120 = vadd.f32 %v2023, %v2119
  %v2121 = vpop.f32.mrf.mxu0
  %v2122 = vpop.f32.mrf.mxu0
  %v2123 = vadd.f32 %v2026, %v2122
  %v2124 = vpop.f32.mrf.mxu0
  %2125 = vmatprep.mubr.bf16.mxu0 %v484
  %2126 = vmatmul.mubr.bf16.gmra.mxu0 %v483
  %v2127 = vpop.f32.mrf.mxu0
  %v2128 = vadd.f32 %v2031, %v2127
  %v2129 = vpop.f32.mrf.mxu0
  %v2130 = vpop.f32.mrf.mxu0
  %v2131 = vadd.f32 %v2034, %v2130
  %v2132 = vpop.f32.mrf.mxu0
  %2133 = vmatprep.mubr.bf16.mxu0 %v492
  %2134 = vmatmul.mubr.bf16.gmra.mxu0 %v491
  %v2135 = vpop.f32.mrf.mxu0
  %v2136 = vadd.f32 %v2039, %v2135
  %v2137 = vpop.f32.mrf.mxu0
  %v2138 = vpop.f32.mrf.mxu0
  %v2139 = vadd.f32 %v2042, %v2138
  %v2140 = vpop.f32.mrf.mxu0
  %2141 = vmatprep.mubr.bf16.mxu0 %v500
  %2142 = vmatmul.mubr.bf16.gmra.mxu0 %v499
  %v2143 = vpop.f32.mrf.mxu0
  %v2144 = vadd.f32 %v2047, %v2143
  %v2145 = vpop.f32.mrf.mxu0
  %v2146 = vpop.f32.mrf.mxu0
  %v2147 = vadd.f32 %v2050, %v2146
  %v2148 = vpop.f32.mrf.mxu0
  %2149 = vdwg.mxu0
  %2150 = vmatprep.subr.bf16.mxu0 0
  %2151 = vmatpush1.bf16.msra.mxu0 %v1786
  %2152 = vmatprep.subr.bf16.mxu0 0
  %2153 = vmatpush1.bf16.msra.mxu0 %v1785
  %2154 = vmatprep.subr.bf16.mxu0 0
  %2155 = vmatpush1.bf16.msra.mxu0 %v1784
  %2156 = vmatprep.subr.bf16.mxu0 0
  %2157 = vmatpush1.bf16.msra.mxu0 %v1783
  %2158 = vmatprep.subr.bf16.mxu0 0
  %2159 = vmatpush1.bf16.msra.mxu0 %v1782
  %2160 = vmatprep.subr.bf16.mxu0 0
  %2161 = vmatpush1.bf16.msra.mxu0 %v1781
  %2162 = vmatprep.subr.bf16.mxu0 0
  %2163 = vmatpush1.bf16.msra.mxu0 %v1780
  %2164 = vmatprep.subr.bf16.mxu0 0
  %2165 = vmatpush1.bf16.msra.mxu0 %v1779
  %2166 = vmatprep.subr.bf16.mxu0 0
  %2167 = vmatpush2.bf16.msra.mxu0 %v1794
  %2168 = vmatprep.subr.bf16.mxu0 0
  %2169 = vmatpush2.bf16.msra.mxu0 %v1793
  %2170 = vmatprep.subr.bf16.mxu0 0
  %2171 = vmatpush2.bf16.msra.mxu0 %v1792
  %2172 = vmatprep.subr.bf16.mxu0 0
  %2173 = vmatpush2.bf16.msra.mxu0 %v1791
  %2174 = vmatprep.subr.bf16.mxu0 0
  %2175 = vmatpush2.bf16.msra.mxu0 %v1790
  %2176 = vmatprep.subr.bf16.mxu0 0
  %2177 = vmatpush2.bf16.msra.mxu0 %v1789
  %2178 = vmatprep.subr.bf16.mxu0 0
  %2179 = vmatpush2.bf16.msra.mxu0 %v1788
  %2180 = vmatprep.subr.bf16.mxu0 0
  %2181 = vmatpush2.bf16.msra.mxu0 %v1787
  %2182 = vmatprep.mubr.bf16.mxu0 %v446
  %2183 = vmatmul.mubr.bf16.gmra.mxu0 %v445
  %v2184 = vpop.f32.mrf.mxu0
  %v2185 = vadd.f32 %v2088, %v2184
  %v2186 = vpop.f32.mrf.mxu0
  %v2187 = vpop.f32.mrf.mxu0
  %v2188 = vadd.f32 %v2091, %v2187
  %v2189 = vpop.f32.mrf.mxu0
  %2190 = vmatprep.mubr.bf16.mxu0 %v454
  %2191 = vmatmul.mubr.bf16.gmra.mxu0 %v453
  %v2192 = vpop.f32.mrf.mxu0
  %v2193 = vadd.f32 %v2096, %v2192
  %v2194 = vpop.f32.mrf.mxu0
  %v2195 = vpop.f32.mrf.mxu0
  %v2196 = vadd.f32 %v2099, %v2195
  %v2197 = vpop.f32.mrf.mxu0
  %2198 = vmatprep.mubr.bf16.mxu0 %v462
  %2199 = vmatmul.mubr.bf16.gmra.mxu0 %v461
  %v2200 = vpop.f32.mrf.mxu0
  %v2201 = vadd.f32 %v2104, %v2200
  %v2202 = vpop.f32.mrf.mxu0
  %v2203 = vpop.f32.mrf.mxu0
  %v2204 = vadd.f32 %v2107, %v2203
  %v2205 = vpop.f32.mrf.mxu0
  %2206 = vmatprep.mubr.bf16.mxu0 %v470
  %2207 = vmatmul.mubr.bf16.gmra.mxu0 %v469
  %v2208 = vpop.f32.mrf.mxu0
  %v2209 = vadd.f32 %v2112, %v2208
  %v2210 = vpop.f32.mrf.mxu0
  %v2211 = vpop.f32.mrf.mxu0
  %v2212 = vadd.f32 %v2115, %v2211
  %v2213 = vpop.f32.mrf.mxu0
  %2214 = vmatprep.mubr.bf16.mxu0 %v478
  %2215 = vmatmul.mubr.bf16.gmra.mxu0 %v477
  %v2216 = vpop.f32.mrf.mxu0
  %v2217 = vadd.f32 %v2120, %v2216
  %v2218 = vpop.f32.mrf.mxu0
  %v2219 = vpop.f32.mrf.mxu0
  %v2220 = vadd.f32 %v2123, %v2219
  %v2221 = vpop.f32.mrf.mxu0
  %2222 = vmatprep.mubr.bf16.mxu0 %v486
  %2223 = vmatmul.mubr.bf16.gmra.mxu0 %v485
  %v2224 = vpop.f32.mrf.mxu0
  %v2225 = vadd.f32 %v2128, %v2224
  %v2226 = vpop.f32.mrf.mxu0
  %v2227 = vpop.f32.mrf.mxu0
  %v2228 = vadd.f32 %v2131, %v2227
  %v2229 = vpop.f32.mrf.mxu0
  %2230 = vmatprep.mubr.bf16.mxu0 %v494
  %2231 = vmatmul.mubr.bf16.gmra.mxu0 %v493
  %v2232 = vpop.f32.mrf.mxu0
  %v2233 = vadd.f32 %v2136, %v2232
  %v2234 = vpop.f32.mrf.mxu0
  %v2235 = vpop.f32.mrf.mxu0
  %v2236 = vadd.f32 %v2139, %v2235
  %v2237 = vpop.f32.mrf.mxu0
  %2238 = vmatprep.mubr.bf16.mxu0 %v502
  %2239 = vmatmul.mubr.bf16.gmra.mxu0 %v501
  %v2240 = vpop.f32.mrf.mxu0
  %v2241 = vadd.f32 %v2144, %v2240
  %v2242 = vpop.f32.mrf.mxu0
  %v2243 = vpop.f32.mrf.mxu0
  %v2244 = vadd.f32 %v2147, %v2243
  %v2245 = vpop.f32.mrf.mxu0
  %2246 = vdwg.mxu0
  %v2263 = vunpack.c.l.b16 %v39
  %v2264 = vunpack.c.l.b16 %v40
  %v2265 = vunpack.c.l.b16 %v41
  %v2266 = vunpack.c.l.b16 %v42
  %v2267 = vunpack.c.l.b16 %v43
  %v2268 = vunpack.c.l.b16 %v44
  %v2269 = vunpack.c.l.b16 %v45
  %v2270 = vunpack.c.l.b16 %v46
  %v2271 = vunpack.c.l.b16 %v47
  %v2272 = vunpack.c.l.b16 %v48
  %v2273 = vunpack.c.l.b16 %v49
  %v2274 = vunpack.c.l.b16 %v50
  %v2275 = vunpack.c.l.b16 %v51
  %v2276 = vunpack.c.l.b16 %v52
  %v2277 = vunpack.c.l.b16 %v53
  %v2278 = vunpack.c.l.b16 %v54
  %v2279 = vpack.c.b16 %v2264, %v2263
  %v2280 = vpack.c.b16 %v2266, %v2265
  %v2281 = vpack.c.b16 %v2268, %v2267
  %v2282 = vpack.c.b16 %v2270, %v2269
  %v2283 = vpack.c.b16 %v2272, %v2271
  %v2284 = vpack.c.b16 %v2274, %v2273
  %v2285 = vpack.c.b16 %v2276, %v2275
  %v2286 = vpack.c.b16 %v2278, %v2277
  %2295 = vmatprep.subr.bf16.mxu0 0
  %2296 = vmatpush1.bf16.msra.mxu0 %v1346
  %2297 = vmatprep.subr.bf16.mxu0 0
  %2298 = vmatpush1.bf16.msra.mxu0 %v1345
  %2299 = vmatprep.subr.bf16.mxu0 0
  %2300 = vmatpush1.bf16.msra.mxu0 %v1344
  %2301 = vmatprep.subr.bf16.mxu0 0
  %2302 = vmatpush1.bf16.msra.mxu0 %v1343
  %2303 = vmatprep.subr.bf16.mxu0 0
  %2304 = vmatpush1.bf16.msra.mxu0 %v1342
  %2305 = vmatprep.subr.bf16.mxu0 0
  %2306 = vmatpush1.bf16.msra.mxu0 %v1341
  %2307 = vmatprep.subr.bf16.mxu0 0
  %2308 = vmatpush1.bf16.msra.mxu0 %v1340
  %2309 = vmatprep.subr.bf16.mxu0 0
  %2310 = vmatpush1.bf16.msra.mxu0 %v1339
  %2311 = vmatprep.subr.bf16.mxu0 0
  %2312 = vmatpush2.bf16.msra.mxu0 0
  %2313 = vmatprep.subr.bf16.mxu0 0
  %2314 = vmatpush2.bf16.msra.mxu0 0
  %2315 = vmatprep.subr.bf16.mxu0 0
  %2316 = vmatpush2.bf16.msra.mxu0 0
  %2317 = vmatprep.subr.bf16.mxu0 0
  %2318 = vmatpush2.bf16.msra.mxu0 0
  %2319 = vmatprep.subr.bf16.mxu0 0
  %2320 = vmatpush2.bf16.msra.mxu0 0
  %2321 = vmatprep.subr.bf16.mxu0 0
  %2322 = vmatpush2.bf16.msra.mxu0 0
  %2323 = vmatprep.subr.bf16.mxu0 0
  %2324 = vmatpush2.bf16.msra.mxu0 0
  %2325 = vmatprep.subr.bf16.mxu0 0
  %2326 = vmatpush2.bf16.msra.mxu0 0
  %2327 = vmatprep.mubr.bf16.mxu0 0
  %2328 = vmatmul.mubr.bf16.gmra.mxu0 %v2279
  %v2329 = vpop.f32.mrf.mxu0
  %v2330 = vadd.f32 %v2185, %v2329
  %v2331 = vpop.f32.mrf.mxu0
  %v2332 = vpop.f32.mrf.mxu0
  %v2333 = vadd.f32 %v2188, %v2332
  %v2334 = vpop.f32.mrf.mxu0
  %2335 = vmatprep.mubr.bf16.mxu0 0
  %2336 = vmatmul.mubr.bf16.gmra.mxu0 %v2280
  %v2337 = vpop.f32.mrf.mxu0
  %v2338 = vadd.f32 %v2193, %v2337
  %v2339 = vpop.f32.mrf.mxu0
  %v2340 = vpop.f32.mrf.mxu0
  %v2341 = vadd.f32 %v2196, %v2340
  %v2342 = vpop.f32.mrf.mxu0
  %2343 = vmatprep.mubr.bf16.mxu0 0
  %2344 = vmatmul.mubr.bf16.gmra.mxu0 %v2281
  %v2345 = vpop.f32.mrf.mxu0
  %v2346 = vadd.f32 %v2201, %v2345
  %v2347 = vpop.f32.mrf.mxu0
  %v2348 = vpop.f32.mrf.mxu0
  %v2349 = vadd.f32 %v2204, %v2348
  %v2350 = vpop.f32.mrf.mxu0
  %2351 = vmatprep.mubr.bf16.mxu0 0
  %2352 = vmatmul.mubr.bf16.gmra.mxu0 %v2282
  %v2353 = vpop.f32.mrf.mxu0
  %v2354 = vadd.f32 %v2209, %v2353
  %v2355 = vpop.f32.mrf.mxu0
  %v2356 = vpop.f32.mrf.mxu0
  %v2357 = vadd.f32 %v2212, %v2356
  %v2358 = vpop.f32.mrf.mxu0
  %2359 = vmatprep.mubr.bf16.mxu0 0
  %2360 = vmatmul.mubr.bf16.gmra.mxu0 %v2283
  %v2361 = vpop.f32.mrf.mxu0
  %v2362 = vadd.f32 %v2217, %v2361
  %v2363 = vpop.f32.mrf.mxu0
  %v2364 = vpop.f32.mrf.mxu0
  %v2365 = vadd.f32 %v2220, %v2364
  %v2366 = vpop.f32.mrf.mxu0
  %2367 = vmatprep.mubr.bf16.mxu0 0
  %2368 = vmatmul.mubr.bf16.gmra.mxu0 %v2284
  %v2369 = vpop.f32.mrf.mxu0
  %v2370 = vadd.f32 %v2225, %v2369
  %v2371 = vpop.f32.mrf.mxu0
  %v2372 = vpop.f32.mrf.mxu0
  %v2373 = vadd.f32 %v2228, %v2372
  %v2374 = vpop.f32.mrf.mxu0
  %2375 = vmatprep.mubr.bf16.mxu0 0
  %2376 = vmatmul.mubr.bf16.gmra.mxu0 %v2285
  %v2377 = vpop.f32.mrf.mxu0
  %v2378 = vadd.f32 %v2233, %v2377
  %v2379 = vpop.f32.mrf.mxu0
  %v2380 = vpop.f32.mrf.mxu0
  %v2381 = vadd.f32 %v2236, %v2380
  %v2382 = vpop.f32.mrf.mxu0
  %2383 = vmatprep.mubr.bf16.mxu0 0
  %2384 = vmatmul.mubr.bf16.gmra.mxu0 %v2286
  %v2385 = vpop.f32.mrf.mxu0
  %v2386 = vadd.f32 %v2241, %v2385
  %v2387 = vpop.f32.mrf.mxu0
  %v2388 = vpop.f32.mrf.mxu0
  %v2389 = vadd.f32 %v2244, %v2388
  %v2390 = vpop.f32.mrf.mxu0
  %2391 = vdwg.mxu0
  %v2392 = vld [vmem:[%s4] sm:$0x1]
  %v2394 = vlaneseq
  %v2395 = vshrl.u32 %v2394, 7
  %v2396 = vsub.s32 0, %v2395
  %v2397 = vrot.slane %v2392, %v2396
  %v2399 = vadd.f32 %v2330, %v2397
  %v2400 = vadd.f32 %v2333, %v2397
  %v2401 = vadd.f32 %v2338, %v2397
  %v2402 = vadd.f32 %v2341, %v2397
  %v2403 = vadd.f32 %v2346, %v2397
  %v2404 = vadd.f32 %v2349, %v2397
  %v2405 = vadd.f32 %v2354, %v2397
  %v2406 = vadd.f32 %v2357, %v2397
  %v2407 = vadd.f32 %v2362, %v2397
  %v2408 = vadd.f32 %v2365, %v2397
  %v2409 = vadd.f32 %v2370, %v2397
  %v2410 = vadd.f32 %v2373, %v2397
  %v2411 = vadd.f32 %v2378, %v2397
  %v2412 = vadd.f32 %v2381, %v2397
  %v2413 = vadd.f32 %v2386, %v2397
  %v2414 = vadd.f32 %v2389, %v2397
  %v2415 = vmax.f32 %v2399, 0.0
  %v2416 = vmax.f32 %v2400, 0.0
  %v2417 = vmax.f32 %v2401, 0.0
  %v2418 = vmax.f32 %v2402, 0.0
  %v2419 = vmax.f32 %v2403, 0.0
  %v2420 = vmax.f32 %v2404, 0.0
  %v2421 = vmax.f32 %v2405, 0.0
  %v2422 = vmax.f32 %v2406, 0.0
  %v2423 = vmax.f32 %v2407, 0.0
  %v2424 = vmax.f32 %v2408, 0.0
  %v2425 = vmax.f32 %v2409, 0.0
  %v2426 = vmax.f32 %v2410, 0.0
  %v2427 = vmax.f32 %v2411, 0.0
  %v2428 = vmax.f32 %v2412, 0.0
  %v2429 = vmax.f32 %v2413, 0.0
  %v2430 = vmax.f32 %v2414, 0.0
  %v2431 = vpack.c.bf16 %v2416, %v2415
  %v2432 = vpack.c.bf16 %v2418, %v2417
  %v2433 = vpack.c.bf16 %v2420, %v2419
  %v2434 = vpack.c.bf16 %v2422, %v2421
  %v2435 = vpack.c.bf16 %v2424, %v2423
  %v2436 = vpack.c.bf16 %v2426, %v2425
  %v2437 = vpack.c.bf16 %v2428, %v2427
  %v2438 = vpack.c.bf16 %v2430, %v2429
  %2439 = vmatprep.subr.bf16.mxu0 0
  %2440 = vmatpush1.bf16.msra.mxu0 %v2438
  %2441 = vmatprep.subr.bf16.mxu0 0
  %2442 = vmatpush1.bf16.msra.mxu0 %v2437
  %2443 = vmatprep.subr.bf16.mxu0 0
  %2444 = vmatpush1.bf16.msra.mxu0 %v2436
  %2445 = vmatprep.subr.bf16.mxu0 0
  %2446 = vmatpush1.bf16.msra.mxu0 %v2435
  %2447 = vmatprep.subr.bf16.mxu0 0
  %2448 = vmatpush1.bf16.msra.mxu0 %v2434
  %2449 = vmatprep.subr.bf16.mxu0 0
  %2450 = vmatpush1.bf16.msra.mxu0 %v2433
  %2451 = vmatprep.subr.bf16.mxu0 0
  %2452 = vmatpush1.bf16.msra.mxu0 %v2432
  %2453 = vmatprep.subr.bf16.mxu0 0
  %2454 = vmatpush1.bf16.msra.mxu0 %v2431
  %2455 = vmatprep.subr.bf16.mxu0 0
  %2456 = vmatpush2.bf16.msra.mxu0 0
  %2457 = vmatprep.subr.bf16.mxu0 0
  %2458 = vmatpush2.bf16.msra.mxu0 0
  %2459 = vmatprep.subr.bf16.mxu0 0
  %2460 = vmatpush2.bf16.msra.mxu0 0
  %2461 = vmatprep.subr.bf16.mxu0 0
  %2462 = vmatpush2.bf16.msra.mxu0 0
  %2463 = vmatprep.subr.bf16.mxu0 0
  %2464 = vmatpush2.bf16.msra.mxu0 0
  %2465 = vmatprep.subr.bf16.mxu0 0
  %2466 = vmatpush2.bf16.msra.mxu0 0
  %2467 = vmatprep.subr.bf16.mxu0 0
  %2468 = vmatpush2.bf16.msra.mxu0 0
  %2469 = vmatprep.subr.bf16.mxu0 0
  %2470 = vmatpush2.bf16.msra.mxu0 0
  %2471 = vmatprep.mubr.bf16.mxu0 0
  %2472 = vmatmul.mubr.bf16.gmra.mxu0 %v2279
  %v2473 = vpop.f32.mrf.mxu0
  %v2474 = vadd.f32 0.0, %v2473
  %v2475 = vpop.f32.mrf.mxu0
  %v2476 = vpop.f32.mrf.mxu0
  %v2477 = vadd.f32 0.0, %v2476
  %v2478 = vpop.f32.mrf.mxu0
  %2479 = vmatprep.mubr.bf16.mxu0 0
  %2480 = vmatmul.mubr.bf16.gmra.mxu0 %v2280
  %v2481 = vpop.f32.mrf.mxu0
  %v2482 = vadd.f32 0.0, %v2481
  %v2483 = vpop.f32.mrf.mxu0
  %v2484 = vpop.f32.mrf.mxu0
  %v2485 = vadd.f32 0.0, %v2484
  %v2486 = vpop.f32.mrf.mxu0
  %2487 = vmatprep.mubr.bf16.mxu0 0
  %2488 = vmatmul.mubr.bf16.gmra.mxu0 %v2281
  %v2489 = vpop.f32.mrf.mxu0
  %v2490 = vadd.f32 0.0, %v2489
  %v2491 = vpop.f32.mrf.mxu0
  %v2492 = vpop.f32.mrf.mxu0
  %v2493 = vadd.f32 0.0, %v2492
  %v2494 = vpop.f32.mrf.mxu0
  %2495 = vmatprep.mubr.bf16.mxu0 0
  %2496 = vmatmul.mubr.bf16.gmra.mxu0 %v2282
  %v2497 = vpop.f32.mrf.mxu0
  %v2498 = vadd.f32 0.0, %v2497
  %v2499 = vpop.f32.mrf.mxu0
  %v2500 = vpop.f32.mrf.mxu0
  %v2501 = vadd.f32 0.0, %v2500
  %v2502 = vpop.f32.mrf.mxu0
  %2503 = vmatprep.mubr.bf16.mxu0 0
  %2504 = vmatmul.mubr.bf16.gmra.mxu0 %v2283
  %v2505 = vpop.f32.mrf.mxu0
  %v2506 = vadd.f32 0.0, %v2505
  %v2507 = vpop.f32.mrf.mxu0
  %v2508 = vpop.f32.mrf.mxu0
  %v2509 = vadd.f32 0.0, %v2508
  %v2510 = vpop.f32.mrf.mxu0
  %2511 = vmatprep.mubr.bf16.mxu0 0
  %2512 = vmatmul.mubr.bf16.gmra.mxu0 %v2284
  %v2513 = vpop.f32.mrf.mxu0
  %v2514 = vadd.f32 0.0, %v2513
  %v2515 = vpop.f32.mrf.mxu0
  %v2516 = vpop.f32.mrf.mxu0
  %v2517 = vadd.f32 0.0, %v2516
  %v2518 = vpop.f32.mrf.mxu0
  %2519 = vmatprep.mubr.bf16.mxu0 0
  %2520 = vmatmul.mubr.bf16.gmra.mxu0 %v2285
  %v2521 = vpop.f32.mrf.mxu0
  %v2522 = vadd.f32 0.0, %v2521
  %v2523 = vpop.f32.mrf.mxu0
  %v2524 = vpop.f32.mrf.mxu0
  %v2525 = vadd.f32 0.0, %v2524
  %v2526 = vpop.f32.mrf.mxu0
  %2527 = vmatprep.mubr.bf16.mxu0 0
  %2528 = vmatmul.mubr.bf16.gmra.mxu0 %v2286
  %v2529 = vpop.f32.mrf.mxu0
  %v2530 = vadd.f32 0.0, %v2529
  %v2531 = vpop.f32.mrf.mxu0
  %v2532 = vpop.f32.mrf.mxu0
  %v2533 = vadd.f32 0.0, %v2532
  %v2534 = vpop.f32.mrf.mxu0
  %2535 = vdwg.mxu0
  %v2536 = vpack.c.bf16 %v2477, %v2474
  %v2537 = vpack.c.bf16 %v2485, %v2482
  %v2538 = vpack.c.bf16 %v2493, %v2490
  %v2539 = vpack.c.bf16 %v2501, %v2498
  %v2540 = vpack.c.bf16 %v2509, %v2506
  %v2541 = vpack.c.bf16 %v2517, %v2514
  %v2542 = vpack.c.bf16 %v2525, %v2522
  %v2543 = vpack.c.bf16 %v2533, %v2530
  %v2544 = vld [vmem:[%s5] sm:$0xf]
  %v2545 = vld [vmem:[%s5 + $0x4] sm:$0xf]
  %v2546 = vld [vmem:[%s5 + $0x8] sm:$0xf]
  %v2547 = vld [vmem:[%s5 + $0xc] sm:$0xf]
  %v2548 = vld [vmem:[%s5 + $0x10] sm:$0xf]
  %v2549 = vld [vmem:[%s5 + $0x14] sm:$0xf]
  %v2550 = vld [vmem:[%s5 + $0x18] sm:$0xf]
  %v2551 = vld [vmem:[%s5 + $0x1c] sm:$0xf]
  %v2552 = vld [vmem:[%s6] sm:$0xf]
  %v2553 = vld [vmem:[%s6 + $0x4] sm:$0xf]
  %v2554 = vld [vmem:[%s6 + $0x8] sm:$0xf]
  %v2555 = vld [vmem:[%s6 + $0xc] sm:$0xf]
  %v2556 = vld [vmem:[%s6 + $0x10] sm:$0xf]
  %v2557 = vld [vmem:[%s6 + $0x14] sm:$0xf]
  %v2558 = vld [vmem:[%s6 + $0x18] sm:$0xf]
  %v2559 = vld [vmem:[%s6 + $0x1c] sm:$0xf]
  %v2568 = vunpack.c.l.b16 %v2552
  %v2569 = vunpack.c.l.b16 %v2553
  %v2570 = vunpack.c.l.b16 %v2554
  %v2571 = vunpack.c.l.b16 %v2555
  %v2572 = vunpack.c.l.b16 %v2556
  %v2573 = vunpack.c.l.b16 %v2557
  %v2574 = vunpack.c.l.b16 %v2558
  %v2575 = vunpack.c.l.b16 %v2559
  %v2576 = vpack.c.b16 %v2569, %v2568
  %v2577 = vpack.c.b16 %v2571, %v2570
  %v2578 = vpack.c.b16 %v2573, %v2572
  %v2579 = vpack.c.b16 %v2575, %v2574
  %vm2584 = vcmask 523264
  %v2586 = vsel %vm2584, %v2431, 0
  %v2589 = vsel %vm2584, %v2432, 0
  %v2592 = vsel %vm2584, %v2433, 0
  %v2595 = vsel %vm2584, %v2434, 0
  %v2598 = vsel %vm2584, %v2435, 0
  %v2601 = vsel %vm2584, %v2436, 0
  %v2604 = vsel %vm2584, %v2437, 0
  %v2607 = vsel %vm2584, %v2438, 0
  %2609 = vmatprep.subr.bf16.mxu0 0
  %2610 = vmatpush1.bf16.msra.mxu0 0
  %2611 = vmatprep.subr.bf16.mxu0 0
  %2612 = vmatpush1.bf16.msra.mxu0 0
  %2613 = vmatprep.subr.bf16.mxu0 0
  %2614 = vmatpush1.bf16.msra.mxu0 0
  %2615 = vmatprep.subr.bf16.mxu0 0
  %2616 = vmatpush1.bf16.msra.mxu0 0
  %2617 = vmatprep.subr.bf16.mxu0 0
  %2618 = vmatpush1.bf16.msra.mxu0 %v2579
  %2619 = vmatprep.subr.bf16.mxu0 0
  %2620 = vmatpush1.bf16.msra.mxu0 %v2578
  %2621 = vmatprep.subr.bf16.mxu0 0
  %2622 = vmatpush1.bf16.msra.mxu0 %v2577
  %2623 = vmatprep.subr.bf16.mxu0 0
  %2624 = vmatpush1.bf16.msra.mxu0 %v2576
  %2625 = vmatprep.subr.bf16.mxu0 0
  %2626 = vmatpush2.bf16.msra.mxu0 0
  %2627 = vmatprep.subr.bf16.mxu0 0
  %2628 = vmatpush2.bf16.msra.mxu0 0
  %2629 = vmatprep.subr.bf16.mxu0 0
  %2630 = vmatpush2.bf16.msra.mxu0 0
  %2631 = vmatprep.subr.bf16.mxu0 0
  %2632 = vmatpush2.bf16.msra.mxu0 0
  %2633 = vmatprep.subr.bf16.mxu0 0
  %2634 = vmatpush2.bf16.msra.mxu0 0
  %2635 = vmatprep.subr.bf16.mxu0 0
  %2636 = vmatpush2.bf16.msra.mxu0 0
  %2637 = vmatprep.subr.bf16.mxu0 0
  %2638 = vmatpush2.bf16.msra.mxu0 0
  %2639 = vmatprep.subr.bf16.mxu0 0
  %2640 = vmatpush2.bf16.msra.mxu0 0
  %2641 = vmatprep.mubr.bf16.mxu0 0
  %2642 = vmatmul.mubr.bf16.gmra.mxu0 %v2586
  %v2643 = vpop.f32.mrf.mxu0
  %v2644 = vadd.f32 0.0, %v2643
  %v2645 = vpop.f32.mrf.mxu0
  %v2646 = vpop.f32.mrf.mxu0
  %v2647 = vadd.f32 0.0, %v2646
  %v2648 = vpop.f32.mrf.mxu0
  %2649 = vmatprep.mubr.bf16.mxu0 0
  %2650 = vmatmul.mubr.bf16.gmra.mxu0 %v2589
  %v2651 = vpop.f32.mrf.mxu0
  %v2652 = vadd.f32 0.0, %v2651
  %v2653 = vpop.f32.mrf.mxu0
  %v2654 = vpop.f32.mrf.mxu0
  %v2655 = vadd.f32 0.0, %v2654
  %v2656 = vpop.f32.mrf.mxu0
  %2657 = vmatprep.mubr.bf16.mxu0 0
  %2658 = vmatmul.mubr.bf16.gmra.mxu0 %v2592
  %v2659 = vpop.f32.mrf.mxu0
  %v2660 = vadd.f32 0.0, %v2659
  %v2661 = vpop.f32.mrf.mxu0
  %v2662 = vpop.f32.mrf.mxu0
  %v2663 = vadd.f32 0.0, %v2662
  %v2664 = vpop.f32.mrf.mxu0
  %2665 = vmatprep.mubr.bf16.mxu0 0
  %2666 = vmatmul.mubr.bf16.gmra.mxu0 %v2595
  %v2667 = vpop.f32.mrf.mxu0
  %v2668 = vadd.f32 0.0, %v2667
  %v2669 = vpop.f32.mrf.mxu0
  %v2670 = vpop.f32.mrf.mxu0
  %v2671 = vadd.f32 0.0, %v2670
  %v2672 = vpop.f32.mrf.mxu0
  %2673 = vmatprep.mubr.bf16.mxu0 0
  %2674 = vmatmul.mubr.bf16.gmra.mxu0 %v2598
  %v2675 = vpop.f32.mrf.mxu0
  %v2676 = vadd.f32 0.0, %v2675
  %v2677 = vpop.f32.mrf.mxu0
  %v2678 = vpop.f32.mrf.mxu0
  %v2679 = vadd.f32 0.0, %v2678
  %v2680 = vpop.f32.mrf.mxu0
  %2681 = vmatprep.mubr.bf16.mxu0 0
  %2682 = vmatmul.mubr.bf16.gmra.mxu0 %v2601
  %v2683 = vpop.f32.mrf.mxu0
  %v2684 = vadd.f32 0.0, %v2683
  %v2685 = vpop.f32.mrf.mxu0
  %v2686 = vpop.f32.mrf.mxu0
  %v2687 = vadd.f32 0.0, %v2686
  %v2688 = vpop.f32.mrf.mxu0
  %2689 = vmatprep.mubr.bf16.mxu0 0
  %2690 = vmatmul.mubr.bf16.gmra.mxu0 %v2604
  %v2691 = vpop.f32.mrf.mxu0
  %v2692 = vadd.f32 0.0, %v2691
  %v2693 = vpop.f32.mrf.mxu0
  %v2694 = vpop.f32.mrf.mxu0
  %v2695 = vadd.f32 0.0, %v2694
  %v2696 = vpop.f32.mrf.mxu0
  %2697 = vmatprep.mubr.bf16.mxu0 0
  %2698 = vmatmul.mubr.bf16.gmra.mxu0 %v2607
  %v2699 = vpop.f32.mrf.mxu0
  %v2700 = vadd.f32 0.0, %v2699
  %v2701 = vpop.f32.mrf.mxu0
  %v2702 = vpop.f32.mrf.mxu0
  %v2703 = vadd.f32 0.0, %v2702
  %v2704 = vpop.f32.mrf.mxu0
  %2705 = vdwg.mxu0
  %v2714 = vunpack.c.l.b16 %v2544
  %v2715 = vunpack.c.l.b16 %v2545
  %v2716 = vunpack.c.l.b16 %v2546
  %v2717 = vunpack.c.l.b16 %v2547
  %v2718 = vunpack.c.l.b16 %v2548
  %v2719 = vunpack.c.l.b16 %v2549
  %v2720 = vunpack.c.l.b16 %v2550
  %v2721 = vunpack.c.l.b16 %v2551
  %v2722 = vpack.c.b16 %v2715, %v2714
  %v2723 = vpack.c.b16 %v2717, %v2716
  %v2724 = vpack.c.b16 %v2719, %v2718
  %v2725 = vpack.c.b16 %v2721, %v2720
  %v2731 = vsel %vm2584, %v2536, 0
  %v2734 = vsel %vm2584, %v2537, 0
  %v2737 = vsel %vm2584, %v2538, 0
  %v2740 = vsel %vm2584, %v2539, 0
  %v2743 = vsel %vm2584, %v2540, 0
  %v2746 = vsel %vm2584, %v2541, 0
  %v2749 = vsel %vm2584, %v2542, 0
  %v2752 = vsel %vm2584, %v2543, 0
  %2754 = vmatprep.subr.bf16.mxu0 0
  %2755 = vmatpush1.bf16.msra.mxu0 0
  %2756 = vmatprep.subr.bf16.mxu0 0
  %2757 = vmatpush1.bf16.msra.mxu0 0
  %2758 = vmatprep.subr.bf16.mxu0 0
  %2759 = vmatpush1.bf16.msra.mxu0 0
  %2760 = vmatprep.subr.bf16.mxu0 0
  %2761 = vmatpush1.bf16.msra.mxu0 0
  %2762 = vmatprep.subr.bf16.mxu0 0
  %2763 = vmatpush1.bf16.msra.mxu0 %v2725
  %2764 = vmatprep.subr.bf16.mxu0 0
  %2765 = vmatpush1.bf16.msra.mxu0 %v2724
  %2766 = vmatprep.subr.bf16.mxu0 0
  %2767 = vmatpush1.bf16.msra.mxu0 %v2723
  %2768 = vmatprep.subr.bf16.mxu0 0
  %2769 = vmatpush1.bf16.msra.mxu0 %v2722
  %2770 = vmatprep.subr.bf16.mxu0 0
  %2771 = vmatpush2.bf16.msra.mxu0 0
  %2772 = vmatprep.subr.bf16.mxu0 0
  %2773 = vmatpush2.bf16.msra.mxu0 0
  %2774 = vmatprep.subr.bf16.mxu0 0
  %2775 = vmatpush2.bf16.msra.mxu0 0
  %2776 = vmatprep.subr.bf16.mxu0 0
  %2777 = vmatpush2.bf16.msra.mxu0 0
  %2778 = vmatprep.subr.bf16.mxu0 0
  %2779 = vmatpush2.bf16.msra.mxu0 0
  %2780 = vmatprep.subr.bf16.mxu0 0
  %2781 = vmatpush2.bf16.msra.mxu0 0
  %2782 = vmatprep.subr.bf16.mxu0 0
  %2783 = vmatpush2.bf16.msra.mxu0 0
  %2784 = vmatprep.subr.bf16.mxu0 0
  %2785 = vmatpush2.bf16.msra.mxu0 0
  %2786 = vmatprep.mubr.bf16.mxu0 0
  %2787 = vmatmul.mubr.bf16.gmra.mxu0 %v2731
  %v2788 = vpop.f32.mrf.mxu0
  %v2789 = vadd.f32 %v2644, %v2788
  %v2790 = vpop.f32.mrf.mxu0
  %v2791 = vpop.f32.mrf.mxu0
  %v2792 = vadd.f32 %v2647, %v2791
  %v2793 = vpop.f32.mrf.mxu0
  %2794 = vmatprep.mubr.bf16.mxu0 0
  %2795 = vmatmul.mubr.bf16.gmra.mxu0 %v2734
  %v2796 = vpop.f32.mrf.mxu0
  %v2797 = vadd.f32 %v2652, %v2796
  %v2798 = vpop.f32.mrf.mxu0
  %v2799 = vpop.f32.mrf.mxu0
  %v2800 = vadd.f32 %v2655, %v2799
  %v2801 = vpop.f32.mrf.mxu0
  %2802 = vmatprep.mubr.bf16.mxu0 0
  %2803 = vmatmul.mubr.bf16.gmra.mxu0 %v2737
  %v2804 = vpop.f32.mrf.mxu0
  %v2805 = vadd.f32 %v2660, %v2804
  %v2806 = vpop.f32.mrf.mxu0
  %v2807 = vpop.f32.mrf.mxu0
  %v2808 = vadd.f32 %v2663, %v2807
  %v2809 = vpop.f32.mrf.mxu0
  %2810 = vmatprep.mubr.bf16.mxu0 0
  %2811 = vmatmul.mubr.bf16.gmra.mxu0 %v2740
  %v2812 = vpop.f32.mrf.mxu0
  %v2813 = vadd.f32 %v2668, %v2812
  %v2814 = vpop.f32.mrf.mxu0
  %v2815 = vpop.f32.mrf.mxu0
  %v2816 = vadd.f32 %v2671, %v2815
  %v2817 = vpop.f32.mrf.mxu0
  %2818 = vmatprep.mubr.bf16.mxu0 0
  %2819 = vmatmul.mubr.bf16.gmra.mxu0 %v2743
  %v2820 = vpop.f32.mrf.mxu0
  %v2821 = vadd.f32 %v2676, %v2820
  %v2822 = vpop.f32.mrf.mxu0
  %v2823 = vpop.f32.mrf.mxu0
  %v2824 = vadd.f32 %v2679, %v2823
  %v2825 = vpop.f32.mrf.mxu0
  %2826 = vmatprep.mubr.bf16.mxu0 0
  %2827 = vmatmul.mubr.bf16.gmra.mxu0 %v2746
  %v2828 = vpop.f32.mrf.mxu0
  %v2829 = vadd.f32 %v2684, %v2828
  %v2830 = vpop.f32.mrf.mxu0
  %v2831 = vpop.f32.mrf.mxu0
  %v2832 = vadd.f32 %v2687, %v2831
  %v2833 = vpop.f32.mrf.mxu0
  %2834 = vmatprep.mubr.bf16.mxu0 0
  %2835 = vmatmul.mubr.bf16.gmra.mxu0 %v2749
  %v2836 = vpop.f32.mrf.mxu0
  %v2837 = vadd.f32 %v2692, %v2836
  %v2838 = vpop.f32.mrf.mxu0
  %v2839 = vpop.f32.mrf.mxu0
  %v2840 = vadd.f32 %v2695, %v2839
  %v2841 = vpop.f32.mrf.mxu0
  %2842 = vmatprep.mubr.bf16.mxu0 0
  %2843 = vmatmul.mubr.bf16.gmra.mxu0 %v2752
  %v2844 = vpop.f32.mrf.mxu0
  %v2845 = vadd.f32 %v2700, %v2844
  %v2846 = vpop.f32.mrf.mxu0
  %v2847 = vpop.f32.mrf.mxu0
  %v2848 = vadd.f32 %v2703, %v2847
  %v2849 = vpop.f32.mrf.mxu0
  %2850 = vdwg.mxu0
  %v2851 = vld [vmem:[%s7] sm:$0x1]
  %v2853 = vlaneseq
  %v2854 = vshrl.u32 %v2853, 7
  %v2855 = vsub.s32 0, %v2854
  %v2856 = vrot.slane %v2851, %v2855
  %v2858 = vadd.f32 %v2789, %v2856
  %v2859 = vadd.f32 %v2792, %v2856
  %v2860 = vadd.f32 %v2797, %v2856
  %v2861 = vadd.f32 %v2800, %v2856
  %v2862 = vadd.f32 %v2805, %v2856
  %v2863 = vadd.f32 %v2808, %v2856
  %v2864 = vadd.f32 %v2813, %v2856
  %v2865 = vadd.f32 %v2816, %v2856
  %v2866 = vadd.f32 %v2821, %v2856
  %v2867 = vadd.f32 %v2824, %v2856
  %v2868 = vadd.f32 %v2829, %v2856
  %v2869 = vadd.f32 %v2832, %v2856
  %v2870 = vadd.f32 %v2837, %v2856
  %v2871 = vadd.f32 %v2840, %v2856
  %v2872 = vadd.f32 %v2845, %v2856
  %v2873 = vadd.f32 %v2848, %v2856
  %v2874 = vmax.f32 %v2858, 0.0
  %v2875 = vmax.f32 %v2859, 0.0
  %v2876 = vmax.f32 %v2860, 0.0
  %v2877 = vmax.f32 %v2861, 0.0
  %v2878 = vmax.f32 %v2862, 0.0
  %v2879 = vmax.f32 %v2863, 0.0
  %v2880 = vmax.f32 %v2864, 0.0
  %v2881 = vmax.f32 %v2865, 0.0
  %v2882 = vmax.f32 %v2866, 0.0
  %v2883 = vmax.f32 %v2867, 0.0
  %v2884 = vmax.f32 %v2868, 0.0
  %v2885 = vmax.f32 %v2869, 0.0
  %v2886 = vmax.f32 %v2870, 0.0
  %v2887 = vmax.f32 %v2871, 0.0
  %v2888 = vmax.f32 %v2872, 0.0
  %v2889 = vmax.f32 %v2873, 0.0
  %v2890 = vpack.c.bf16 %v2875, %v2874
  %v2891 = vpack.c.bf16 %v2877, %v2876
  %v2892 = vpack.c.bf16 %v2879, %v2878
  %v2893 = vpack.c.bf16 %v2881, %v2880
  %v2894 = vpack.c.bf16 %v2883, %v2882
  %v2895 = vpack.c.bf16 %v2885, %v2884
  %v2896 = vpack.c.bf16 %v2887, %v2886
  %v2897 = vpack.c.bf16 %v2889, %v2888
  %v2898 = vld [vmem:[%s8] sm:$0xf]
  %v2899 = vld [vmem:[%s8 + $0x4] sm:$0xf]
  %v2900 = vld [vmem:[%s8 + $0x8] sm:$0xf]
  %v2901 = vld [vmem:[%s8 + $0xc] sm:$0xf]
  %v2902 = vld [vmem:[%s8 + $0x10] sm:$0xf]
  %v2903 = vld [vmem:[%s8 + $0x14] sm:$0xf]
  %v2904 = vld [vmem:[%s8 + $0x18] sm:$0xf]
  %v2905 = vld [vmem:[%s8 + $0x1c] sm:$0xf]
  %v2906 = vld [vmem:[%s8 + $0x20] sm:$0xf]
  %v2907 = vld [vmem:[%s8 + $0x24] sm:$0xf]
  %v2908 = vld [vmem:[%s8 + $0x28] sm:$0xf]
  %v2909 = vld [vmem:[%s8 + $0x2c] sm:$0xf]
  %v2910 = vld [vmem:[%s8 + $0x30] sm:$0xf]
  %v2911 = vld [vmem:[%s8 + $0x34] sm:$0xf]
  %v2912 = vld [vmem:[%s8 + $0x38] sm:$0xf]
  %v2913 = vld [vmem:[%s8 + $0x3c] sm:$0xf]
  %v2930 = vunpack.c.l.b16 %v2898
  %v2931 = vunpack.c.l.b16 %v2899
  %v2932 = vunpack.c.l.b16 %v2900
  %v2933 = vunpack.c.l.b16 %v2901
  %v2934 = vunpack.c.l.b16 %v2902
  %v2935 = vunpack.c.l.b16 %v2903
  %v2936 = vunpack.c.l.b16 %v2904
  %v2937 = vunpack.c.l.b16 %v2905
  %v2938 = vunpack.c.l.b16 %v2906
  %v2939 = vunpack.c.l.b16 %v2907
  %v2940 = vunpack.c.l.b16 %v2908
  %v2941 = vunpack.c.l.b16 %v2909
  %v2942 = vunpack.c.l.b16 %v2910
  %v2943 = vunpack.c.l.b16 %v2911
  %v2944 = vunpack.c.l.b16 %v2912
  %v2945 = vunpack.c.l.b16 %v2913
  %v2946 = vpack.c.b16 %v2931, %v2930
  %v2947 = vpack.c.b16 %v2933, %v2932
  %v2948 = vpack.c.b16 %v2935, %v2934
  %v2949 = vpack.c.b16 %v2937, %v2936
  %v2950 = vpack.c.b16 %v2939, %v2938
  %v2951 = vpack.c.b16 %v2941, %v2940
  %v2952 = vpack.c.b16 %v2943, %v2942
  %v2953 = vpack.c.b16 %v2945, %v2944
  %2962 = vmatprep.subr.bf16.mxu0 0
  %2963 = vmatpush1.bf16.msra.mxu0 %v2953
  %2964 = vmatprep.subr.bf16.mxu0 0
  %2965 = vmatpush1.bf16.msra.mxu0 %v2952
  %2966 = vmatprep.subr.bf16.mxu0 0
  %2967 = vmatpush1.bf16.msra.mxu0 %v2951
  %2968 = vmatprep.subr.bf16.mxu0 0
  %2969 = vmatpush1.bf16.msra.mxu0 %v2950
  %2970 = vmatprep.subr.bf16.mxu0 0
  %2971 = vmatpush1.bf16.msra.mxu0 %v2949
  %2972 = vmatprep.subr.bf16.mxu0 0
  %2973 = vmatpush1.bf16.msra.mxu0 %v2948
  %2974 = vmatprep.subr.bf16.mxu0 0
  %2975 = vmatpush1.bf16.msra.mxu0 %v2947
  %2976 = vmatprep.subr.bf16.mxu0 0
  %2977 = vmatpush1.bf16.msra.mxu0 %v2946
  %2978 = vmatprep.subr.bf16.mxu0 0
  %2979 = vmatpush2.bf16.msra.mxu0 0
  %2980 = vmatprep.subr.bf16.mxu0 0
  %2981 = vmatpush2.bf16.msra.mxu0 0
  %2982 = vmatprep.subr.bf16.mxu0 0
  %2983 = vmatpush2.bf16.msra.mxu0 0
  %2984 = vmatprep.subr.bf16.mxu0 0
  %2985 = vmatpush2.bf16.msra.mxu0 0
  %2986 = vmatprep.subr.bf16.mxu0 0
  %2987 = vmatpush2.bf16.msra.mxu0 0
  %2988 = vmatprep.subr.bf16.mxu0 0
  %2989 = vmatpush2.bf16.msra.mxu0 0
  %2990 = vmatprep.subr.bf16.mxu0 0
  %2991 = vmatpush2.bf16.msra.mxu0 0
  %2992 = vmatprep.subr.bf16.mxu0 0
  %2993 = vmatpush2.bf16.msra.mxu0 0
  %2994 = vmatprep.mubr.bf16.mxu0 0
  %2995 = vmatmul.mubr.bf16.gmra.mxu0 %v2890
  %v2996 = vpop.f32.mrf.mxu0
  %v2997 = vadd.f32 0.0, %v2996
  %v2998 = vpop.f32.mrf.mxu0
  %v2999 = vpop.f32.mrf.mxu0
  %v3000 = vadd.f32 0.0, %v2999
  %v3001 = vpop.f32.mrf.mxu0
  %3002 = vmatprep.mubr.bf16.mxu0 0
  %3003 = vmatmul.mubr.bf16.gmra.mxu0 %v2891
  %v3004 = vpop.f32.mrf.mxu0
  %v3005 = vadd.f32 0.0, %v3004
  %v3006 = vpop.f32.mrf.mxu0
  %v3007 = vpop.f32.mrf.mxu0
  %v3008 = vadd.f32 0.0, %v3007
  %v3009 = vpop.f32.mrf.mxu0
  %3010 = vmatprep.mubr.bf16.mxu0 0
  %3011 = vmatmul.mubr.bf16.gmra.mxu0 %v2892
  %v3012 = vpop.f32.mrf.mxu0
  %v3013 = vadd.f32 0.0, %v3012
  %v3014 = vpop.f32.mrf.mxu0
  %v3015 = vpop.f32.mrf.mxu0
  %v3016 = vadd.f32 0.0, %v3015
  %v3017 = vpop.f32.mrf.mxu0
  %3018 = vmatprep.mubr.bf16.mxu0 0
  %3019 = vmatmul.mubr.bf16.gmra.mxu0 %v2893
  %v3020 = vpop.f32.mrf.mxu0
  %v3021 = vadd.f32 0.0, %v3020
  %v3022 = vpop.f32.mrf.mxu0
  %v3023 = vpop.f32.mrf.mxu0
  %v3024 = vadd.f32 0.0, %v3023
  %v3025 = vpop.f32.mrf.mxu0
  %3026 = vmatprep.mubr.bf16.mxu0 0
  %3027 = vmatmul.mubr.bf16.gmra.mxu0 %v2894
  %v3028 = vpop.f32.mrf.mxu0
  %v3029 = vadd.f32 0.0, %v3028
  %v3030 = vpop.f32.mrf.mxu0
  %v3031 = vpop.f32.mrf.mxu0
  %v3032 = vadd.f32 0.0, %v3031
  %v3033 = vpop.f32.mrf.mxu0
  %3034 = vmatprep.mubr.bf16.mxu0 0
  %3035 = vmatmul.mubr.bf16.gmra.mxu0 %v2895
  %v3036 = vpop.f32.mrf.mxu0
  %v3037 = vadd.f32 0.0, %v3036
  %v3038 = vpop.f32.mrf.mxu0
  %v3039 = vpop.f32.mrf.mxu0
  %v3040 = vadd.f32 0.0, %v3039
  %v3041 = vpop.f32.mrf.mxu0
  %3042 = vmatprep.mubr.bf16.mxu0 0
  %3043 = vmatmul.mubr.bf16.gmra.mxu0 %v2896
  %v3044 = vpop.f32.mrf.mxu0
  %v3045 = vadd.f32 0.0, %v3044
  %v3046 = vpop.f32.mrf.mxu0
  %v3047 = vpop.f32.mrf.mxu0
  %v3048 = vadd.f32 0.0, %v3047
  %v3049 = vpop.f32.mrf.mxu0
  %3050 = vmatprep.mubr.bf16.mxu0 0
  %3051 = vmatmul.mubr.bf16.gmra.mxu0 %v2897
  %v3052 = vpop.f32.mrf.mxu0
  %v3053 = vadd.f32 0.0, %v3052
  %v3054 = vpop.f32.mrf.mxu0
  %v3055 = vpop.f32.mrf.mxu0
  %v3056 = vadd.f32 0.0, %v3055
  %v3057 = vpop.f32.mrf.mxu0
  %3058 = vdwg.mxu0
  %v3059 = vpack.c.bf16 %v3000, %v2997
  %v3060 = vpack.c.bf16 %v3008, %v3005
  %v3061 = vpack.c.bf16 %v3016, %v3013
  %v3062 = vpack.c.bf16 %v3024, %v3021
  %v3063 = vpack.c.bf16 %v3032, %v3029
  %v3064 = vpack.c.bf16 %v3040, %v3037
  %v3065 = vpack.c.bf16 %v3048, %v3045
  %v3066 = vpack.c.bf16 %v3056, %v3053
  %v3067 = vld [vmem:[%s9] sm:$0xf]
  %v3068 = vld [vmem:[%s9 + $0x4] sm:$0xf]
  %v3069 = vld [vmem:[%s9 + $0x8] sm:$0xf]
  %v3070 = vld [vmem:[%s9 + $0xc] sm:$0xf]
  %v3071 = vld [vmem:[%s9 + $0x10] sm:$0xf]
  %v3072 = vld [vmem:[%s9 + $0x14] sm:$0xf]
  %v3073 = vld [vmem:[%s9 + $0x18] sm:$0xf]
  %v3074 = vld [vmem:[%s9 + $0x1c] sm:$0xf]
  %v3075 = vld [vmem:[%s9 + $0x20] sm:$0xf]
  %v3076 = vld [vmem:[%s9 + $0x24] sm:$0xf]
  %v3077 = vld [vmem:[%s9 + $0x28] sm:$0xf]
  %v3078 = vld [vmem:[%s9 + $0x2c] sm:$0xf]
  %v3079 = vld [vmem:[%s9 + $0x30] sm:$0xf]
  %v3080 = vld [vmem:[%s9 + $0x34] sm:$0xf]
  %v3081 = vld [vmem:[%s9 + $0x38] sm:$0xf]
  %v3082 = vld [vmem:[%s9 + $0x3c] sm:$0xf]
  %v3099 = vunpack.c.l.b16 %v3067
  %v3100 = vunpack.c.l.b16 %v3068
  %v3101 = vunpack.c.l.b16 %v3069
  %v3102 = vunpack.c.l.b16 %v3070
  %v3103 = vunpack.c.l.b16 %v3071
  %v3104 = vunpack.c.l.b16 %v3072
  %v3105 = vunpack.c.l.b16 %v3073
  %v3106 = vunpack.c.l.b16 %v3074
  %v3107 = vunpack.c.l.b16 %v3075
  %v3108 = vunpack.c.l.b16 %v3076
  %v3109 = vunpack.c.l.b16 %v3077
  %v3110 = vunpack.c.l.b16 %v3078
  %v3111 = vunpack.c.l.b16 %v3079
  %v3112 = vunpack.c.l.b16 %v3080
  %v3113 = vunpack.c.l.b16 %v3081
  %v3114 = vunpack.c.l.b16 %v3082
  %v3115 = vpack.c.b16 %v3100, %v3099
  %v3116 = vpack.c.b16 %v3102, %v3101
  %v3117 = vpack.c.b16 %v3104, %v3103
  %v3118 = vpack.c.b16 %v3106, %v3105
  %v3119 = vpack.c.b16 %v3108, %v3107
  %v3120 = vpack.c.b16 %v3110, %v3109
  %v3121 = vpack.c.b16 %v3112, %v3111
  %v3122 = vpack.c.b16 %v3114, %v3113
  %3131 = vmatprep.subr.bf16.mxu0 0
  %3132 = vmatpush1.bf16.msra.mxu0 %v3122
  %3133 = vmatprep.subr.bf16.mxu0 0
  %3134 = vmatpush1.bf16.msra.mxu0 %v3121
  %3135 = vmatprep.subr.bf16.mxu0 0
  %3136 = vmatpush1.bf16.msra.mxu0 %v3120
  %3137 = vmatprep.subr.bf16.mxu0 0
  %3138 = vmatpush1.bf16.msra.mxu0 %v3119
  %3139 = vmatprep.subr.bf16.mxu0 0
  %3140 = vmatpush1.bf16.msra.mxu0 %v3118
  %3141 = vmatprep.subr.bf16.mxu0 0
  %3142 = vmatpush1.bf16.msra.mxu0 %v3117
  %3143 = vmatprep.subr.bf16.mxu0 0
  %3144 = vmatpush1.bf16.msra.mxu0 %v3116
  %3145 = vmatprep.subr.bf16.mxu0 0
  %3146 = vmatpush1.bf16.msra.mxu0 %v3115
  %3147 = vmatprep.subr.bf16.mxu0 0
  %3148 = vmatpush2.bf16.msra.mxu0 0
  %3149 = vmatprep.subr.bf16.mxu0 0
  %3150 = vmatpush2.bf16.msra.mxu0 0
  %3151 = vmatprep.subr.bf16.mxu0 0
  %3152 = vmatpush2.bf16.msra.mxu0 0
  %3153 = vmatprep.subr.bf16.mxu0 0
  %3154 = vmatpush2.bf16.msra.mxu0 0
  %3155 = vmatprep.subr.bf16.mxu0 0
  %3156 = vmatpush2.bf16.msra.mxu0 0
  %3157 = vmatprep.subr.bf16.mxu0 0
  %3158 = vmatpush2.bf16.msra.mxu0 0
  %3159 = vmatprep.subr.bf16.mxu0 0
  %3160 = vmatpush2.bf16.msra.mxu0 0
  %3161 = vmatprep.subr.bf16.mxu0 0
  %3162 = vmatpush2.bf16.msra.mxu0 0
  %3163 = vmatprep.mubr.bf16.mxu0 0
  %3164 = vmatmul.mubr.bf16.gmra.mxu0 %v2890
  %v3165 = vpop.f32.mrf.mxu0
  %v3166 = vadd.f32 0.0, %v3165
  %v3167 = vpop.f32.mrf.mxu0
  %v3168 = vpop.f32.mrf.mxu0
  %v3169 = vadd.f32 0.0, %v3168
  %v3170 = vpop.f32.mrf.mxu0
  %3171 = vmatprep.mubr.bf16.mxu0 0
  %3172 = vmatmul.mubr.bf16.gmra.mxu0 %v2891
  %v3173 = vpop.f32.mrf.mxu0
  %v3174 = vadd.f32 0.0, %v3173
  %v3175 = vpop.f32.mrf.mxu0
  %v3176 = vpop.f32.mrf.mxu0
  %v3177 = vadd.f32 0.0, %v3176
  %v3178 = vpop.f32.mrf.mxu0
  %3179 = vmatprep.mubr.bf16.mxu0 0
  %3180 = vmatmul.mubr.bf16.gmra.mxu0 %v2892
  %v3181 = vpop.f32.mrf.mxu0
  %v3182 = vadd.f32 0.0, %v3181
  %v3183 = vpop.f32.mrf.mxu0
  %v3184 = vpop.f32.mrf.mxu0
  %v3185 = vadd.f32 0.0, %v3184
  %v3186 = vpop.f32.mrf.mxu0
  %3187 = vmatprep.mubr.bf16.mxu0 0
  %3188 = vmatmul.mubr.bf16.gmra.mxu0 %v2893
  %v3189 = vpop.f32.mrf.mxu0
  %v3190 = vadd.f32 0.0, %v3189
  %v3191 = vpop.f32.mrf.mxu0
  %v3192 = vpop.f32.mrf.mxu0
  %v3193 = vadd.f32 0.0, %v3192
  %v3194 = vpop.f32.mrf.mxu0
  %3195 = vmatprep.mubr.bf16.mxu0 0
  %3196 = vmatmul.mubr.bf16.gmra.mxu0 %v2894
  %v3197 = vpop.f32.mrf.mxu0
  %v3198 = vadd.f32 0.0, %v3197
  %v3199 = vpop.f32.mrf.mxu0
  %v3200 = vpop.f32.mrf.mxu0
  %v3201 = vadd.f32 0.0, %v3200
  %v3202 = vpop.f32.mrf.mxu0
  %3203 = vmatprep.mubr.bf16.mxu0 0
  %3204 = vmatmul.mubr.bf16.gmra.mxu0 %v2895
  %v3205 = vpop.f32.mrf.mxu0
  %v3206 = vadd.f32 0.0, %v3205
  %v3207 = vpop.f32.mrf.mxu0
  %v3208 = vpop.f32.mrf.mxu0
  %v3209 = vadd.f32 0.0, %v3208
  %v3210 = vpop.f32.mrf.mxu0
  %3211 = vmatprep.mubr.bf16.mxu0 0
  %3212 = vmatmul.mubr.bf16.gmra.mxu0 %v2896
  %v3213 = vpop.f32.mrf.mxu0
  %v3214 = vadd.f32 0.0, %v3213
  %v3215 = vpop.f32.mrf.mxu0
  %v3216 = vpop.f32.mrf.mxu0
  %v3217 = vadd.f32 0.0, %v3216
  %v3218 = vpop.f32.mrf.mxu0
  %3219 = vmatprep.mubr.bf16.mxu0 0
  %3220 = vmatmul.mubr.bf16.gmra.mxu0 %v2897
  %v3221 = vpop.f32.mrf.mxu0
  %v3222 = vadd.f32 0.0, %v3221
  %v3223 = vpop.f32.mrf.mxu0
  %v3224 = vpop.f32.mrf.mxu0
  %v3225 = vadd.f32 0.0, %v3224
  %v3226 = vpop.f32.mrf.mxu0
  %3227 = vdwg.mxu0
  %3228 = vmatprep.subr.bf16.mxu0 0
  %3229 = vmatpush1.bf16.msra.mxu0 %v3066
  %3230 = vmatprep.subr.bf16.mxu0 0
  %3231 = vmatpush1.bf16.msra.mxu0 %v3065
  %3232 = vmatprep.subr.bf16.mxu0 0
  %3233 = vmatpush1.bf16.msra.mxu0 %v3064
  %3234 = vmatprep.subr.bf16.mxu0 0
  %3235 = vmatpush1.bf16.msra.mxu0 %v3063
  %3236 = vmatprep.subr.bf16.mxu0 0
  %3237 = vmatpush1.bf16.msra.mxu0 %v3062
  %3238 = vmatprep.subr.bf16.mxu0 0
  %3239 = vmatpush1.bf16.msra.mxu0 %v3061
  %3240 = vmatprep.subr.bf16.mxu0 0
  %3241 = vmatpush1.bf16.msra.mxu0 %v3060
  %3242 = vmatprep.subr.bf16.mxu0 0
  %3243 = vmatpush1.bf16.msra.mxu0 %v3059
  %3244 = vmatprep.subr.bf16.mxu0 0
  %3245 = vmatpush2.bf16.msra.mxu0 0
  %3246 = vmatprep.subr.bf16.mxu0 0
  %3247 = vmatpush2.bf16.msra.mxu0 0
  %3248 = vmatprep.subr.bf16.mxu0 0
  %3249 = vmatpush2.bf16.msra.mxu0 0
  %3250 = vmatprep.subr.bf16.mxu0 0
  %3251 = vmatpush2.bf16.msra.mxu0 0
  %3252 = vmatprep.subr.bf16.mxu0 0
  %3253 = vmatpush2.bf16.msra.mxu0 0
  %3254 = vmatprep.subr.bf16.mxu0 0
  %3255 = vmatpush2.bf16.msra.mxu0 0
  %3256 = vmatprep.subr.bf16.mxu0 0
  %3257 = vmatpush2.bf16.msra.mxu0 0
  %3258 = vmatprep.subr.bf16.mxu0 0
  %3259 = vmatpush2.bf16.msra.mxu0 0
  %3260 = vmatprep.mubr.bf16.mxu0 0
  %3261 = vmatmul.mubr.bf16.gmra.mxu0 %v2279
  %v3262 = vpop.f32.mrf.mxu0
  %v3263 = vadd.f32 %v3166, %v3262
  %v3264 = vpop.f32.mrf.mxu0
  %v3265 = vpop.f32.mrf.mxu0
  %v3266 = vadd.f32 %v3169, %v3265
  %v3267 = vpop.f32.mrf.mxu0
  %3268 = vmatprep.mubr.bf16.mxu0 0
  %3269 = vmatmul.mubr.bf16.gmra.mxu0 %v2280
  %v3270 = vpop.f32.mrf.mxu0
  %v3271 = vadd.f32 %v3174, %v3270
  %v3272 = vpop.f32.mrf.mxu0
  %v3273 = vpop.f32.mrf.mxu0
  %v3274 = vadd.f32 %v3177, %v3273
  %v3275 = vpop.f32.mrf.mxu0
  %3276 = vmatprep.mubr.bf16.mxu0 0
  %3277 = vmatmul.mubr.bf16.gmra.mxu0 %v2281
  %v3278 = vpop.f32.mrf.mxu0
  %v3279 = vadd.f32 %v3182, %v3278
  %v3280 = vpop.f32.mrf.mxu0
  %v3281 = vpop.f32.mrf.mxu0
  %v3282 = vadd.f32 %v3185, %v3281
  %v3283 = vpop.f32.mrf.mxu0
  %3284 = vmatprep.mubr.bf16.mxu0 0
  %3285 = vmatmul.mubr.bf16.gmra.mxu0 %v2282
  %v3286 = vpop.f32.mrf.mxu0
  %v3287 = vadd.f32 %v3190, %v3286
  %v3288 = vpop.f32.mrf.mxu0
  %v3289 = vpop.f32.mrf.mxu0
  %v3290 = vadd.f32 %v3193, %v3289
  %v3291 = vpop.f32.mrf.mxu0
  %3292 = vmatprep.mubr.bf16.mxu0 0
  %3293 = vmatmul.mubr.bf16.gmra.mxu0 %v2283
  %v3294 = vpop.f32.mrf.mxu0
  %v3295 = vadd.f32 %v3198, %v3294
  %v3296 = vpop.f32.mrf.mxu0
  %v3297 = vpop.f32.mrf.mxu0
  %v3298 = vadd.f32 %v3201, %v3297
  %v3299 = vpop.f32.mrf.mxu0
  %3300 = vmatprep.mubr.bf16.mxu0 0
  %3301 = vmatmul.mubr.bf16.gmra.mxu0 %v2284
  %v3302 = vpop.f32.mrf.mxu0
  %v3303 = vadd.f32 %v3206, %v3302
  %v3304 = vpop.f32.mrf.mxu0
  %v3305 = vpop.f32.mrf.mxu0
  %v3306 = vadd.f32 %v3209, %v3305
  %v3307 = vpop.f32.mrf.mxu0
  %3308 = vmatprep.mubr.bf16.mxu0 0
  %3309 = vmatmul.mubr.bf16.gmra.mxu0 %v2285
  %v3310 = vpop.f32.mrf.mxu0
  %v3311 = vadd.f32 %v3214, %v3310
  %v3312 = vpop.f32.mrf.mxu0
  %v3313 = vpop.f32.mrf.mxu0
  %v3314 = vadd.f32 %v3217, %v3313
  %v3315 = vpop.f32.mrf.mxu0
  %3316 = vmatprep.mubr.bf16.mxu0 0
  %3317 = vmatmul.mubr.bf16.gmra.mxu0 %v2286
  %v3318 = vpop.f32.mrf.mxu0
  %v3319 = vadd.f32 %v3222, %v3318
  %v3320 = vpop.f32.mrf.mxu0
  %v3321 = vpop.f32.mrf.mxu0
  %v3322 = vadd.f32 %v3225, %v3321
  %v3323 = vpop.f32.mrf.mxu0
  %3324 = vdwg.mxu0
  %v3325 = vld [vmem:[%s10] sm:$0x1]
  %v3327 = vlaneseq
  %v3328 = vshrl.u32 %v3327, 7
  %v3329 = vsub.s32 0, %v3328
  %v3330 = vrot.slane %v3325, %v3329
  %v3332 = vadd.f32 %v3263, %v3330
  %v3333 = vadd.f32 %v3266, %v3330
  %v3334 = vadd.f32 %v3271, %v3330
  %v3335 = vadd.f32 %v3274, %v3330
  %v3336 = vadd.f32 %v3279, %v3330
  %v3337 = vadd.f32 %v3282, %v3330
  %v3338 = vadd.f32 %v3287, %v3330
  %v3339 = vadd.f32 %v3290, %v3330
  %v3340 = vadd.f32 %v3295, %v3330
  %v3341 = vadd.f32 %v3298, %v3330
  %v3342 = vadd.f32 %v3303, %v3330
  %v3343 = vadd.f32 %v3306, %v3330
  %v3344 = vadd.f32 %v3311, %v3330
  %v3345 = vadd.f32 %v3314, %v3330
  %v3346 = vadd.f32 %v3319, %v3330
  %v3347 = vadd.f32 %v3322, %v3330
  %vm3348 = vcmask 31744
  %3349 = vst.msk [vmem:[%s11] sm:$0xff] %vm3348, %v3332
  %3350 = vst.msk [vmem:[%s11 + $0x8] sm:$0xff] %vm3348, %v3333
  %3351 = vst.msk [vmem:[%s11 + $0x10] sm:$0xff] %vm3348, %v3334
  %3352 = vst.msk [vmem:[%s11 + $0x18] sm:$0xff] %vm3348, %v3335
  %3353 = vst.msk [vmem:[%s11 + $0x20] sm:$0xff] %vm3348, %v3336
  %3354 = vst.msk [vmem:[%s11 + $0x28] sm:$0xff] %vm3348, %v3337
  %3355 = vst.msk [vmem:[%s11 + $0x30] sm:$0xff] %vm3348, %v3338
  %3356 = vst.msk [vmem:[%s11 + $0x38] sm:$0xff] %vm3348, %v3339
  %3357 = vst.msk [vmem:[%s11 + $0x40] sm:$0xff] %vm3348, %v3340
  %3358 = vst.msk [vmem:[%s11 + $0x48] sm:$0xff] %vm3348, %v3341
  %3359 = vst.msk [vmem:[%s11 + $0x50] sm:$0xff] %vm3348, %v3342
  %3360 = vst.msk [vmem:[%s11 + $0x58] sm:$0xff] %vm3348, %v3343
  %3361 = vst.msk [vmem:[%s11 + $0x60] sm:$0xff] %vm3348, %v3344
  %3362 = vst.msk [vmem:[%s11 + $0x68] sm:$0xff] %vm3348, %v3345
  %3363 = vst.msk [vmem:[%s11 + $0x70] sm:$0xff] %vm3348, %v3346
  %3364 = vst.msk [vmem:[%s11 + $0x78] sm:$0xff] %vm3348, %v3347
  // Predicated region
  $region46: #{tpu_custom_call.1} parent=0 // pred_check
    _
  $region47: #{tpu_custom_call.1} parent=0 // pred_check_branch
    %3366 = sbr.rel (0) target = $region49
  $region48: #{tpu_custom_call.1} parent=0 // pred_region
    _
  $region49: #{tpu_custom_call.1} parent=0 // pred_fallthru
    _
  // Predicated region
  $region50: #{tpu_custom_call.1} parent=0 // pred_check
    _
  $region51: #{tpu_custom_call.1} parent=0 // pred_check_branch
    %3368 = sbr.rel (0) target = $region53
  $region52: #{tpu_custom_call.1} parent=0 // pred_region
    _
  $region53: #{tpu_custom_call.1} parent=0 // pred_fallthru
    _

</llo_original>
